<compile_context>
chip_gen: v7x
topology: tpu7x:2x2x1
jax: 0.10.0
libtpu: 0.0.40
codegen_flags: <defaults>
</compile_context>

<pallas_src>
import functools

import jax
import jax.numpy as jnp
from jax import lax
from jax.experimental import pallas as pl
from jax.experimental.pallas import tpu as pltpu


_TQ = 128                 # pixel-tile width (lanes)
_VMEM_LIMIT = 32 << 20    # safe on v5e/v6e/v7x; actual use here is tiny


# ----------------------------- kernel helpers --------------------------------

def _bilinear_factors(gx, gy, H, W):
    """Factored bilinear weights for F.grid_sample(bilinear, zeros, align_corners=True).

    gx, gy : (1, TQ) sampling coords in [-1, 1].
    Returns fx:(W, TQ), fy:(H, TQ) f32 such that
        out[q] = sum_{h,w} img[h, w] * fy[h, q] * fx[w, q].
    Out-of-range corners match no row/col, so zeros padding holds.
    """
    tq = gx.shape[1]
    ix = (gx + 1.0) * (0.5 * (W - 1))
    iy = (gy + 1.0) * (0.5 * (H - 1))
    x0f = jnp.floor(ix)
    y0f = jnp.floor(iy)
    x0 = x0f.astype(jnp.int32)
    y0 = y0f.astype(jnp.int32)
    wx1 = ix - x0f
    wy1 = iy - y0f
    wc = lax.broadcasted_iota(jnp.int32, (W, tq), 0)   # pixel column index
    hc = lax.broadcasted_iota(jnp.int32, (H, tq), 0)   # pixel row index
    fx = (jnp.where(wc == x0, 1.0 - wx1, 0.0)
          + jnp.where(wc == x0 + 1, wx1, 0.0))         # (W, TQ)
    fy = (jnp.where(hc == y0, 1.0 - wy1, 0.0)
          + jnp.where(hc == y0 + 1, wy1, 0.0))         # (H, TQ)
    return fx, fy


def _sample_rows(img_flat, fx, fy, rows, H):
    """img_flat:(rows*H, W) @ fx:(W, TQ) on the MXU, then weight by fy:(H, TQ)
    and reduce over H on the VPU.  Returns (rows, TQ)."""
    tmp = jnp.dot(img_flat, fx, preferred_element_type=jnp.float32)   # (rows*H, TQ)
    tmp = tmp.reshape(rows, H, fx.shape[1])
    return jnp.sum(tmp * fy[None, :, :], axis=1)


# ------------------------------ Pallas kernels --------------------------------

def _tps_compose_kernel(p_ref, ctrl_ref, w_ref, a_ref, img_ref, out_ref, *, H, W):
    """Fused: TPS sampling grid (reduced-theta variant, exact pytorch_tps RBF)
    + bilinear grid_sample of the (2, H, W) affine grid at those coords."""
    P = p_ref[...]                                     # (2, TQ) base coords in [0, 1]
    px = P[0:1, :]
    py = P[1:2, :]
    ctrl = ctrl_ref[...]                               # (T, 2)
    dx = px - ctrl[:, 0:1]                             # (T, TQ)
    dy = py - ctrl[:, 1:2]
    d2 = dx * dx + dy * dy
    u = d2 * jnp.log(jnp.sqrt(d2) + 1e-6)              # exact pytorch_tps RBF
    b = jnp.dot(w_ref[...], u, preferred_element_type=jnp.float32)   # (2, TQ)
    a = a_ref[...]                                     # (2, 3): [bias, x-coef, y-coef]
    z = a[:, 0:1] + a[:, 1:2] * px + a[:, 2:3] * py
    g = (P + b + z) * 2.0 - 1.0                        # (2, TQ) in [-1, 1]

    fx, fy = _bilinear_factors(g[0:1, :], g[1:2, :], H, W)
    out_ref[...] = _sample_rows(img_ref[...], fx, fy, 2, H)


def _grid_sample_kernel(coords_ref, img_ref, out_ref, *, rows, H, W):
    """Bilinear grid_sample with one sampling grid shared by all B*C image rows."""
    g = coords_ref[...]                                # (2, TQ)
    fx, fy = _bilinear_factors(g[0:1, :], g[1:2, :], H, W)
    out_ref[...] = _sample_rows(img_ref[...], fx, fy, rows, H)


def _make_matmul_kernel(act):
    def kernel(a_ref, w_ref, b_ref, o_ref):
        y = jnp.dot(a_ref[...], w_ref[...], preferred_element_type=jnp.float32)
        y = y + b_ref[...]
        if act == "relu":
            y = jnp.maximum(y, 0.0)
        elif act == "leaky_relu":
            y = jnp.where(y >= 0.0, y, 0.1 * y)
        o_ref[...] = y
    return kernel


# ------------------------------- wrappers -------------------------------------

def tps_compose_grid(P_t, ctrl, w_t, a_t, affine_img, H, W):
    """Fused TPS grid + F.grid_sample(affine_grid, tps_grid, align_corners=True).

    P_t: (2, Npix) base coords in [0, 1]; affine_img: (2*H, W). Returns (2, Npix).
    """
    npix = P_t.shape[1]
    npad = pl.cdiv(npix, _TQ) * _TQ
    if npad != npix:
        P_t = jnp.pad(P_t, ((0, 0), (0, npad - npix)))
    T = ctrl.shape[0]
    out = pl.pallas_call(
        functools.partial(_tps_compose_kernel, H=H, W=W),
        out_shape=jax.ShapeDtypeStruct((2, npad), jnp.float32),
        grid=(npad // _TQ,),
        in_specs=[
            pl.BlockSpec((2, _TQ), lambda q: (0, q)),
            pl.BlockSpec((T, 2), lambda q: (0, 0)),
            pl.BlockSpec((2, T), lambda q: (0, 0)),
            pl.BlockSpec((2, 3), lambda q: (0, 0)),
            pl.BlockSpec((2 * H, W), lambda q: (0, 0)),   # resident: DMA'd once
        ],
        out_specs=pl.BlockSpec((2, _TQ), lambda q: (0, q)),
        compiler_params=pltpu.CompilerParams(
            dimension_semantics=("parallel",),
            vmem_limit_bytes=_VMEM_LIMIT),
    )(P_t, ctrl, w_t, a_t, affine_img)
    return out[:, :npix]


def grid_sample_shared(img, coords):
    """F.grid_sample(bilinear, zeros, align_corners=True) with one sampling grid
    shared across the whole batch.  img: (B, C, H, W); coords: (2, Npix).
    Returns (B, C, Npix) f32 (lane-dense: pixels on the last axis)."""
    B, C, H, W = img.shape
    rows = B * C
    npix = coords.shape[1]
    npad = pl.cdiv(npix, _TQ) * _TQ
    if npad != npix:
        coords = jnp.pad(coords, ((0, 0), (0, npad - npix)))
    # TODO(synk): for very large images (rows*H*W*4 beyond the VMEM budget),
    # reintroduce an "arbitrary" H-reduction grid axis with an accumulator.
    out = pl.pallas_call(
        functools.partial(_grid_sample_kernel, rows=rows, H=H, W=W),
        out_shape=jax.ShapeDtypeStruct((rows, npad), jnp.float32),
        grid=(npad // _TQ,),
        in_specs=[
            pl.BlockSpec((2, _TQ), lambda q: (0, q)),
            pl.BlockSpec((rows * H, W), lambda q: (0, 0)),   # resident: DMA'd once
        ],
        out_specs=pl.BlockSpec((rows, _TQ), lambda q: (0, q)),
        compiler_params=pltpu.CompilerParams(
            dimension_semantics=("parallel",),
            vmem_limit_bytes=_VMEM_LIMIT),
    )(coords, img.reshape(rows * H, W))
    return out[:, :npix].reshape(B, C, npix)


def fused_matmul(A, Wm, b, act="none"):
    """(M, K) @ (K, N) + bias with fused activation.  Rows are padded to the
    tile (no divisibility assert); tile chosen to give >=2 grid steps where
    possible so both v7x TensorCores get work."""
    M, K = A.shape
    N = Wm.shape[1]
    if M >= 256:
        tm = 128
    elif M >= 16:
        tm = ((M + 1) // 2 + 7) // 8 * 8
    else:
        tm = 8
    Mp = pl.cdiv(M, tm) * tm
    if Mp != M:
        A = jnp.pad(A, ((0, Mp - M), (0, 0)))
    out = pl.pallas_call(
        _make_matmul_kernel(act),
        out_shape=jax.ShapeDtypeStruct((Mp, N), jnp.float32),
        grid=(Mp // tm,),
        in_specs=[pl.BlockSpec((tm, K), lambda i: (i, 0)),
                  pl.BlockSpec((K, N), lambda i: (0, 0)),
                  pl.BlockSpec((1, N), lambda i: (0, 0))],
        out_specs=pl.BlockSpec((tm, N), lambda i: (i, 0)),
        compiler_params=pltpu.CompilerParams(
            dimension_semantics=("parallel",),
            vmem_limit_bytes=_VMEM_LIMIT),
    )(A, Wm, b.reshape(1, N))
    return out[:M]


# ------------------------------ JAX glue ---------------------------------------

def _im2col(x, k, stride, pad):
    B, Cin, H, W = x.shape
    OH = (H + 2 * pad - k) // stride + 1
    OW = (W + 2 * pad - k) // stride + 1
    xp = jnp.pad(x, ((0, 0), (0, 0), (pad, pad), (pad, pad)))
    cols = []
    for kh in range(k):
        for kw in range(k):
            cols.append(xp[:, :, kh:kh + stride * (OH - 1) + 1:stride,
                              kw:kw + stride * (OW - 1) + 1:stride])
    patches = jnp.stack(cols, axis=2)                         # (B, Cin, k*k, OH, OW)
    patches = patches.transpose(0, 3, 4, 1, 2)                # (B, OH, OW, Cin, k*k)
    return patches.reshape(B * OH * OW, Cin * k * k), OH, OW


def conv2d(x, Wc, bc, stride, pad, act):
    B = x.shape[0]
    Cout, Cin, k, _ = Wc.shape
    patches, OH, OW = _im2col(x, k, stride, pad)
    y = fused_matmul(patches, Wc.reshape(Cout, Cin * k * k).T, bc, act)
    return y.reshape(B, OH, OW, Cout).transpose(0, 3, 1, 2)   # NCHW


def conv_transpose_2x2_s2(x, Wt, bt, act):
    # ConvTranspose2d(kernel=2, stride=2, pad=0): non-overlapping -> matmul + depth-to-space.
    B, Cin, H, W = x.shape
    Cout = Wt.shape[1]
    Xm = x.transpose(0, 2, 3, 1).reshape(B * H * W, Cin)
    Wm = Wt.reshape(Cin, Cout * 4)                            # (co, dh, dw) order
    bm = jnp.repeat(bt, 4)
    y = fused_matmul(Xm, Wm, bm, act)                         # (B*H*W, Cout*4)
    y = y.reshape(B, H, W, Cout, 2, 2).transpose(0, 3, 1, 4, 2, 5)
    return y.reshape(B, Cout, 2 * H, 2 * W)


def affine_grid_chw(affine_mat, H, W):
    # F.affine_grid(..., align_corners=True).permute(0, 3, 1, 2)  -> (2, H, W)
    xs = jnp.linspace(-1.0, 1.0, W, dtype=jnp.float32)
    ys = jnp.linspace(-1.0, 1.0, H, dtype=jnp.float32)
    gx, gy = jnp.meshgrid(xs, ys)
    A = affine_mat[0]
    ox = A[0, 0] * gx + A[0, 1] * gy + A[0, 2]
    oy = A[1, 0] * gx + A[1, 1] * gy + A[1, 2]
    return jnp.stack([ox, oy], axis=0)                        # (2, H, W)


def uniform_ctrl_grid(gh, gw):
    # pytorch_tps.uniform_grid: control points over [0, 1]^2, (x, y) in last axis.
    xs = jnp.linspace(0.0, 1.0, gw, dtype=jnp.float32)
    ys = jnp.linspace(0.0, 1.0, gh, dtype=jnp.float32)
    cx, cy = jnp.meshgrid(xs, ys)
    return jnp.stack([cx, cy], axis=-1).reshape(-1, 2)        # (T, 2)


class WarpingNetPallas:
    def __init__(self, key, grid_shape=(6, 6), out_size=(16, 16), with_refine=True):
        self.grid_shape = grid_shape
        self.out_size = tuple(out_size)
        self.with_refine = with_refine
        self.nctrl = grid_shape[0] * grid_shape[1]
        self.nparam = self.nctrl + 2
        # nn.Parameter inits from __init__
        self.affine_mat = jnp.array([[1., 0., 0.], [0., 1., 0.]], jnp.float32)[None]
        self.ctrl_pts = uniform_ctrl_grid(*grid_shape)                    # (T, 2)
        self.theta = jnp.ones((1, self.nparam, 2), jnp.float32) * 0.001
        if with_refine:
            ks = jax.random.split(key, 8)
            n = lambda k, s, sc: jax.random.normal(k, s, jnp.float32) * sc
            # Conv2d weights ~ N(0, 1e-4) (init_normal); other params small & deterministic.
            self.W1 = n(ks[0], (32, 2, 3, 3), 1e-4);  self.b1 = n(ks[1], (32,), 0.05)
            self.W2 = n(ks[2], (64, 32, 3, 3), 1e-4); self.b2 = n(ks[3], (64,), 0.05)
            self.Wt1 = n(ks[4], (64, 32, 2, 2), 0.05); self.bt1 = n(ks[5], (32,), 0.05)
            self.Wt2 = n(ks[6], (32, 2, 2, 2), 0.05);  self.bt2 = n(ks[7], (2,), 0.05)

    # TODO(synk): fuse the 4 refine-net matmuls into one pallas_call with
    # VMEM-resident intermediates; the im2col / depth-to-space layout glue
    # currently lives in XLA between calls (tiny at 16x16 out_size).
    def _refine(self, g):
        h = conv2d(g, self.W1, self.b1, 2, 1, "relu")              # (1, 32, H/2, W/2)
        h = conv2d(h, self.W2, self.b2, 2, 1, "relu")              # (1, 64, H/4, W/4)
        h = conv_transpose_2x2_s2(h, self.Wt1, self.bt1, "relu")   # (1, 32, H/2, W/2)
        h = conv_transpose_2x2_s2(h, self.Wt2, self.bt2, "leaky_relu")  # (1, 2, H, W)
        return h

    def __call__(self, x):
        B, C, H, W = x.shape
        Ho, Wo = self.out_size
        # 1) affine sampling grid at the input resolution (tiny, constant under jit)
        affine_img = affine_grid_chw(self.affine_mat, H, W).reshape(2 * H, W)
        # 2+3) fused Pallas kernel: TPS grid at out_size + grid_sample of the affine grid
        xs = jnp.linspace(0.0, 1.0, Wo, dtype=jnp.float32)
        ys = jnp.linspace(0.0, 1.0, Ho, dtype=jnp.float32)
        gx, gy = jnp.meshgrid(xs, ys)
        P_t = jnp.stack([gx.reshape(-1), gy.reshape(-1)], axis=0)          # (2, Ho*Wo)
        w = self.theta[0, :-3, :]
        w_t = jnp.concatenate([-jnp.sum(w, axis=0, keepdims=True), w], axis=0).T  # (2, T)
        a_t = self.theta[0, -3:, :].T                                       # (2, 3)
        g = tps_compose_grid(P_t, self.ctrl_pts, w_t, a_t, affine_img, H, W)
        g = g.reshape(1, 2, Ho, Wo)
        # 4) refinement CNN (batch-invariant: refine(repeat(g)) == repeat(refine(g)))
        #    + residual + clamp.
        if self.with_refine:
            fine = jnp.clip(self._refine(g) + g, -1.0, 1.0)
        else:
            fine = jnp.clip(g, -1.0, 1.0)
        fine_t = fine.reshape(2, Ho * Wo)          # shared sampling grid (lane-dense)
        # 5) warp the input with the fine grid: one Pallas call, all B*C rows at once
        y = grid_sample_shared(x, fine_t)          # (B, C, Ho*Wo)
        return y.reshape(B, C, Ho, Wo)


if __name__ == "__main__":
    key = jax.random.PRNGKey(0)
    kp, kx = jax.random.split(key)
    net = WarpingNetPallas(kp, grid_shape=(6, 6), out_size=(16, 16), with_refine=True)
    x = jax.random.normal(kx, (2, 4, 16, 16), jnp.float32)
    y = jax.jit(net.__call__)(x)
    jax.block_until_ready(y)
    assert y.shape == (2, 4, 16, 16) and y.dtype == jnp.float32
    assert bool(jnp.all(jnp.isfinite(y)))
    print("KERNEL_OK")
</pallas_src>

<mosaic_0001>
module attributes {stable_mosaic.version = 11 : i64} {
  func.func @_tps_compose_kernel(%arg0: i32, %arg1: memref<2x128xf32, #tpu.memory_space<vmem>>, %arg2: memref<36x2xf32, #tpu.memory_space<vmem>>, %arg3: memref<2x36xf32, #tpu.memory_space<vmem>>, %arg4: memref<2x3xf32, #tpu.memory_space<vmem>>, %arg5: memref<32x16xf32, #tpu.memory_space<vmem>>, %arg6: memref<2x128xf32, #tpu.memory_space<vmem>>) attributes {dimension_semantics = [#tpu.dimension_semantics<parallel>], iteration_bounds = array<i64: 2>, scalar_prefetch = 0 : i64, scratch_operands = 0 : i64, tpu.core_type = #tpu.core_type<tc>, window_params = [{transform_indices = @transform_0, window_bounds = array<i64: 2, 128>}, {pipeline_mode = #tpu.pipeline_mode<synchronous>, transform_indices = @transform_1, window_bounds = array<i64: 36, 2>}, {pipeline_mode = #tpu.pipeline_mode<synchronous>, transform_indices = @transform_2, window_bounds = array<i64: 2, 36>}, {pipeline_mode = #tpu.pipeline_mode<synchronous>, transform_indices = @transform_3, window_bounds = array<i64: 2, 3>}, {pipeline_mode = #tpu.pipeline_mode<synchronous>, transform_indices = @transform_4, window_bounds = array<i64: 32, 16>}, {transform_indices = @transform_5, window_bounds = array<i64: 2, 128>}]} {
    %c0 = arith.constant 0 : index
    %c0_0 = arith.constant 0 : index
    %0 = vector.load %arg1[%c0, %c0_0] : memref<2x128xf32, #tpu.memory_space<vmem>>, vector<2x128xf32>
    %1 = vector.extract_strided_slice %0 {offsets = [0, 0], sizes = [1, 128], strides = [1, 1]} : vector<2x128xf32> to vector<1x128xf32>
    %2 = vector.extract_strided_slice %0 {offsets = [1, 0], sizes = [1, 128], strides = [1, 1]} : vector<2x128xf32> to vector<1x128xf32>
    %c0_1 = arith.constant 0 : index
    %c0_2 = arith.constant 0 : index
    %3 = vector.load %arg2[%c0_1, %c0_2] : memref<36x2xf32, #tpu.memory_space<vmem>>, vector<36x2xf32>
    %4 = vector.extract_strided_slice %3 {offsets = [0, 0], sizes = [36, 1], strides = [1, 1]} : vector<36x2xf32> to vector<36x1xf32>
    %5 = vector.broadcast %1 : vector<1x128xf32> to vector<36x128xf32>
    %6 = vector.broadcast %4 : vector<36x1xf32> to vector<36x128xf32>
    %7 = arith.subf %5, %6 : vector<36x128xf32>
    %8 = vector.extract_strided_slice %3 {offsets = [0, 1], sizes = [36, 1], strides = [1, 1]} : vector<36x2xf32> to vector<36x1xf32>
    %9 = vector.broadcast %2 : vector<1x128xf32> to vector<36x128xf32>
    %10 = vector.broadcast %8 : vector<36x1xf32> to vector<36x128xf32>
    %11 = arith.subf %9, %10 : vector<36x128xf32>
    %12 = arith.mulf %7, %7 : vector<36x128xf32>
    %13 = arith.mulf %11, %11 : vector<36x128xf32>
    %14 = arith.addf %12, %13 : vector<36x128xf32>
    %15 = math.sqrt %14 : vector<36x128xf32>
    %cst = arith.constant 9.99999997E-7 : f32
    %16 = vector.broadcast %cst : f32 to vector<36x128xf32>
    %17 = arith.addf %15, %16 : vector<36x128xf32>
    %18 = math.log %17 : vector<36x128xf32>
    %19 = arith.mulf %14, %18 : vector<36x128xf32>
    %c0_3 = arith.constant 0 : index
    %c0_4 = arith.constant 0 : index
    %20 = vector.load %arg3[%c0_3, %c0_4] : memref<2x36xf32, #tpu.memory_space<vmem>>, vector<2x36xf32>
    %cst_5 = arith.constant dense<0.000000e+00> : vector<2x128xf32>
    %21 = tpu.matmul %20, %19, %cst_5 {dimension_numbers = #tpu.dot_dimension_numbers<[1], [0], [0], [1], [0, 0, 1, 1], [], []>} : vector<2x36xf32>, vector<36x128xf32>, vector<2x128xf32> -> vector<2x128xf32>
    %c0_6 = arith.constant 0 : index
    %c0_7 = arith.constant 0 : index
    %22 = vector.load %arg4[%c0_6, %c0_7] : memref<2x3xf32, #tpu.memory_space<vmem>>, vector<2x3xf32>
    %23 = vector.extract_strided_slice %22 {offsets = [0, 0], sizes = [2, 1], strides = [1, 1]} : vector<2x3xf32> to vector<2x1xf32>
    %24 = vector.extract_strided_slice %22 {offsets = [0, 1], sizes = [2, 1], strides = [1, 1]} : vector<2x3xf32> to vector<2x1xf32>
    %25 = vector.broadcast %24 : vector<2x1xf32> to vector<2x128xf32>
    %26 = vector.broadcast %1 : vector<1x128xf32> to vector<2x128xf32>
    %27 = arith.mulf %25, %26 : vector<2x128xf32>
    %28 = vector.broadcast %23 : vector<2x1xf32> to vector<2x128xf32>
    %29 = arith.addf %28, %27 : vector<2x128xf32>
    %30 = vector.extract_strided_slice %22 {offsets = [0, 2], sizes = [2, 1], strides = [1, 1]} : vector<2x3xf32> to vector<2x1xf32>
    %31 = vector.broadcast %30 : vector<2x1xf32> to vector<2x128xf32>
    %32 = vector.broadcast %2 : vector<1x128xf32> to vector<2x128xf32>
    %33 = arith.mulf %31, %32 : vector<2x128xf32>
    %34 = arith.addf %29, %33 : vector<2x128xf32>
    %35 = arith.addf %0, %21 : vector<2x128xf32>
    %36 = arith.addf %35, %34 : vector<2x128xf32>
    %cst_8 = arith.constant 2.000000e+00 : f32
    %37 = vector.broadcast %cst_8 : f32 to vector<2x128xf32>
    %38 = arith.mulf %36, %37 : vector<2x128xf32>
    %cst_9 = arith.constant 1.000000e+00 : f32
    %39 = vector.broadcast %cst_9 : f32 to vector<2x128xf32>
    %40 = arith.subf %38, %39 : vector<2x128xf32>
    %41 = vector.extract_strided_slice %40 {offsets = [0, 0], sizes = [1, 128], strides = [1, 1]} : vector<2x128xf32> to vector<1x128xf32>
    %42 = vector.extract_strided_slice %40 {offsets = [1, 0], sizes = [1, 128], strides = [1, 1]} : vector<2x128xf32> to vector<1x128xf32>
    %cst_10 = arith.constant 1.000000e+00 : f32
    %43 = vector.broadcast %cst_10 : f32 to vector<1x128xf32>
    %44 = arith.addf %41, %43 : vector<1x128xf32>
    %cst_11 = arith.constant 7.500000e+00 : f32
    %45 = vector.broadcast %cst_11 : f32 to vector<1x128xf32>
    %46 = arith.mulf %44, %45 : vector<1x128xf32>
    %cst_12 = arith.constant 1.000000e+00 : f32
    %47 = vector.broadcast %cst_12 : f32 to vector<1x128xf32>
    %48 = arith.addf %42, %47 : vector<1x128xf32>
    %cst_13 = arith.constant 7.500000e+00 : f32
    %49 = vector.broadcast %cst_13 : f32 to vector<1x128xf32>
    %50 = arith.mulf %48, %49 : vector<1x128xf32>
    %51 = math.floor %46 : vector<1x128xf32>
    %52 = math.floor %50 : vector<1x128xf32>
    %53 = arith.fptosi %51 : vector<1x128xf32> to vector<1x128xi32>
    %54 = arith.fptosi %52 : vector<1x128xf32> to vector<1x128xi32>
    %55 = arith.subf %46, %51 : vector<1x128xf32>
    %56 = arith.subf %50, %52 : vector<1x128xf32>
    %57 = tpu.iota {dimensions = array<i32: 0>} : vector<16x128xi32>
    %58 = tpu.iota {dimensions = array<i32: 0>} : vector<16x128xi32>
    %59 = vector.broadcast %53 : vector<1x128xi32> to vector<16x128xi32>
    %60 = arith.cmpi eq, %57, %59 : vector<16x128xi32>
    %cst_14 = arith.constant 1.000000e+00 : f32
    %61 = vector.broadcast %cst_14 : f32 to vector<1x128xf32>
    %62 = arith.subf %61, %55 : vector<1x128xf32>
    %cst_15 = arith.constant 0.000000e+00 : f32
    %63 = vector.shape_cast %62 : vector<1x128xf32> to vector<1x128xf32>
    %64 = vector.broadcast %63 : vector<1x128xf32> to vector<16x128xf32>
    %65 = vector.broadcast %cst_15 : f32 to vector<16x128xf32>
    %66 = arith.select %60, %64, %65 : vector<16x128xi1>, vector<16x128xf32>
    %c1_i32 = arith.constant 1 : i32
    %67 = vector.broadcast %c1_i32 : i32 to vector<1x128xi32>
    %68 = arith.addi %53, %67 : vector<1x128xi32>
    %69 = vector.broadcast %68 : vector<1x128xi32> to vector<16x128xi32>
    %70 = arith.cmpi eq, %57, %69 : vector<16x128xi32>
    %cst_16 = arith.constant 0.000000e+00 : f32
    %71 = vector.shape_cast %55 : vector<1x128xf32> to vector<1x128xf32>
    %72 = vector.broadcast %71 : vector<1x128xf32> to vector<16x128xf32>
    %73 = vector.broadcast %cst_16 : f32 to vector<16x128xf32>
    %74 = arith.select %70, %72, %73 : vector<16x128xi1>, vector<16x128xf32>
    %75 = arith.addf %66, %74 : vector<16x128xf32>
    %76 = vector.broadcast %54 : vector<1x128xi32> to vector<16x128xi32>
    %77 = arith.cmpi eq, %58, %76 : vector<16x128xi32>
    %cst_17 = arith.constant 1.000000e+00 : f32
    %78 = vector.broadcast %cst_17 : f32 to vector<1x128xf32>
    %79 = arith.subf %78, %56 : vector<1x128xf32>
    %cst_18 = arith.constant 0.000000e+00 : f32
    %80 = vector.shape_cast %79 : vector<1x128xf32> to vector<1x128xf32>
    %81 = vector.broadcast %80 : vector<1x128xf32> to vector<16x128xf32>
    %82 = vector.broadcast %cst_18 : f32 to vector<16x128xf32>
    %83 = arith.select %77, %81, %82 : vector<16x128xi1>, vector<16x128xf32>
    %c1_i32_19 = arith.constant 1 : i32
    %84 = vector.broadcast %c1_i32_19 : i32 to vector<1x128xi32>
    %85 = arith.addi %54, %84 : vector<1x128xi32>
    %86 = vector.broadcast %85 : vector<1x128xi32> to vector<16x128xi32>
    %87 = arith.cmpi eq, %58, %86 : vector<16x128xi32>
    %cst_20 = arith.constant 0.000000e+00 : f32
    %88 = vector.shape_cast %56 : vector<1x128xf32> to vector<1x128xf32>
    %89 = vector.broadcast %88 : vector<1x128xf32> to vector<16x128xf32>
    %90 = vector.broadcast %cst_20 : f32 to vector<16x128xf32>
    %91 = arith.select %87, %89, %90 : vector<16x128xi1>, vector<16x128xf32>
    %92 = arith.addf %83, %91 : vector<16x128xf32>
    %c0_21 = arith.constant 0 : index
    %c0_22 = arith.constant 0 : index
    %93 = vector.load %arg5[%c0_21, %c0_22] : memref<32x16xf32, #tpu.memory_space<vmem>>, vector<32x16xf32>
    %cst_23 = arith.constant dense<0.000000e+00> : vector<32x128xf32>
    %94 = tpu.matmul %93, %75, %cst_23 {dimension_numbers = #tpu.dot_dimension_numbers<[1], [0], [0], [1], [0, 0, 1, 1], [], []>} : vector<32x16xf32>, vector<16x128xf32>, vector<32x128xf32> -> vector<32x128xf32>
    %95 = vector.shape_cast %94 : vector<32x128xf32> to vector<2x16x128xf32>
    %96 = vector.shape_cast %92 : vector<16x128xf32> to vector<1x16x128xf32>
    %97 = vector.broadcast %96 : vector<1x16x128xf32> to vector<2x16x128xf32>
    %98 = arith.mulf %95, %97 : vector<2x16x128xf32>
    %cst_24 = arith.constant dense<0.000000e+00> : vector<2x128xf32>
    %99 = vector.multi_reduction <add>, %98, %cst_24 [1] : vector<2x16x128xf32> to vector<2x128xf32>
    %c0_25 = arith.constant 0 : index
    %c0_26 = arith.constant 0 : index
    %100 = vector.load %arg6[%c0_25, %c0_26] : memref<2x128xf32, #tpu.memory_space<vmem>>, vector<2x128xf32>
    tpu.vector_store %arg6[%c0_25, %c0_26], %99 {strides = array<i32>} : memref<2x128xf32, #tpu.memory_space<vmem>>, vector<2x128xf32>,
    return
  }
  func.func @transform_0(%arg0: i32) -> (i32, i32) {
    %c0_i32 = arith.constant 0 : i32
    %c0_i32_0 = arith.constant 0 : i32
    return %c0_i32, %arg0 : i32, i32
  }
  func.func @transform_1(%arg0: i32) -> (i32, i32) {
    %c0_i32 = arith.constant 0 : i32
    %c0_i32_0 = arith.constant 0 : i32
    %c0_i32_1 = arith.constant 0 : i32
    return %c0_i32, %c0_i32_0 : i32, i32
  }
  func.func @transform_2(%arg0: i32) -> (i32, i32) {
    %c0_i32 = arith.constant 0 : i32
    %c0_i32_0 = arith.constant 0 : i32
    %c0_i32_1 = arith.constant 0 : i32
    return %c0_i32, %c0_i32_0 : i32, i32
  }
  func.func @transform_3(%arg0: i32) -> (i32, i32) {
    %c0_i32 = arith.constant 0 : i32
    %c0_i32_0 = arith.constant 0 : i32
    %c0_i32_1 = arith.constant 0 : i32
    return %c0_i32, %c0_i32_0 : i32, i32
  }
  func.func @transform_4(%arg0: i32) -> (i32, i32) {
    %c0_i32 = arith.constant 0 : i32
    %c0_i32_0 = arith.constant 0 : i32
    %c0_i32_1 = arith.constant 0 : i32
    return %c0_i32, %c0_i32_0 : i32, i32
  }
  func.func @transform_5(%arg0: i32) -> (i32, i32) {
    %c0_i32 = arith.constant 0 : i32
    %c0_i32_0 = arith.constant 0 : i32
    return %c0_i32, %arg0 : i32, i32
  }
}

module attributes {stable_mosaic.version = 11 : i64} {
  func.func @kernel(%arg0: i32, %arg1: memref<32x18xf32, #tpu.memory_space<vmem>>, %arg2: memref<18x32xf32, #tpu.memory_space<vmem>>, %arg3: memref<1x32xf32, #tpu.memory_space<vmem>>, %arg4: memref<32x32xf32, #tpu.memory_space<vmem>>) attributes {dimension_semantics = [#tpu.dimension_semantics<parallel>], iteration_bounds = array<i64: 2>, scalar_prefetch = 0 : i64, scratch_operands = 0 : i64, tpu.core_type = #tpu.core_type<tc>, window_params = [{transform_indices = @transform_0, window_bounds = array<i64: 32, 18>}, {pipeline_mode = #tpu.pipeline_mode<synchronous>, transform_indices = @transform_1, window_bounds = array<i64: 18, 32>}, {pipeline_mode = #tpu.pipeline_mode<synchronous>, transform_indices = @transform_2, window_bounds = array<i64: 1, 32>}, {transform_indices = @transform_3, window_bounds = array<i64: 32, 32>}]} {
    %c0 = arith.constant 0 : index
    %c0_0 = arith.constant 0 : index
    %0 = vector.load %arg1[%c0, %c0_0] : memref<32x18xf32, #tpu.memory_space<vmem>>, vector<32x18xf32>
    %c0_1 = arith.constant 0 : index
    %c0_2 = arith.constant 0 : index
    %1 = vector.load %arg2[%c0_1, %c0_2] : memref<18x32xf32, #tpu.memory_space<vmem>>, vector<18x32xf32>
    %cst = arith.constant dense<0.000000e+00> : vector<32x32xf32>
    %2 = tpu.matmul %0, %1, %cst {dimension_numbers = #tpu.dot_dimension_numbers<[1], [0], [0], [1], [0, 0, 1, 1], [], []>} : vector<32x18xf32>, vector<18x32xf32>, vector<32x32xf32> -> vector<32x32xf32>
    %c0_3 = arith.constant 0 : index
    %c0_4 = arith.constant 0 : index
    %3 = vector.load %arg3[%c0_3, %c0_4] : memref<1x32xf32, #tpu.memory_space<vmem>>, vector<1x32xf32>
    %4 = vector.broadcast %3 : vector<1x32xf32> to vector<32x32xf32>
    %5 = arith.addf %2, %4 : vector<32x32xf32>
    %cst_5 = arith.constant 0.000000e+00 : f32
    %6 = vector.broadcast %cst_5 : f32 to vector<32x32xf32>
    %7 = arith.maximumf %5, %6 : vector<32x32xf32>
    %c0_6 = arith.constant 0 : index
    %c0_7 = arith.constant 0 : index
    %8 = vector.load %arg4[%c0_6, %c0_7] : memref<32x32xf32, #tpu.memory_space<vmem>>, vector<32x32xf32>
    tpu.vector_store %arg4[%c0_6, %c0_7], %7 {strides = array<i32>} : memref<32x32xf32, #tpu.memory_space<vmem>>, vector<32x32xf32>,
    return
  }
  func.func @transform_0(%arg0: i32) -> (i32, i32) {
    %c0_i32 = arith.constant 0 : i32
    %c0_i32_0 = arith.constant 0 : i32
    return %arg0, %c0_i32 : i32, i32
  }
  func.func @transform_1(%arg0: i32) -> (i32, i32) {
    %c0_i32 = arith.constant 0 : i32
    %c0_i32_0 = arith.constant 0 : i32
    %c0_i32_1 = arith.constant 0 : i32
    return %c0_i32, %c0_i32_0 : i32, i32
  }
  func.func @transform_2(%arg0: i32) -> (i32, i32) {
    %c0_i32 = arith.constant 0 : i32
    %c0_i32_0 = arith.constant 0 : i32
    %c0_i32_1 = arith.constant 0 : i32
    return %c0_i32, %c0_i32_0 : i32, i32
  }
  func.func @transform_3(%arg0: i32) -> (i32, i32) {
    %c0_i32 = arith.constant 0 : i32
    %c0_i32_0 = arith.constant 0 : i32
    return %arg0, %c0_i32 : i32, i32
  }
}

module attributes {stable_mosaic.version = 11 : i64} {
  func.func @kernel(%arg0: i32, %arg1: memref<8x288xf32, #tpu.memory_space<vmem>>, %arg2: memref<288x64xf32, #tpu.memory_space<vmem>>, %arg3: memref<1x64xf32, #tpu.memory_space<vmem>>, %arg4: memref<8x64xf32, #tpu.memory_space<vmem>>) attributes {dimension_semantics = [#tpu.dimension_semantics<parallel>], iteration_bounds = array<i64: 2>, scalar_prefetch = 0 : i64, scratch_operands = 0 : i64, tpu.core_type = #tpu.core_type<tc>, window_params = [{transform_indices = @transform_0, window_bounds = array<i64: 8, 288>}, {pipeline_mode = #tpu.pipeline_mode<synchronous>, transform_indices = @transform_1, window_bounds = array<i64: 288, 64>}, {pipeline_mode = #tpu.pipeline_mode<synchronous>, transform_indices = @transform_2, window_bounds = array<i64: 1, 64>}, {transform_indices = @transform_3, window_bounds = array<i64: 8, 64>}]} {
    %c0 = arith.constant 0 : index
    %c0_0 = arith.constant 0 : index
    %0 = vector.load %arg1[%c0, %c0_0] : memref<8x288xf32, #tpu.memory_space<vmem>>, vector<8x288xf32>
    %c0_1 = arith.constant 0 : index
    %c0_2 = arith.constant 0 : index
    %1 = vector.load %arg2[%c0_1, %c0_2] : memref<288x64xf32, #tpu.memory_space<vmem>>, vector<288x64xf32>
    %cst = arith.constant dense<0.000000e+00> : vector<8x64xf32>
    %2 = tpu.matmul %0, %1, %cst {dimension_numbers = #tpu.dot_dimension_numbers<[1], [0], [0], [1], [0, 0, 1, 1], [], []>} : vector<8x288xf32>, vector<288x64xf32>, vector<8x64xf32> -> vector<8x64xf32>
    %c0_3 = arith.constant 0 : index
    %c0_4 = arith.constant 0 : index
    %3 = vector.load %arg3[%c0_3, %c0_4] : memref<1x64xf32, #tpu.memory_space<vmem>>, vector<1x64xf32>
    %4 = vector.broadcast %3 : vector<1x64xf32> to vector<8x64xf32>
    %5 = arith.addf %2, %4 : vector<8x64xf32>
    %cst_5 = arith.constant 0.000000e+00 : f32
    %6 = vector.broadcast %cst_5 : f32 to vector<8x64xf32>
    %7 = arith.maximumf %5, %6 : vector<8x64xf32>
    %c0_6 = arith.constant 0 : index
    %c0_7 = arith.constant 0 : index
    %8 = vector.load %arg4[%c0_6, %c0_7] : memref<8x64xf32, #tpu.memory_space<vmem>>, vector<8x64xf32>
    tpu.vector_store %arg4[%c0_6, %c0_7], %7 {strides = array<i32>} : memref<8x64xf32, #tpu.memory_space<vmem>>, vector<8x64xf32>,
    return
  }
  func.func @transform_0(%arg0: i32) -> (i32, i32) {
    %c0_i32 = arith.constant 0 : i32
    %c0_i32_0 = arith.constant 0 : i32
    return %arg0, %c0_i32 : i32, i32
  }
  func.func @transform_1(%arg0: i32) -> (i32, i32) {
    %c0_i32 = arith.constant 0 : i32
    %c0_i32_0 = arith.constant 0 : i32
    %c0_i32_1 = arith.constant 0 : i32
    return %c0_i32, %c0_i32_0 : i32, i32
  }
  func.func @transform_2(%arg0: i32) -> (i32, i32) {
    %c0_i32 = arith.constant 0 : i32
    %c0_i32_0 = arith.constant 0 : i32
    %c0_i32_1 = arith.constant 0 : i32
    return %c0_i32, %c0_i32_0 : i32, i32
  }
  func.func @transform_3(%arg0: i32) -> (i32, i32) {
    %c0_i32 = arith.constant 0 : i32
    %c0_i32_0 = arith.constant 0 : i32
    return %arg0, %c0_i32 : i32, i32
  }
}

module attributes {stable_mosaic.version = 11 : i64} {
  func.func @kernel(%arg0: i32, %arg1: memref<8x64xf32, #tpu.memory_space<vmem>>, %arg2: memref<64x128xf32, #tpu.memory_space<vmem>>, %arg3: memref<1x128xf32, #tpu.memory_space<vmem>>, %arg4: memref<8x128xf32, #tpu.memory_space<vmem>>) attributes {dimension_semantics = [#tpu.dimension_semantics<parallel>], iteration_bounds = array<i64: 2>, scalar_prefetch = 0 : i64, scratch_operands = 0 : i64, tpu.core_type = #tpu.core_type<tc>, window_params = [{transform_indices = @transform_0, window_bounds = array<i64: 8, 64>}, {pipeline_mode = #tpu.pipeline_mode<synchronous>, transform_indices = @transform_1, window_bounds = array<i64: 64, 128>}, {pipeline_mode = #tpu.pipeline_mode<synchronous>, transform_indices = @transform_2, window_bounds = array<i64: 1, 128>}, {transform_indices = @transform_3, window_bounds = array<i64: 8, 128>}]} {
    %c0 = arith.constant 0 : index
    %c0_0 = arith.constant 0 : index
    %0 = vector.load %arg1[%c0, %c0_0] : memref<8x64xf32, #tpu.memory_space<vmem>>, vector<8x64xf32>
    %c0_1 = arith.constant 0 : index
    %c0_2 = arith.constant 0 : index
    %1 = vector.load %arg2[%c0_1, %c0_2] : memref<64x128xf32, #tpu.memory_space<vmem>>, vector<64x128xf32>
    %cst = arith.constant dense<0.000000e+00> : vector<8x128xf32>
    %2 = tpu.matmul %0, %1, %cst {dimension_numbers = #tpu.dot_dimension_numbers<[1], [0], [0], [1], [0, 0, 1, 1], [], []>} : vector<8x64xf32>, vector<64x128xf32>, vector<8x128xf32> -> vector<8x128xf32>
    %c0_3 = arith.constant 0 : index
    %c0_4 = arith.constant 0 : index
    %3 = vector.load %arg3[%c0_3, %c0_4] : memref<1x128xf32, #tpu.memory_space<vmem>>, vector<1x128xf32>
    %4 = vector.broadcast %3 : vector<1x128xf32> to vector<8x128xf32>
    %5 = arith.addf %2, %4 : vector<8x128xf32>
    %cst_5 = arith.constant 0.000000e+00 : f32
    %6 = vector.broadcast %cst_5 : f32 to vector<8x128xf32>
    %7 = arith.maximumf %5, %6 : vector<8x128xf32>
    %c0_6 = arith.constant 0 : index
    %c0_7 = arith.constant 0 : index
    %8 = vector.load %arg4[%c0_6, %c0_7] : memref<8x128xf32, #tpu.memory_space<vmem>>, vector<8x128xf32>
    tpu.vector_store %arg4[%c0_6, %c0_7], %7 {strides = array<i32>} : memref<8x128xf32, #tpu.memory_space<vmem>>, vector<8x128xf32>,
    return
  }
  func.func @transform_0(%arg0: i32) -> (i32, i32) {
    %c0_i32 = arith.constant 0 : i32
    %c0_i32_0 = arith.constant 0 : i32
    return %arg0, %c0_i32 : i32, i32
  }
  func.func @transform_1(%arg0: i32) -> (i32, i32) {
    %c0_i32 = arith.constant 0 : i32
    %c0_i32_0 = arith.constant 0 : i32
    %c0_i32_1 = arith.constant 0 : i32
    return %c0_i32, %c0_i32_0 : i32, i32
  }
  func.func @transform_2(%arg0: i32) -> (i32, i32) {
    %c0_i32 = arith.constant 0 : i32
    %c0_i32_0 = arith.constant 0 : i32
    %c0_i32_1 = arith.constant 0 : i32
    return %c0_i32, %c0_i32_0 : i32, i32
  }
  func.func @transform_3(%arg0: i32) -> (i32, i32) {
    %c0_i32 = arith.constant 0 : i32
    %c0_i32_0 = arith.constant 0 : i32
    return %arg0, %c0_i32 : i32, i32
  }
}

module attributes {stable_mosaic.version = 11 : i64} {
  func.func @kernel(%arg0: i32, %arg1: memref<32x32xf32, #tpu.memory_space<vmem>>, %arg2: memref<32x8xf32, #tpu.memory_space<vmem>>, %arg3: memref<1x8xf32, #tpu.memory_space<vmem>>, %arg4: memref<32x8xf32, #tpu.memory_space<vmem>>) attributes {dimension_semantics = [#tpu.dimension_semantics<parallel>], iteration_bounds = array<i64: 2>, scalar_prefetch = 0 : i64, scratch_operands = 0 : i64, tpu.core_type = #tpu.core_type<tc>, window_params = [{transform_indices = @transform_0, window_bounds = array<i64: 32, 32>}, {pipeline_mode = #tpu.pipeline_mode<synchronous>, transform_indices = @transform_1, window_bounds = array<i64: 32, 8>}, {pipeline_mode = #tpu.pipeline_mode<synchronous>, transform_indices = @transform_2, window_bounds = array<i64: 1, 8>}, {transform_indices = @transform_3, window_bounds = array<i64: 32, 8>}]} {
    %c0 = arith.constant 0 : index
    %c0_0 = arith.constant 0 : index
    %0 = vector.load %arg1[%c0, %c0_0] : memref<32x32xf32, #tpu.memory_space<vmem>>, vector<32x32xf32>
    %c0_1 = arith.constant 0 : index
    %c0_2 = arith.constant 0 : index
    %1 = vector.load %arg2[%c0_1, %c0_2] : memref<32x8xf32, #tpu.memory_space<vmem>>, vector<32x8xf32>
    %cst = arith.constant dense<0.000000e+00> : vector<32x8xf32>
    %2 = tpu.matmul %0, %1, %cst {dimension_numbers = #tpu.dot_dimension_numbers<[1], [0], [0], [1], [0, 0, 1, 1], [], []>} : vector<32x32xf32>, vector<32x8xf32>, vector<32x8xf32> -> vector<32x8xf32>
    %c0_3 = arith.constant 0 : index
    %c0_4 = arith.constant 0 : index
    %3 = vector.load %arg3[%c0_3, %c0_4] : memref<1x8xf32, #tpu.memory_space<vmem>>, vector<1x8xf32>
    %4 = vector.broadcast %3 : vector<1x8xf32> to vector<32x8xf32>
    %5 = arith.addf %2, %4 : vector<32x8xf32>
    %cst_5 = arith.constant 0.000000e+00 : f32
    %6 = vector.broadcast %cst_5 : f32 to vector<32x8xf32>
    %7 = arith.cmpf oge, %5, %6 : vector<32x8xf32>
    %cst_6 = arith.constant 1.000000e-01 : f32
    %8 = vector.broadcast %cst_6 : f32 to vector<32x8xf32>
    %9 = arith.mulf %8, %5 : vector<32x8xf32>
    %10 = arith.select %7, %5, %9 : vector<32x8xi1>, vector<32x8xf32>
    %c0_7 = arith.constant 0 : index
    %c0_8 = arith.constant 0 : index
    %11 = vector.load %arg4[%c0_7, %c0_8] : memref<32x8xf32, #tpu.memory_space<vmem>>, vector<32x8xf32>
    tpu.vector_store %arg4[%c0_7, %c0_8], %10 {strides = array<i32>} : memref<32x8xf32, #tpu.memory_space<vmem>>, vector<32x8xf32>,
    return
  }
  func.func @transform_0(%arg0: i32) -> (i32, i32) {
    %c0_i32 = arith.constant 0 : i32
    %c0_i32_0 = arith.constant 0 : i32
    return %arg0, %c0_i32 : i32, i32
  }
  func.func @transform_1(%arg0: i32) -> (i32, i32) {
    %c0_i32 = arith.constant 0 : i32
    %c0_i32_0 = arith.constant 0 : i32
    %c0_i32_1 = arith.constant 0 : i32
    return %c0_i32, %c0_i32_0 : i32, i32
  }
  func.func @transform_2(%arg0: i32) -> (i32, i32) {
    %c0_i32 = arith.constant 0 : i32
    %c0_i32_0 = arith.constant 0 : i32
    %c0_i32_1 = arith.constant 0 : i32
    return %c0_i32, %c0_i32_0 : i32, i32
  }
  func.func @transform_3(%arg0: i32) -> (i32, i32) {
    %c0_i32 = arith.constant 0 : i32
    %c0_i32_0 = arith.constant 0 : i32
    return %arg0, %c0_i32 : i32, i32
  }
}

module attributes {stable_mosaic.version = 11 : i64} {
  func.func @_grid_sample_kernel(%arg0: i32, %arg1: memref<2x128xf32, #tpu.memory_space<vmem>>, %arg2: memref<128x16xf32, #tpu.memory_space<vmem>>, %arg3: memref<8x128xf32, #tpu.memory_space<vmem>>) attributes {dimension_semantics = [#tpu.dimension_semantics<parallel>], iteration_bounds = array<i64: 2>, scalar_prefetch = 0 : i64, scratch_operands = 0 : i64, tpu.core_type = #tpu.core_type<tc>, window_params = [{transform_indices = @transform_0, window_bounds = array<i64: 2, 128>}, {pipeline_mode = #tpu.pipeline_mode<synchronous>, transform_indices = @transform_1, window_bounds = array<i64: 128, 16>}, {transform_indices = @transform_2, window_bounds = array<i64: 8, 128>}]} {
    %c0 = arith.constant 0 : index
    %c0_0 = arith.constant 0 : index
    %0 = vector.load %arg1[%c0, %c0_0] : memref<2x128xf32, #tpu.memory_space<vmem>>, vector<2x128xf32>
    %1 = vector.extract_strided_slice %0 {offsets = [0, 0], sizes = [1, 128], strides = [1, 1]} : vector<2x128xf32> to vector<1x128xf32>
    %2 = vector.extract_strided_slice %0 {offsets = [1, 0], sizes = [1, 128], strides = [1, 1]} : vector<2x128xf32> to vector<1x128xf32>
    %cst = arith.constant 1.000000e+00 : f32
    %3 = vector.broadcast %cst : f32 to vector<1x128xf32>
    %4 = arith.addf %1, %3 : vector<1x128xf32>
    %cst_1 = arith.constant 7.500000e+00 : f32
    %5 = vector.broadcast %cst_1 : f32 to vector<1x128xf32>
    %6 = arith.mulf %4, %5 : vector<1x128xf32>
    %cst_2 = arith.constant 1.000000e+00 : f32
    %7 = vector.broadcast %cst_2 : f32 to vector<1x128xf32>
    %8 = arith.addf %2, %7 : vector<1x128xf32>
    %cst_3 = arith.constant 7.500000e+00 : f32
    %9 = vector.broadcast %cst_3 : f32 to vector<1x128xf32>
    %10 = arith.mulf %8, %9 : vector<1x128xf32>
    %11 = math.floor %6 : vector<1x128xf32>
    %12 = math.floor %10 : vector<1x128xf32>
    %13 = arith.fptosi %11 : vector<1x128xf32> to vector<1x128xi32>
    %14 = arith.fptosi %12 : vector<1x128xf32> to vector<1x128xi32>
    %15 = arith.subf %6, %11 : vector<1x128xf32>
    %16 = arith.subf %10, %12 : vector<1x128xf32>
    %17 = tpu.iota {dimensions = array<i32: 0>} : vector<16x128xi32>
    %18 = tpu.iota {dimensions = array<i32: 0>} : vector<16x128xi32>
    %19 = vector.broadcast %13 : vector<1x128xi32> to vector<16x128xi32>
    %20 = arith.cmpi eq, %17, %19 : vector<16x128xi32>
    %cst_4 = arith.constant 1.000000e+00 : f32
    %21 = vector.broadcast %cst_4 : f32 to vector<1x128xf32>
    %22 = arith.subf %21, %15 : vector<1x128xf32>
    %cst_5 = arith.constant 0.000000e+00 : f32
    %23 = vector.shape_cast %22 : vector<1x128xf32> to vector<1x128xf32>
    %24 = vector.broadcast %23 : vector<1x128xf32> to vector<16x128xf32>
    %25 = vector.broadcast %cst_5 : f32 to vector<16x128xf32>
    %26 = arith.select %20, %24, %25 : vector<16x128xi1>, vector<16x128xf32>
    %c1_i32 = arith.constant 1 : i32
    %27 = vector.broadcast %c1_i32 : i32 to vector<1x128xi32>
    %28 = arith.addi %13, %27 : vector<1x128xi32>
    %29 = vector.broadcast %28 : vector<1x128xi32> to vector<16x128xi32>
    %30 = arith.cmpi eq, %17, %29 : vector<16x128xi32>
    %cst_6 = arith.constant 0.000000e+00 : f32
    %31 = vector.shape_cast %15 : vector<1x128xf32> to vector<1x128xf32>
    %32 = vector.broadcast %31 : vector<1x128xf32> to vector<16x128xf32>
    %33 = vector.broadcast %cst_6 : f32 to vector<16x128xf32>
    %34 = arith.select %30, %32, %33 : vector<16x128xi1>, vector<16x128xf32>
    %35 = arith.addf %26, %34 : vector<16x128xf32>
    %36 = vector.broadcast %14 : vector<1x128xi32> to vector<16x128xi32>
    %37 = arith.cmpi eq, %18, %36 : vector<16x128xi32>
    %cst_7 = arith.constant 1.000000e+00 : f32
    %38 = vector.broadcast %cst_7 : f32 to vector<1x128xf32>
    %39 = arith.subf %38, %16 : vector<1x128xf32>
    %cst_8 = arith.constant 0.000000e+00 : f32
    %40 = vector.shape_cast %39 : vector<1x128xf32> to vector<1x128xf32>
    %41 = vector.broadcast %40 : vector<1x128xf32> to vector<16x128xf32>
    %42 = vector.broadcast %cst_8 : f32 to vector<16x128xf32>
    %43 = arith.select %37, %41, %42 : vector<16x128xi1>, vector<16x128xf32>
    %c1_i32_9 = arith.constant 1 : i32
    %44 = vector.broadcast %c1_i32_9 : i32 to vector<1x128xi32>
    %45 = arith.addi %14, %44 : vector<1x128xi32>
    %46 = vector.broadcast %45 : vector<1x128xi32> to vector<16x128xi32>
    %47 = arith.cmpi eq, %18, %46 : vector<16x128xi32>
    %cst_10 = arith.constant 0.000000e+00 : f32
    %48 = vector.shape_cast %16 : vector<1x128xf32> to vector<1x128xf32>
    %49 = vector.broadcast %48 : vector<1x128xf32> to vector<16x128xf32>
    %50 = vector.broadcast %cst_10 : f32 to vector<16x128xf32>
    %51 = arith.select %47, %49, %50 : vector<16x128xi1>, vector<16x128xf32>
    %52 = arith.addf %43, %51 : vector<16x128xf32>
    %c0_11 = arith.constant 0 : index
    %c0_12 = arith.constant 0 : index
    %53 = vector.load %arg2[%c0_11, %c0_12] : memref<128x16xf32, #tpu.memory_space<vmem>>, vector<128x16xf32>
    %cst_13 = arith.constant dense<0.000000e+00> : vector<128x128xf32>
    %54 = tpu.matmul %53, %35, %cst_13 {dimension_numbers = #tpu.dot_dimension_numbers<[1], [0], [0], [1], [0, 0, 1, 1], [], []>} : vector<128x16xf32>, vector<16x128xf32>, vector<128x128xf32> -> vector<128x128xf32>
    %55 = vector.shape_cast %54 : vector<128x128xf32> to vector<8x16x128xf32>
    %56 = vector.shape_cast %52 : vector<16x128xf32> to vector<1x16x128xf32>
    %57 = vector.broadcast %56 : vector<1x16x128xf32> to vector<8x16x128xf32>
    %58 = arith.mulf %55, %57 : vector<8x16x128xf32>
    %cst_14 = arith.constant dense<0.000000e+00> : vector<8x128xf32>
    %59 = vector.multi_reduction <add>, %58, %cst_14 [1] : vector<8x16x128xf32> to vector<8x128xf32>
    %c0_15 = arith.constant 0 : index
    %c0_16 = arith.constant 0 : index
    %60 = vector.load %arg3[%c0_15, %c0_16] : memref<8x128xf32, #tpu.memory_space<vmem>>, vector<8x128xf32>
    tpu.vector_store %arg3[%c0_15, %c0_16], %59 {strides = array<i32>} : memref<8x128xf32, #tpu.memory_space<vmem>>, vector<8x128xf32>,
    return
  }
  func.func @transform_0(%arg0: i32) -> (i32, i32) {
    %c0_i32 = arith.constant 0 : i32
    %c0_i32_0 = arith.constant 0 : i32
    return %c0_i32, %arg0 : i32, i32
  }
  func.func @transform_1(%arg0: i32) -> (i32, i32) {
    %c0_i32 = arith.constant 0 : i32
    %c0_i32_0 = arith.constant 0 : i32
    %c0_i32_1 = arith.constant 0 : i32
    return %c0_i32, %c0_i32_0 : i32, i32
  }
  func.func @transform_2(%arg0: i32) -> (i32, i32) {
    %c0_i32 = arith.constant 0 : i32
    %c0_i32_0 = arith.constant 0 : i32
    return %c0_i32, %arg0 : i32, i32
  }
}

</mosaic_0001>

<llo_original>
// kernel: a_call__.7
$region0: #{a_call__.7}
  #allocation0 [shape = 'u32[]', space=smem, size = 0x4, offset = 0x4, fixed_abs, tag = 'smem constant byte address 0x4 - core index']
  #allocation1 [shape = 'u32[144,128]{1,0:T(1,128)}', space=vmem, size = 0x12000, scoped, tag = 'internal scratch']
  %s0 = inlined_call_operand.vmem [shape: f32[64,18], index: 0, kind: input, shape index: {}]
  %s1 = inlined_call_operand.vmem [shape: f32[18,32], index: 1, kind: input, shape index: {}]
  %s2 = inlined_call_operand.vmem [shape: f32[1,32], index: 2, kind: input, shape index: {}]
  %s3 = inlined_call_operand.vmem [shape: f32[64,32], index: 3, kind: output, shape index: {}]
  %s4 = sld [smem:[#allocation0]]
  $region45: #{a_call__.7} parent=0
    _
  %s6 = ssub.s32 1, %s4
  %s7 = scalar_select 0, %s6, %s4
  loop: start=0, step=1, limit=4
  $region2: #{a_call__.7} parent=0 // loop_pre_header
    _
  $region3: #{a_call__.7} parent=0 // loop_header
    %s9 = sphi 0, %s13
    %p10 = scmp.ge.s32.totalorder %s9, 4
    %s19 = sphi 0, %s21
    %s22 = sphi 0, %s19
    %s23 = sphi 0, %s22
    %s39 = sphi 0, %s23
    %s43 = sphi 0, %s43
    %s45 = sphi 0, %s43
    %s46 = sphi 0, %s45
    %s60 = sphi 0, %s46
    %s64 = sphi 0, %s64
    %s66 = sphi 0, %s64
    %s67 = sphi 0, %s66
    %s81 = sphi 0, %s67
    %s87 = sphi 0, %s89
    %s90 = sphi 0, %s87
    %s91 = sphi 0, %s90
    %s107 = sphi 0, %s91
  $region4: #{a_call__.7} parent=0 // loop_header_branch
    %12 = sbr.rel (%p10) target = $region8
  $region5: #{a_call__.7} parent=0 // loop_body
    %s14 = ssub.s32 %s9, 1
    %s15 = ssub.s32 %s9, 2
    %s16 = sadd.s32 %s9, 1
    %s17 = ssub.s32 %s9, %s16
    %p18 = scmp.eq.s32.totalorder %s17, 0
    %s20 = sadd.s32 %s19, 1
    %s21 = scalar_select %p18, %s19, %s20
    %p24 = pneg %p18
    %p25 = scmp.eq.s32.totalorder %s9, 1
    %p26 = por %p24, %p25
    %p27 = scmp.ne.s32.totalorder %s19, %s22
    %p28 = scmp.eq.s32.totalorder %s9, 0
    %p29 = por %p27, %p28
    %p30 = scmp.ne.s32.totalorder %s19, %s22
    %p31 = scmp.eq.s32.totalorder %s14, 1
    %p32 = por %p30, %p31
    %p33 = scmp.ne.s32.totalorder %s22, %s23
    %p34 = scmp.eq.s32.totalorder %s14, 0
    %p35 = por %p33, %p34
    %p36 = scmp.ne.s32.totalorder %s22, %s23
    %p37 = scmp.eq.s32.totalorder %s15, 1
    %p38 = por %p36, %p37
    %p40 = scmp.ne.s32.totalorder %s23, %s39
    %p41 = scmp.eq.s32.totalorder %s15, 0
    %p42 = por %p40, %p41
    %s44 = sadd.s32 %s43, 1
    %p47 = scmp.eq.s32.totalorder %s9, 1
    %p48 = scmp.ne.s32.totalorder %s43, %s45
    %p49 = scmp.eq.s32.totalorder %s9, 0
    %p50 = por %p48, %p49
    %p51 = scmp.ne.s32.totalorder %s43, %s45
    %p52 = scmp.eq.s32.totalorder %s14, 1
    %p53 = por %p51, %p52
    %p54 = scmp.ne.s32.totalorder %s45, %s46
    %p55 = scmp.eq.s32.totalorder %s14, 0
    %p56 = por %p54, %p55
    %p57 = scmp.ne.s32.totalorder %s45, %s46
    %p58 = scmp.eq.s32.totalorder %s15, 1
    %p59 = por %p57, %p58
    %p61 = scmp.ne.s32.totalorder %s46, %s60
    %p62 = scmp.eq.s32.totalorder %s15, 0
    %p63 = por %p61, %p62
    %s65 = sadd.s32 %s64, 1
    %p68 = scmp.eq.s32.totalorder %s9, 1
    %p69 = scmp.ne.s32.totalorder %s64, %s66
    %p70 = scmp.eq.s32.totalorder %s9, 0
    %p71 = por %p69, %p70
    %p72 = scmp.ne.s32.totalorder %s64, %s66
    %p73 = scmp.eq.s32.totalorder %s14, 1
    %p74 = por %p72, %p73
    %p75 = scmp.ne.s32.totalorder %s66, %s67
    %p76 = scmp.eq.s32.totalorder %s14, 0
    %p77 = por %p75, %p76
    %p78 = scmp.ne.s32.totalorder %s66, %s67
    %p79 = scmp.eq.s32.totalorder %s15, 1
    %p80 = por %p78, %p79
    %p82 = scmp.ne.s32.totalorder %s67, %s81
    %p83 = scmp.eq.s32.totalorder %s15, 0
    %p84 = por %p82, %p83
    %s85 = ssub.s32 %s9, %s16
    %p86 = scmp.eq.s32.totalorder %s85, 0
    %s88 = sadd.s32 %s87, 1
    %s89 = scalar_select %p86, %s87, %s88
    %p92 = pneg %p86
    %p93 = scmp.eq.s32.totalorder %s9, 1
    %p94 = por %p92, %p93
    %p95 = scmp.ne.s32.totalorder %s87, %s90
    %p96 = scmp.eq.s32.totalorder %s9, 0
    %p97 = por %p95, %p96
    %p98 = scmp.ne.s32.totalorder %s87, %s90
    %p99 = scmp.eq.s32.totalorder %s14, 1
    %p100 = por %p98, %p99
    %p101 = scmp.ne.s32.totalorder %s90, %s91
    %p102 = scmp.eq.s32.totalorder %s14, 0
    %p103 = por %p101, %p102
    %p104 = scmp.ne.s32.totalorder %s90, %s91
    %p105 = scmp.eq.s32.totalorder %s15, 1
    %p106 = por %p104, %p105
    %p108 = scmp.ne.s32.totalorder %s91, %s107
    %p109 = scmp.eq.s32.totalorder %s15, 0
    %p110 = por %p108, %p109
    %p111 = scmp.le.s32.totalorder 1, %s9
    %p112 = scmp.lt.s32.totalorder %s9, 3
    %p113 = pnand %p111, %p112
    %p114 = pneg %p113
    // Predicated region
    $region9: #{a_call__.7} parent=5 // pred_check
      _
    $region10: #{a_call__.7} parent=5 // pred_check_branch
      %116 = sbr.rel (%p113) target = $region12
    $region11: #{a_call__.7} parent=5 // pred_region
      %s117 = ssub.s32 %s9, 1
      // Predicated region
      $region13: #{a_call__.7} parent=11 // pred_check
        %p118 = pneg %p56
      $region14: #{a_call__.7} parent=11 // pred_check_branch
        %120 = sbr.rel (%p118) target = $region16
      $region15: #{a_call__.7} parent=11 // pred_region
        _
      $region16: #{a_call__.7} parent=11 // pred_fallthru
        _
      // Predicated region
      $region17: #{a_call__.7} parent=11 // pred_check
        %p121 = pneg %p77
      $region18: #{a_call__.7} parent=11 // pred_check_branch
        %123 = sbr.rel (%p121) target = $region20
      $region19: #{a_call__.7} parent=11 // pred_region
        _
      $region20: #{a_call__.7} parent=11 // pred_fallthru
        _
    $region12: #{a_call__.7} parent=5 // pred_fallthru
      _
    %p124 = scmp.lt.s32.totalorder %s9, 2
    // Predicated region
    $region21: #{a_call__.7} parent=5 // pred_check
      %p125 = pneg %p124
    $region22: #{a_call__.7} parent=5 // pred_check_branch
      %127 = sbr.rel (%p125) target = $region24
    $region23: #{a_call__.7} parent=5 // pred_region
      // Predicated region
      $region25: #{a_call__.7} parent=23 // pred_check
        %p128 = pneg %p29
      $region26: #{a_call__.7} parent=23 // pred_check_branch
        %130 = sbr.rel (%p128) target = $region28
      $region27: #{a_call__.7} parent=23 // pred_region
        %s131 = smul.u32 4, %s9
        %p132 = scmp.lt.s32.totalorder %s131, 7
        %s133 = scalar_select %p132, %s131, 7
        %s134 = smul.addr %s133, 8
        %s135 = scalar_lea.vmem %s0, %s134
        %s136 = smul.u32 4, %s9
      $region28: #{a_call__.7} parent=23 // pred_fallthru
        _
    $region24: #{a_call__.7} parent=5 // pred_fallthru
      _
    %p137 = scmp.le.s32.totalorder 1, %s9
    %p138 = scmp.lt.s32.totalorder %s9, 3
    %p139 = pnand %p137, %p138
    %p140 = pneg %p139
    // Predicated region
    $region29: #{a_call__.7} parent=5 // pred_check
      _
    $region30: #{a_call__.7} parent=5 // pred_check_branch
      %142 = sbr.rel (%p139) target = $region32
    $region31: #{a_call__.7} parent=5 // pred_region
      %s143 = ssub.s32 %s9, 1
      %s144 = smul.u32 4, %s14
      %p145 = scmp.lt.s32.totalorder %s144, 7
      %s146 = scalar_select %p145, %s144, 7
      %s147 = smul.addr %s146, 8
      %s148 = scalar_lea.vmem %s0, %s147
      %p149 = pneg %p35
      %p150 = pneg %p32
      %p151 = pneg %p56
      %p152 = pneg %p53
      %p153 = pneg %p77
      %p154 = pneg %p74
      %p155 = pneg %p103
      %p156 = pneg %p100
      %s157 = smul.u32 4, %s14
      %p158 = scmp.lt.s32.totalorder %s157, 7
      %s159 = scalar_select %p158, %s157, 7
      %s160 = smul.addr %s159, 8
      %s161 = scalar_lea.vmem %s3, %s160
      %s162 = smul.u32 4, %s14
      %p163 = scmp.lt.s32.totalorder %s162, 7
      %s164 = scalar_select %p163, %s162, 7
      %s165 = smul.addr %s164, 8
      %s166 = scalar_lea.vmem %s0, %s165
      %s167 = smul.u32 4, %s14
      %s168 = smul.u32 4, %s14
      %p169 = scmp.lt.s32.totalorder %s168, 7
      %s170 = scalar_select %p169, %s168, 7
      %s171 = smul.addr %s170, 8
      %s172 = scalar_lea.vmem %s3, %s171
      %s173 = smul.u32 4, %s14
      %v174 = vld [vmem:[%s166] sm:$0xff]
      %v175 = vld [vmem:[%s166 + $0x8] sm:$0xff]
      %v176 = vld [vmem:[%s166 + $0x10] sm:$0xff]
      %v177 = vld [vmem:[%s166 + $0x18] sm:$0xff]
      %v178 = vld [vmem:[%s1] sm:$0xff]
      %v179 = vld [vmem:[%s1 + $0x8] sm:$0xff]
      %v180 = vld [vmem:[%s1 + $0x10] sm:$0x3]
      %v181 = vld [vmem:[%s2] sm:$0x1]
      %v183 = vlaneseq
      %v184 = vshrl.u32 %v183, 7
      %v185 = vsub.s32 0, %v184
      %v186 = vrot.slane %v181, %v185
      %vm188 = vcmask 146432
      %v190 = vsel %vm188, %v174, 0
      %v193 = vsel %vm188, %v175, 0
      %v196 = vsel %vm188, %v176, 0
      %v199 = vsel %vm188, %v177, 0
      %vm201 = vcmask 1041408
      %v203 = vsel %vm201, %v180, 0
      %205 = vmatprep.subr.mxu0 0.0
      %206 = vmatpush1.msra.mxu0 %v178
      %207 = vmatprep.subr.mxu0 0.0
      %208 = vmatpush1.msra.mxu0 %v179
      %209 = vmatprep.subr.mxu0 0.0
      %210 = vmatpush1.msra.mxu0 %v203
      %211 = vmatprep.subr.mxu0 0.0
      %212 = vmatpush1.msra.mxu0 0.0
      %213 = vmatprep.subr.mxu0 0.0
      %214 = vmatpush1.msra.mxu0 0.0
      %215 = vmatprep.subr.mxu0 0.0
      %216 = vmatpush1.msra.mxu0 0.0
      %217 = vmatprep.subr.mxu0 0.0
      %218 = vmatpush1.msra.mxu0 0.0
      %219 = vmatprep.subr.mxu0 0.0
      %220 = vmatpush1.msra.mxu0 0.0
      %221 = vmatprep.subr.mxu0 0.0
      %222 = vmatpush1.msra.mxu0 0.0
      %223 = vmatprep.subr.mxu0 0.0
      %224 = vmatpush1.msra.mxu0 0.0
      %225 = vmatprep.subr.mxu0 0.0
      %226 = vmatpush1.msra.mxu0 0.0
      %227 = vmatprep.subr.mxu0 0.0
      %228 = vmatpush1.msra.mxu0 0.0
      %229 = vmatprep.subr.mxu0 0.0
      %230 = vmatpush1.msra.mxu0 0.0
      %231 = vmatprep.subr.mxu0 0.0
      %232 = vmatpush1.msra.mxu0 0.0
      %233 = vmatprep.subr.mxu0 0.0
      %234 = vmatpush1.msra.mxu0 0.0
      %235 = vmatprep.subr.mxu0 0.0
      %236 = vmatpush1.msra.mxu0 0.0
      %237 = vmatprep.subr.mxu0 0.0
      %238 = vmatpush1.msra.mxu0 0.0
      %239 = vmatprep.subr.mxu0 0.0
      %240 = vmatpush1.msra.mxu0 0.0
      %241 = vmatprep.subr.mxu0 0.0
      %242 = vmatpush1.msra.mxu0 0.0
      %243 = vmatprep.subr.mxu0 0.0
      %244 = vmatpush1.msra.mxu0 0.0
      %245 = vmatprep.subr.mxu0 0.0
      %246 = vmatpush1.msra.mxu0 0.0
      %247 = vmatprep.subr.mxu0 0.0
      %248 = vmatpush1.msra.mxu0 0.0
      %249 = vmatprep.subr.mxu0 0.0
      %250 = vmatpush1.msra.mxu0 0.0
      %251 = vmatprep.subr.mxu0 0.0
      %252 = vmatpush1.msra.mxu0 0.0
      %253 = vmatprep.subr.mxu0 0.0
      %254 = vmatpush1.msra.mxu0 0.0
      %255 = vmatprep.subr.mxu0 0.0
      %256 = vmatpush1.msra.mxu0 0.0
      %257 = vmatprep.subr.mxu0 0.0
      %258 = vmatpush1.msra.mxu0 0.0
      %259 = vmatprep.subr.mxu0 0.0
      %260 = vmatpush1.msra.mxu0 0.0
      %261 = vmatprep.subr.mxu0 0.0
      %262 = vmatpush1.msra.mxu0 0.0
      %263 = vmatprep.subr.mxu0 0.0
      %264 = vmatpush1.msra.mxu0 0.0
      %265 = vmatprep.subr.mxu0 0.0
      %266 = vmatpush1.msra.mxu0 0.0
      %267 = vmatprep.subr.mxu0 0.0
      %268 = vmatpush1.msra.mxu0 0.0
      %269 = vmatprep.mubr.f32.mxu0 0.0
      %270 = vmatmul.mubr.f32.gmra.mrb[0].mxu0 %v190
      %v271 = vpop.f32.mrb[0].mxu0
      %v272 = vadd.f32 %v186, %v271
      %v273 = vpop.f32.mrb[0].mxu0
      %274 = vmatprep.mubr.f32.mxu0 0.0
      %275 = vmatmul.mubr.f32.gmra.mrb[0].mxu0 %v193
      %v276 = vpop.f32.mrb[0].mxu0
      %v277 = vadd.f32 %v186, %v276
      %v278 = vpop.f32.mrb[0].mxu0
      %279 = vmatprep.mubr.f32.mxu0 0.0
      %280 = vmatmul.mubr.f32.gmra.mrb[0].mxu0 %v196
      %v281 = vpop.f32.mrb[0].mxu0
      %v282 = vadd.f32 %v186, %v281
      %v283 = vpop.f32.mrb[0].mxu0
      %284 = vmatprep.mubr.f32.mxu0 0.0
      %285 = vmatmul.mubr.f32.gmra.mrb[0].mxu0 %v199
      %v286 = vpop.f32.mrb[0].mxu0
      %v287 = vadd.f32 %v186, %v286
      %v288 = vpop.f32.mrb[0].mxu0
      %289 = vdwg.mxu0
      %v290 = vmax.f32 %v272, 0.0
      %v291 = vmax.f32 %v277, 0.0
      %v292 = vmax.f32 %v282, 0.0
      %v293 = vmax.f32 %v287, 0.0
      %vm294 = vcmask 261120
      %295 = vst.msk [vmem:[%s172] sm:$0xff] %vm294, %v290
      %296 = vst.msk [vmem:[%s172 + $0x8] sm:$0xff] %vm294, %v291
      %297 = vst.msk [vmem:[%s172 + $0x10] sm:$0xff] %vm294, %v292
      %298 = vst.msk [vmem:[%s172 + $0x18] sm:$0xff] %vm294, %v293
      %s299 = smul.u32 4, %s14
      %p300 = scmp.lt.s32.totalorder %s299, 7
      %s301 = scalar_select %p300, %s299, 7
      %s302 = smul.addr %s301, 8
      %s303 = scalar_lea.vmem %s3, %s302
      // Predicated region
      $region33: #{a_call__.7} parent=31 // pred_check
        %p304 = pneg %p100
      $region34: #{a_call__.7} parent=31 // pred_check_branch
        %306 = sbr.rel (%p304) target = $region36
      $region35: #{a_call__.7} parent=31 // pred_region
        %s307 = smul.u32 4, %s14
      $region36: #{a_call__.7} parent=31 // pred_fallthru
        _
    $region32: #{a_call__.7} parent=5 // pred_fallthru
      _
    %p308 = scmp.le.s32.totalorder 2, %s9
    // Predicated region
    $region37: #{a_call__.7} parent=5 // pred_check
      %p309 = pneg %p308
    $region38: #{a_call__.7} parent=5 // pred_check_branch
      %311 = sbr.rel (%p309) target = $region40
    $region39: #{a_call__.7} parent=5 // pred_region
      %s312 = ssub.s32 %s9, 2
      // Predicated region
      $region41: #{a_call__.7} parent=39 // pred_check
        %p313 = pneg %p106
      $region42: #{a_call__.7} parent=39 // pred_check_branch
        %315 = sbr.rel (%p313) target = $region44
      $region43: #{a_call__.7} parent=39 // pred_region
        %s316 = smul.u32 4, %s15
        %p317 = scmp.lt.s32.totalorder %s316, 7
        %s318 = scalar_select %p317, %s316, 7
        %s319 = smul.addr %s318, 8
        %s320 = scalar_lea.vmem %s3, %s319
      $region44: #{a_call__.7} parent=39 // pred_fallthru
        _
    $region40: #{a_call__.7} parent=5 // pred_fallthru
      _
  $region6: #{a_call__.7} parent=0 // loop_footer
    %s13 = sadd.s32 1, %s9
  $region7: #{a_call__.7} parent=0 // loop_footer_branch
    %8 = sbr.rel target = $region3
  $region8: #{a_call__.7} parent=0 // loop_exit
    _

// kernel: a_call__.6
$region0: #{a_call__.6}
  #allocation0 [shape = 'u32[]', space=smem, size = 0x4, offset = 0x4, fixed_abs, tag = 'smem constant byte address 0x4 - core index']
  #allocation1 [shape = 'u32[144,128]{1,0:T(1,128)}', space=vmem, size = 0x12000, scoped, tag = 'internal scratch']
  %s0 = inlined_call_operand.vmem [shape: f32[2,256], index: 0, kind: input, shape index: {}]
  %s1 = inlined_call_operand.vmem [shape: f32[36,2], index: 1, kind: input, shape index: {}]
  %s2 = inlined_call_operand.vmem [shape: f32[2,36], index: 2, kind: input, shape index: {}]
  %s3 = inlined_call_operand.vmem [shape: f32[2,3], index: 3, kind: input, shape index: {}]
  %s4 = inlined_call_operand.vmem [shape: f32[32,16], index: 4, kind: input, shape index: {}]
  %s5 = inlined_call_operand.vmem [shape: f32[2,256], index: 5, kind: output, shape index: {}]
  %s6 = sld [smem:[#allocation0]]
  $region53: #{a_call__.6} parent=0
    _
  %s8 = ssub.s32 1, %s6
  %s9 = scalar_select 0, %s8, %s6
  loop: start=0, step=1, limit=4
  $region2: #{a_call__.6} parent=0 // loop_pre_header
    _
  $region3: #{a_call__.6} parent=0 // loop_header
    %s11 = sphi 0, %s15
    %p12 = scmp.ge.s32.totalorder %s11, 4
    %s21 = sphi 0, %s23
    %s24 = sphi 0, %s21
    %s25 = sphi 0, %s24
    %s41 = sphi 0, %s25
    %s45 = sphi 0, %s45
    %s47 = sphi 0, %s45
    %s48 = sphi 0, %s47
    %s62 = sphi 0, %s48
    %s66 = sphi 0, %s66
    %s68 = sphi 0, %s66
    %s69 = sphi 0, %s68
    %s83 = sphi 0, %s69
    %s87 = sphi 0, %s87
    %s89 = sphi 0, %s87
    %s90 = sphi 0, %s89
    %s104 = sphi 0, %s90
    %s108 = sphi 0, %s108
    %s110 = sphi 0, %s108
    %s111 = sphi 0, %s110
    %s125 = sphi 0, %s111
    %s131 = sphi 0, %s133
    %s134 = sphi 0, %s131
    %s135 = sphi 0, %s134
    %s151 = sphi 0, %s135
  $region4: #{a_call__.6} parent=0 // loop_header_branch
    %14 = sbr.rel (%p12) target = $region8
  $region5: #{a_call__.6} parent=0 // loop_body
    %s16 = ssub.s32 %s11, 1
    %s17 = ssub.s32 %s11, 2
    %s18 = sadd.s32 %s11, 1
    %s19 = ssub.s32 %s11, %s18
    %p20 = scmp.eq.s32.totalorder %s19, 0
    %s22 = sadd.s32 %s21, 1
    %s23 = scalar_select %p20, %s21, %s22
    %p26 = pneg %p20
    %p27 = scmp.eq.s32.totalorder %s11, 1
    %p28 = por %p26, %p27
    %p29 = scmp.ne.s32.totalorder %s21, %s24
    %p30 = scmp.eq.s32.totalorder %s11, 0
    %p31 = por %p29, %p30
    %p32 = scmp.ne.s32.totalorder %s21, %s24
    %p33 = scmp.eq.s32.totalorder %s16, 1
    %p34 = por %p32, %p33
    %p35 = scmp.ne.s32.totalorder %s24, %s25
    %p36 = scmp.eq.s32.totalorder %s16, 0
    %p37 = por %p35, %p36
    %p38 = scmp.ne.s32.totalorder %s24, %s25
    %p39 = scmp.eq.s32.totalorder %s17, 1
    %p40 = por %p38, %p39
    %p42 = scmp.ne.s32.totalorder %s25, %s41
    %p43 = scmp.eq.s32.totalorder %s17, 0
    %p44 = por %p42, %p43
    %s46 = sadd.s32 %s45, 1
    %p49 = scmp.eq.s32.totalorder %s11, 1
    %p50 = scmp.ne.s32.totalorder %s45, %s47
    %p51 = scmp.eq.s32.totalorder %s11, 0
    %p52 = por %p50, %p51
    %p53 = scmp.ne.s32.totalorder %s45, %s47
    %p54 = scmp.eq.s32.totalorder %s16, 1
    %p55 = por %p53, %p54
    %p56 = scmp.ne.s32.totalorder %s47, %s48
    %p57 = scmp.eq.s32.totalorder %s16, 0
    %p58 = por %p56, %p57
    %p59 = scmp.ne.s32.totalorder %s47, %s48
    %p60 = scmp.eq.s32.totalorder %s17, 1
    %p61 = por %p59, %p60
    %p63 = scmp.ne.s32.totalorder %s48, %s62
    %p64 = scmp.eq.s32.totalorder %s17, 0
    %p65 = por %p63, %p64
    %s67 = sadd.s32 %s66, 1
    %p70 = scmp.eq.s32.totalorder %s11, 1
    %p71 = scmp.ne.s32.totalorder %s66, %s68
    %p72 = scmp.eq.s32.totalorder %s11, 0
    %p73 = por %p71, %p72
    %p74 = scmp.ne.s32.totalorder %s66, %s68
    %p75 = scmp.eq.s32.totalorder %s16, 1
    %p76 = por %p74, %p75
    %p77 = scmp.ne.s32.totalorder %s68, %s69
    %p78 = scmp.eq.s32.totalorder %s16, 0
    %p79 = por %p77, %p78
    %p80 = scmp.ne.s32.totalorder %s68, %s69
    %p81 = scmp.eq.s32.totalorder %s17, 1
    %p82 = por %p80, %p81
    %p84 = scmp.ne.s32.totalorder %s69, %s83
    %p85 = scmp.eq.s32.totalorder %s17, 0
    %p86 = por %p84, %p85
    %s88 = sadd.s32 %s87, 1
    %p91 = scmp.eq.s32.totalorder %s11, 1
    %p92 = scmp.ne.s32.totalorder %s87, %s89
    %p93 = scmp.eq.s32.totalorder %s11, 0
    %p94 = por %p92, %p93
    %p95 = scmp.ne.s32.totalorder %s87, %s89
    %p96 = scmp.eq.s32.totalorder %s16, 1
    %p97 = por %p95, %p96
    %p98 = scmp.ne.s32.totalorder %s89, %s90
    %p99 = scmp.eq.s32.totalorder %s16, 0
    %p100 = por %p98, %p99
    %p101 = scmp.ne.s32.totalorder %s89, %s90
    %p102 = scmp.eq.s32.totalorder %s17, 1
    %p103 = por %p101, %p102
    %p105 = scmp.ne.s32.totalorder %s90, %s104
    %p106 = scmp.eq.s32.totalorder %s17, 0
    %p107 = por %p105, %p106
    %s109 = sadd.s32 %s108, 1
    %p112 = scmp.eq.s32.totalorder %s11, 1
    %p113 = scmp.ne.s32.totalorder %s108, %s110
    %p114 = scmp.eq.s32.totalorder %s11, 0
    %p115 = por %p113, %p114
    %p116 = scmp.ne.s32.totalorder %s108, %s110
    %p117 = scmp.eq.s32.totalorder %s16, 1
    %p118 = por %p116, %p117
    %p119 = scmp.ne.s32.totalorder %s110, %s111
    %p120 = scmp.eq.s32.totalorder %s16, 0
    %p121 = por %p119, %p120
    %p122 = scmp.ne.s32.totalorder %s110, %s111
    %p123 = scmp.eq.s32.totalorder %s17, 1
    %p124 = por %p122, %p123
    %p126 = scmp.ne.s32.totalorder %s111, %s125
    %p127 = scmp.eq.s32.totalorder %s17, 0
    %p128 = por %p126, %p127
    %s129 = ssub.s32 %s11, %s18
    %p130 = scmp.eq.s32.totalorder %s129, 0
    %s132 = sadd.s32 %s131, 1
    %s133 = scalar_select %p130, %s131, %s132
    %p136 = pneg %p130
    %p137 = scmp.eq.s32.totalorder %s11, 1
    %p138 = por %p136, %p137
    %p139 = scmp.ne.s32.totalorder %s131, %s134
    %p140 = scmp.eq.s32.totalorder %s11, 0
    %p141 = por %p139, %p140
    %p142 = scmp.ne.s32.totalorder %s131, %s134
    %p143 = scmp.eq.s32.totalorder %s16, 1
    %p144 = por %p142, %p143
    %p145 = scmp.ne.s32.totalorder %s134, %s135
    %p146 = scmp.eq.s32.totalorder %s16, 0
    %p147 = por %p145, %p146
    %p148 = scmp.ne.s32.totalorder %s134, %s135
    %p149 = scmp.eq.s32.totalorder %s17, 1
    %p150 = por %p148, %p149
    %p152 = scmp.ne.s32.totalorder %s135, %s151
    %p153 = scmp.eq.s32.totalorder %s17, 0
    %p154 = por %p152, %p153
    %p155 = scmp.le.s32.totalorder 1, %s11
    %p156 = scmp.lt.s32.totalorder %s11, 3
    %p157 = pnand %p155, %p156
    %p158 = pneg %p157
    // Predicated region
    $region9: #{a_call__.6} parent=5 // pred_check
      _
    $region10: #{a_call__.6} parent=5 // pred_check_branch
      %160 = sbr.rel (%p157) target = $region12
    $region11: #{a_call__.6} parent=5 // pred_region
      %s161 = ssub.s32 %s11, 1
      // Predicated region
      $region13: #{a_call__.6} parent=11 // pred_check
        %p162 = pneg %p58
      $region14: #{a_call__.6} parent=11 // pred_check_branch
        %164 = sbr.rel (%p162) target = $region16
      $region15: #{a_call__.6} parent=11 // pred_region
        _
      $region16: #{a_call__.6} parent=11 // pred_fallthru
        _
      // Predicated region
      $region17: #{a_call__.6} parent=11 // pred_check
        %p165 = pneg %p79
      $region18: #{a_call__.6} parent=11 // pred_check_branch
        %167 = sbr.rel (%p165) target = $region20
      $region19: #{a_call__.6} parent=11 // pred_region
        _
      $region20: #{a_call__.6} parent=11 // pred_fallthru
        _
      // Predicated region
      $region21: #{a_call__.6} parent=11 // pred_check
        %p168 = pneg %p100
      $region22: #{a_call__.6} parent=11 // pred_check_branch
        %170 = sbr.rel (%p168) target = $region24
      $region23: #{a_call__.6} parent=11 // pred_region
        _
      $region24: #{a_call__.6} parent=11 // pred_fallthru
        _
      // Predicated region
      $region25: #{a_call__.6} parent=11 // pred_check
        %p171 = pneg %p121
      $region26: #{a_call__.6} parent=11 // pred_check_branch
        %173 = sbr.rel (%p171) target = $region28
      $region27: #{a_call__.6} parent=11 // pred_region
        _
      $region28: #{a_call__.6} parent=11 // pred_fallthru
        _
    $region12: #{a_call__.6} parent=5 // pred_fallthru
      _
    %p174 = scmp.lt.s32.totalorder %s11, 2
    // Predicated region
    $region29: #{a_call__.6} parent=5 // pred_check
      %p175 = pneg %p174
    $region30: #{a_call__.6} parent=5 // pred_check_branch
      %177 = sbr.rel (%p175) target = $region32
    $region31: #{a_call__.6} parent=5 // pred_region
      // Predicated region
      $region33: #{a_call__.6} parent=31 // pred_check
        %p178 = pneg %p31
      $region34: #{a_call__.6} parent=31 // pred_check_branch
        %180 = sbr.rel (%p178) target = $region36
      $region35: #{a_call__.6} parent=31 // pred_region
        %p181 = scmp.lt.s32.totalorder %s11, 1
        %s182 = scalar_select %p181, %s11, 1
        %s183 = smul.addr %s182, 2
        %s184 = scalar_lea.vmem %s0, %s183
      $region36: #{a_call__.6} parent=31 // pred_fallthru
        _
    $region32: #{a_call__.6} parent=5 // pred_fallthru
      _
    %p185 = scmp.le.s32.totalorder 1, %s11
    %p186 = scmp.lt.s32.totalorder %s11, 3
    %p187 = pnand %p185, %p186
    %p188 = pneg %p187
    // Predicated region
    $region37: #{a_call__.6} parent=5 // pred_check
      _
    $region38: #{a_call__.6} parent=5 // pred_check_branch
      %190 = sbr.rel (%p187) target = $region40
    $region39: #{a_call__.6} parent=5 // pred_region
      %s191 = ssub.s32 %s11, 1
      %p192 = scmp.lt.s32.totalorder %s16, 1
      %s193 = scalar_select %p192, %s16, 1
      %s194 = smul.addr %s193, 2
      %s195 = scalar_lea.vmem %s0, %s194
      %p196 = pneg %p37
      %p197 = pneg %p34
      %p198 = pneg %p58
      %p199 = pneg %p55
      %p200 = pneg %p79
      %p201 = pneg %p76
      %p202 = pneg %p100
      %p203 = pneg %p97
      %p204 = pneg %p121
      %p205 = pneg %p118
      %p206 = pneg %p147
      %p207 = pneg %p144
      %p208 = scmp.lt.s32.totalorder %s16, 1
      %s209 = scalar_select %p208, %s16, 1
      %s210 = smul.addr %s209, 2
      %s211 = scalar_lea.vmem %s5, %s210
      %p212 = scmp.lt.s32.totalorder %s16, 1
      %s213 = scalar_select %p212, %s16, 1
      %s214 = smul.addr %s213, 2
      %s215 = scalar_lea.vmem %s0, %s214
      %p216 = scmp.lt.s32.totalorder %s16, 1
      %s217 = scalar_select %p216, %s16, 1
      %s218 = smul.addr %s217, 2
      %s219 = scalar_lea.vmem %s5, %s218
      %v220 = vld [vmem:[%s215] sm:$0x3]
      %v221 = vld [vmem:[%s1] sm:$0xff]
      %v222 = vld [vmem:[%s1 + $0x8] sm:$0xff]
      %v223 = vld [vmem:[%s1 + $0x10] sm:$0xff]
      %v224 = vld [vmem:[%s1 + $0x18] sm:$0xff]
      %v225 = vld [vmem:[%s1 + $0x20] sm:$0xf]
      %v226 = vlaneseq
      %v227 = vshrl.u32 %v226, 7
      %v228 = vsub.s32 0, %v227
      %v229 = vrot.slane %v220, %v228
      %231 = vset.pattern.permute.xlu0 0
      %232 = vperm.xlu0 %231, %v221
      %v233 = vpop.permute.xlu0 %232
      %236 = vset.pattern.permute.xlu0 0
      %237 = vperm.xlu0 %236, %v222
      %v238 = vpop.permute.xlu0 %237
      %241 = vset.pattern.permute.xlu0 0
      %242 = vperm.xlu0 %241, %v223
      %v243 = vpop.permute.xlu0 %242
      %246 = vset.pattern.permute.xlu0 0
      %247 = vperm.xlu0 %246, %v224
      %v248 = vpop.permute.xlu0 %247
      %251 = vset.pattern.permute.xlu0 0
      %252 = vperm.xlu0 %251, %v225
      %v253 = vpop.permute.xlu0 %252
      %v255 = vsub.f32 %v229, %v233
      %v256 = vsub.f32 %v229, %v238
      %v257 = vsub.f32 %v229, %v243
      %v258 = vsub.f32 %v229, %v248
      %v259 = vsub.f32 %v229, %v253
      %v260 = vlaneseq
      %v261 = vshrl.u32 %v260, 7
      %v262 = vsub.s32 1, %v261
      %v263 = vrot.slane %v220, %v262
      %264 = vset.pattern.permute.xlu0 1
      %265 = vperm.xlu0 %264, %v221
      %v266 = vpop.permute.xlu0 %265
      %268 = vset.pattern.permute.xlu0 1
      %269 = vperm.xlu0 %268, %v222
      %v270 = vpop.permute.xlu0 %269
      %272 = vset.pattern.permute.xlu0 1
      %273 = vperm.xlu0 %272, %v223
      %v274 = vpop.permute.xlu0 %273
      %276 = vset.pattern.permute.xlu0 1
      %277 = vperm.xlu0 %276, %v224
      %v278 = vpop.permute.xlu0 %277
      %280 = vset.pattern.permute.xlu0 1
      %281 = vperm.xlu0 %280, %v225
      %v282 = vpop.permute.xlu0 %281
      %v284 = vsub.f32 %v263, %v266
      %v285 = vsub.f32 %v263, %v270
      %v286 = vsub.f32 %v263, %v274
      %v287 = vsub.f32 %v263, %v278
      %v288 = vsub.f32 %v263, %v282
      %v289 = vmul.f32 %v255, %v255
      %v290 = vmul.f32 %v256, %v256
      %v291 = vmul.f32 %v257, %v257
      %v292 = vmul.f32 %v258, %v258
      %v293 = vmul.f32 %v259, %v259
      %v294 = vmul.f32 %v284, %v284
      %v295 = vmul.f32 %v285, %v285
      %v296 = vmul.f32 %v286, %v286
      %v297 = vmul.f32 %v287, %v287
      %v298 = vmul.f32 %v288, %v288
      %v299 = vadd.f32 %v289, %v294
      %v300 = vadd.f32 %v290, %v295
      %v301 = vadd.f32 %v291, %v296
      %v302 = vadd.f32 %v292, %v297
      %v303 = vadd.f32 %v293, %v298
      %v304 = vrsqrt.pop %v299
      %v305 = vmul.f32 %v299, %v304
      %vm306 = vcmp.eq.f32.partialorder %v299, inf
      %v307 = vsel %vm306, %v299, %v305
      %vm308 = vcmp.eq.f32.partialorder %v299, 0.0
      %v309 = vand.u32 %v299, 2147483648
      %v310 = vsel %vm308, %v309, %v307
      %v311 = vrsqrt.pop %v300
      %v312 = vmul.f32 %v300, %v311
      %vm313 = vcmp.eq.f32.partialorder %v300, inf
      %v314 = vsel %vm313, %v300, %v312
      %vm315 = vcmp.eq.f32.partialorder %v300, 0.0
      %v316 = vand.u32 %v300, 2147483648
      %v317 = vsel %vm315, %v316, %v314
      %v318 = vrsqrt.pop %v301
      %v319 = vmul.f32 %v301, %v318
      %vm320 = vcmp.eq.f32.partialorder %v301, inf
      %v321 = vsel %vm320, %v301, %v319
      %vm322 = vcmp.eq.f32.partialorder %v301, 0.0
      %v323 = vand.u32 %v301, 2147483648
      %v324 = vsel %vm322, %v323, %v321
      %v325 = vrsqrt.pop %v302
      %v326 = vmul.f32 %v302, %v325
      %vm327 = vcmp.eq.f32.partialorder %v302, inf
      %v328 = vsel %vm327, %v302, %v326
      %vm329 = vcmp.eq.f32.partialorder %v302, 0.0
      %v330 = vand.u32 %v302, 2147483648
      %v331 = vsel %vm329, %v330, %v328
      %v332 = vrsqrt.pop %v303
      %v333 = vmul.f32 %v303, %v332
      %vm334 = vcmp.eq.f32.partialorder %v303, inf
      %v335 = vsel %vm334, %v303, %v333
      %vm336 = vcmp.eq.f32.partialorder %v303, 0.0
      %v337 = vand.u32 %v303, 2147483648
      %v338 = vsel %vm336, %v337, %v335
      %v339 = vadd.f32 %v310, 1e-06
      %v340 = vadd.f32 %v317, 1e-06
      %v341 = vadd.f32 %v324, 1e-06
      %v342 = vadd.f32 %v331, 1e-06
      %v343 = vadd.f32 %v338, 1e-06
      %v344 = vlog2.pop %v339
      %v345 = vmul.f32 %v344, 0.6931472
      %v346 = vlog2.pop %v340
      %v347 = vmul.f32 %v346, 0.6931472
      %v348 = vlog2.pop %v341
      %v349 = vmul.f32 %v348, 0.6931472
      %v350 = vlog2.pop %v342
      %v351 = vmul.f32 %v350, 0.6931472
      %v352 = vlog2.pop %v343
      %v353 = vmul.f32 %v352, 0.6931472
      %v354 = vmul.f32 %v299, %v345
      %v355 = vmul.f32 %v300, %v347
      %v356 = vmul.f32 %v301, %v349
      %v357 = vmul.f32 %v302, %v351
      %v358 = vmul.f32 %v303, %v353
      %v359 = vld [vmem:[%s2] sm:$0x3]
      %vm360 = vcmask 293888
      %v362 = vsel %vm360, %v359, 0
      %vm364 = vcmask 1043456
      %v366 = vsel %vm364, %v358, 0
      %368 = vmatprep.subr.mxu0 0.0
      %369 = vmatpush1.msra.mxu0 %v354
      %370 = vmatprep.subr.mxu0 0.0
      %371 = vmatpush1.msra.mxu0 %v355
      %372 = vmatprep.subr.mxu0 0.0
      %373 = vmatpush1.msra.mxu0 %v356
      %374 = vmatprep.subr.mxu0 0.0
      %375 = vmatpush1.msra.mxu0 %v357
      %376 = vmatprep.subr.mxu0 0.0
      %377 = vmatpush1.msra.mxu0 %v366
      %378 = vmatprep.subr.mxu0 0.0
      %379 = vmatpush1.msra.mxu0 0.0
      %380 = vmatprep.subr.mxu0 0.0
      %381 = vmatpush1.msra.mxu0 0.0
      %382 = vmatprep.subr.mxu0 0.0
      %383 = vmatpush1.msra.mxu0 0.0
      %384 = vmatprep.subr.mxu0 0.0
      %385 = vmatpush1.msra.mxu0 0.0
      %386 = vmatprep.subr.mxu0 0.0
      %387 = vmatpush1.msra.mxu0 0.0
      %388 = vmatprep.subr.mxu0 0.0
      %389 = vmatpush1.msra.mxu0 0.0
      %390 = vmatprep.subr.mxu0 0.0
      %391 = vmatpush1.msra.mxu0 0.0
      %392 = vmatprep.subr.mxu0 0.0
      %393 = vmatpush1.msra.mxu0 0.0
      %394 = vmatprep.subr.mxu0 0.0
      %395 = vmatpush1.msra.mxu0 0.0
      %396 = vmatprep.subr.mxu0 0.0
      %397 = vmatpush1.msra.mxu0 0.0
      %398 = vmatprep.subr.mxu0 0.0
      %399 = vmatpush1.msra.mxu0 0.0
      %400 = vmatprep.subr.mxu0 0.0
      %401 = vmatpush1.msra.mxu0 0.0
      %402 = vmatprep.subr.mxu0 0.0
      %403 = vmatpush1.msra.mxu0 0.0
      %404 = vmatprep.subr.mxu0 0.0
      %405 = vmatpush1.msra.mxu0 0.0
      %406 = vmatprep.subr.mxu0 0.0
      %407 = vmatpush1.msra.mxu0 0.0
      %408 = vmatprep.subr.mxu0 0.0
      %409 = vmatpush1.msra.mxu0 0.0
      %410 = vmatprep.subr.mxu0 0.0
      %411 = vmatpush1.msra.mxu0 0.0
      %412 = vmatprep.subr.mxu0 0.0
      %413 = vmatpush1.msra.mxu0 0.0
      %414 = vmatprep.subr.mxu0 0.0
      %415 = vmatpush1.msra.mxu0 0.0
      %416 = vmatprep.subr.mxu0 0.0
      %417 = vmatpush1.msra.mxu0 0.0
      %418 = vmatprep.subr.mxu0 0.0
      %419 = vmatpush1.msra.mxu0 0.0
      %420 = vmatprep.subr.mxu0 0.0
      %421 = vmatpush1.msra.mxu0 0.0
      %422 = vmatprep.subr.mxu0 0.0
      %423 = vmatpush1.msra.mxu0 0.0
      %424 = vmatprep.subr.mxu0 0.0
      %425 = vmatpush1.msra.mxu0 0.0
      %426 = vmatprep.subr.mxu0 0.0
      %427 = vmatpush1.msra.mxu0 0.0
      %428 = vmatprep.subr.mxu0 0.0
      %429 = vmatpush1.msra.mxu0 0.0
      %430 = vmatprep.subr.mxu0 0.0
      %431 = vmatpush1.msra.mxu0 0.0
      %432 = vmatprep.mubr.f32.mxu0 0.0
      %433 = vmatmul.mubr.f32.gmra.mrb[0].mxu0 %v362
      %v434 = vpop.f32.mrb[0].mxu0
      %v435 = vadd.f32 0.0, %v434
      %v436 = vpop.f32.mrb[0].mxu0
      %437 = vdwg.mxu0
      %v438 = vld [vmem:[%s3] sm:$0x3]
      %440 = vset.pattern.permute.xlu0 1
      %441 = vperm.xlu0 %440, %v438
      %v442 = vpop.permute.xlu0 %441
      %v444 = vmul.f32 %v442, %v229
      %445 = vset.pattern.permute.xlu0 0
      %446 = vperm.xlu0 %445, %v438
      %v447 = vpop.permute.xlu0 %446
      %v449 = vadd.f32 %v447, %v444
      %450 = vset.pattern.permute.xlu0 2
      %451 = vperm.xlu0 %450, %v438
      %v452 = vpop.permute.xlu0 %451
      %v454 = vmul.f32 %v452, %v263
      %v455 = vadd.f32 %v449, %v454
      %v456 = vadd.f32 %v220, %v435
      %v457 = vadd.f32 %v456, %v455
      %v458 = vmul.f32 %v457, 2.0
      %v459 = vsub.f32 %v458, 1.0
      %v460 = vadd.f32 %v459, 1.0
      %v461 = vmul.f32 %v460, 7.5
      %v462 = vfloor.f32 %v461
      %v463 = vcvt.f32.s32.to.zero.pseudo %v462
      %v464 = vsub.f32 %v461, %v462
      %v465 = vlaneseq
      %v466 = vshrl.u32 %v465, 7
      %v467 = vadd.s32 %v466, 8
      %v468 = vlaneseq
      %v469 = vshrl.u32 %v468, 7
      %v470 = vsub.s32 0, %v469
      %v471 = vrot.slane %v463, %v470
      %vm472 = vcmp.eq.s32.totalorder %v466, %v471
      %vm473 = vcmp.eq.s32.totalorder %v467, %v471
      %v474 = vsub.f32 1.0, %v464
      %v475 = vlaneseq
      %v476 = vshrl.u32 %v475, 7
      %v477 = vsub.s32 0, %v476
      %v478 = vrot.slane %v474, %v477
      %v479 = vsel %vm472, %v478, 0.0
      %v480 = vsel %vm473, %v478, 0.0
      %v481 = vadd.s32 %v463, 1
      %v482 = vlaneseq
      %v483 = vshrl.u32 %v482, 7
      %v484 = vsub.s32 0, %v483
      %v485 = vrot.slane %v481, %v484
      %vm486 = vcmp.eq.s32.totalorder %v466, %v485
      %vm487 = vcmp.eq.s32.totalorder %v467, %v485
      %v488 = vlaneseq
      %v489 = vshrl.u32 %v488, 7
      %v490 = vsub.s32 0, %v489
      %v491 = vrot.slane %v464, %v490
      %v492 = vsel %vm486, %v491, 0.0
      %v493 = vsel %vm487, %v491, 0.0
      %v494 = vadd.f32 %v479, %v492
      %v495 = vadd.f32 %v480, %v493
      %v496 = vlaneseq
      %v497 = vshrl.u32 %v496, 7
      %v498 = vsub.s32 1, %v497
      %v499 = vrot.slane %v463, %v498
      %vm500 = vcmp.eq.s32.totalorder %v466, %v499
      %vm501 = vcmp.eq.s32.totalorder %v467, %v499
      %v502 = vlaneseq
      %v503 = vshrl.u32 %v502, 7
      %v504 = vsub.s32 1, %v503
      %v505 = vrot.slane %v474, %v504
      %v506 = vsel %vm500, %v505, 0.0
      %v507 = vsel %vm501, %v505, 0.0
      %v508 = vlaneseq
      %v509 = vshrl.u32 %v508, 7
      %v510 = vsub.s32 1, %v509
      %v511 = vrot.slane %v481, %v510
      %vm512 = vcmp.eq.s32.totalorder %v466, %v511
      %vm513 = vcmp.eq.s32.totalorder %v467, %v511
      %v514 = vlaneseq
      %v515 = vshrl.u32 %v514, 7
      %v516 = vsub.s32 1, %v515
      %v517 = vrot.slane %v464, %v516
      %v518 = vsel %vm512, %v517, 0.0
      %v519 = vsel %vm513, %v517, 0.0
      %v520 = vadd.f32 %v506, %v518
      %v521 = vadd.f32 %v507, %v519
      %v522 = vld [vmem:[%s4] sm:$0xff]
      %v523 = vld [vmem:[%s4 + $0x8] sm:$0xff]
      %v524 = vld [vmem:[%s4 + $0x10] sm:$0xff]
      %v525 = vld [vmem:[%s4 + $0x18] sm:$0xff]
      %vm526 = vcmask 130048
      %v528 = vsel %vm526, %v522, 0
      %v531 = vsel %vm526, %v523, 0
      %v534 = vsel %vm526, %v524, 0
      %v537 = vsel %vm526, %v525, 0
      %539 = vmatprep.subr.mxu0 0.0
      %540 = vmatpush1.msra.mxu0 %v494
      %541 = vmatprep.subr.mxu0 0.0
      %542 = vmatpush1.msra.mxu0 %v495
      %543 = vmatprep.subr.mxu0 0.0
      %544 = vmatpush1.msra.mxu0 0.0
      %545 = vmatprep.subr.mxu0 0.0
      %546 = vmatpush1.msra.mxu0 0.0
      %547 = vmatprep.subr.mxu0 0.0
      %548 = vmatpush1.msra.mxu0 0.0
      %549 = vmatprep.subr.mxu0 0.0
      %550 = vmatpush1.msra.mxu0 0.0
      %551 = vmatprep.subr.mxu0 0.0
      %552 = vmatpush1.msra.mxu0 0.0
      %553 = vmatprep.subr.mxu0 0.0
      %554 = vmatpush1.msra.mxu0 0.0
      %555 = vmatprep.subr.mxu0 0.0
      %556 = vmatpush1.msra.mxu0 0.0
      %557 = vmatprep.subr.mxu0 0.0
      %558 = vmatpush1.msra.mxu0 0.0
      %559 = vmatprep.subr.mxu0 0.0
      %560 = vmatpush1.msra.mxu0 0.0
      %561 = vmatprep.subr.mxu0 0.0
      %562 = vmatpush1.msra.mxu0 0.0
      %563 = vmatprep.subr.mxu0 0.0
      %564 = vmatpush1.msra.mxu0 0.0
      %565 = vmatprep.subr.mxu0 0.0
      %566 = vmatpush1.msra.mxu0 0.0
      %567 = vmatprep.subr.mxu0 0.0
      %568 = vmatpush1.msra.mxu0 0.0
      %569 = vmatprep.subr.mxu0 0.0
      %570 = vmatpush1.msra.mxu0 0.0
      %571 = vmatprep.subr.mxu0 0.0
      %572 = vmatpush1.msra.mxu0 0.0
      %573 = vmatprep.subr.mxu0 0.0
      %574 = vmatpush1.msra.mxu0 0.0
      %575 = vmatprep.subr.mxu0 0.0
      %576 = vmatpush1.msra.mxu0 0.0
      %577 = vmatprep.subr.mxu0 0.0
      %578 = vmatpush1.msra.mxu0 0.0
      %579 = vmatprep.subr.mxu0 0.0
      %580 = vmatpush1.msra.mxu0 0.0
      %581 = vmatprep.subr.mxu0 0.0
      %582 = vmatpush1.msra.mxu0 0.0
      %583 = vmatprep.subr.mxu0 0.0
      %584 = vmatpush1.msra.mxu0 0.0
      %585 = vmatprep.subr.mxu0 0.0
      %586 = vmatpush1.msra.mxu0 0.0
      %587 = vmatprep.subr.mxu0 0.0
      %588 = vmatpush1.msra.mxu0 0.0
      %589 = vmatprep.subr.mxu0 0.0
      %590 = vmatpush1.msra.mxu0 0.0
      %591 = vmatprep.subr.mxu0 0.0
      %592 = vmatpush1.msra.mxu0 0.0
      %593 = vmatprep.subr.mxu0 0.0
      %594 = vmatpush1.msra.mxu0 0.0
      %595 = vmatprep.subr.mxu0 0.0
      %596 = vmatpush1.msra.mxu0 0.0
      %597 = vmatprep.subr.mxu0 0.0
      %598 = vmatpush1.msra.mxu0 0.0
      %599 = vmatprep.subr.mxu0 0.0
      %600 = vmatpush1.msra.mxu0 0.0
      %601 = vmatprep.subr.mxu0 0.0
      %602 = vmatpush1.msra.mxu0 0.0
      %603 = vmatprep.mubr.f32.mxu0 0.0
      %604 = vmatmul.mubr.f32.gmra.mrb[0].mxu0 %v528
      %v605 = vpop.f32.mrb[0].mxu0
      %v606 = vadd.f32 0.0, %v605
      %v607 = vpop.f32.mrb[0].mxu0
      %608 = vmatprep.mubr.f32.mxu0 0.0
      %609 = vmatmul.mubr.f32.gmra.mrb[0].mxu0 %v531
      %v610 = vpop.f32.mrb[0].mxu0
      %v611 = vadd.f32 0.0, %v610
      %v612 = vpop.f32.mrb[0].mxu0
      %613 = vmatprep.mubr.f32.mxu0 0.0
      %614 = vmatmul.mubr.f32.gmra.mrb[0].mxu0 %v534
      %v615 = vpop.f32.mrb[0].mxu0
      %v616 = vadd.f32 0.0, %v615
      %v617 = vpop.f32.mrb[0].mxu0
      %618 = vmatprep.mubr.f32.mxu0 0.0
      %619 = vmatmul.mubr.f32.gmra.mrb[0].mxu0 %v537
      %v620 = vpop.f32.mrb[0].mxu0
      %v621 = vadd.f32 0.0, %v620
      %v622 = vpop.f32.mrb[0].mxu0
      %623 = vdwg.mxu0
      %v624 = vmul.f32 %v606, %v520
      %v625 = vmul.f32 %v611, %v521
      %v626 = vmul.f32 %v616, %v520
      %v627 = vmul.f32 %v621, %v521
      %v628 = vadd.f32 %v624, %v625
      %v629 = vrot.slane %v628, 4
      %v630 = vadd.f32 %v628, %v629
      %v631 = vrot.slane %v630, 2
      %v632 = vadd.f32 %v630, %v631
      %v633 = vrot.slane %v632, 1
      %v634 = vadd.f32 %v632, %v633
      %v635 = vadd.f32 %v626, %v627
      %v636 = vrot.slane %v635, 4
      %v637 = vadd.f32 %v635, %v636
      %v638 = vrot.slane %v637, 2
      %v639 = vadd.f32 %v637, %v638
      %v640 = vrot.slane %v639, 1
      %v641 = vadd.f32 %v639, %v640
      %vm644 = vcmask 1041409
      %v645 = vsel %vm644, %v641, %v634
      %647 = vst [vmem:[%s219] sm:$0x3] %v645
      %p648 = scmp.lt.s32.totalorder %s16, 1
      %s649 = scalar_select %p648, %s16, 1
      %s650 = smul.addr %s649, 2
      %s651 = scalar_lea.vmem %s5, %s650
      // Predicated region
      $region41: #{a_call__.6} parent=39 // pred_check
        %p652 = pneg %p144
      $region42: #{a_call__.6} parent=39 // pred_check_branch
        %654 = sbr.rel (%p652) target = $region44
      $region43: #{a_call__.6} parent=39 // pred_region
        _
      $region44: #{a_call__.6} parent=39 // pred_fallthru
        _
    $region40: #{a_call__.6} parent=5 // pred_fallthru
      _
    %p655 = scmp.le.s32.totalorder 2, %s11
    // Predicated region
    $region45: #{a_call__.6} parent=5 // pred_check
      %p656 = pneg %p655
    $region46: #{a_call__.6} parent=5 // pred_check_branch
      %658 = sbr.rel (%p656) target = $region48
    $region47: #{a_call__.6} parent=5 // pred_region
      %s659 = ssub.s32 %s11, 2
      // Predicated region
      $region49: #{a_call__.6} parent=47 // pred_check
        %p660 = pneg %p150
      $region50: #{a_call__.6} parent=47 // pred_check_branch
        %662 = sbr.rel (%p660) target = $region52
      $region51: #{a_call__.6} parent=47 // pred_region
        %p663 = scmp.lt.s32.totalorder %s17, 1
        %s664 = scalar_select %p663, %s17, 1
        %s665 = smul.addr %s664, 2
        %s666 = scalar_lea.vmem %s5, %s665
      $region52: #{a_call__.6} parent=47 // pred_fallthru
        _
    $region48: #{a_call__.6} parent=5 // pred_fallthru
      _
  $region6: #{a_call__.6} parent=0 // loop_footer
    %s15 = sadd.s32 1, %s11
  $region7: #{a_call__.6} parent=0 // loop_footer_branch
    %10 = sbr.rel target = $region3
  $region8: #{a_call__.6} parent=0 // loop_exit
    _

// kernel: a_call__.9
$region0: #{a_call__.9}
  #allocation0 [shape = 'u32[]', space=smem, size = 0x4, offset = 0x4, fixed_abs, tag = 'smem constant byte address 0x4 - core index']
  #allocation1 [shape = 'u32[144,128]{1,0:T(1,128)}', space=vmem, size = 0x12000, scoped, tag = 'internal scratch']
  %s0 = inlined_call_operand.vmem [shape: f32[16,64], index: 0, kind: input, shape index: {}]
  %s1 = inlined_call_operand.vmem [shape: f32[64,128], index: 1, kind: input, shape index: {}]
  %s2 = inlined_call_operand.vmem [shape: f32[1,128], index: 2, kind: input, shape index: {}]
  %s3 = inlined_call_operand.vmem [shape: f32[16,128], index: 3, kind: output, shape index: {}]
  %s4 = sld [smem:[#allocation0]]
  $region45: #{a_call__.9} parent=0
    _
  %s6 = ssub.s32 1, %s4
  %s7 = scalar_select 0, %s6, %s4
  loop: start=0, step=1, limit=4
  $region2: #{a_call__.9} parent=0 // loop_pre_header
    _
  $region3: #{a_call__.9} parent=0 // loop_header
    %s9 = sphi 0, %s13
    %p10 = scmp.ge.s32.totalorder %s9, 4
    %s19 = sphi 0, %s21
    %s22 = sphi 0, %s19
    %s23 = sphi 0, %s22
    %s39 = sphi 0, %s23
    %s43 = sphi 0, %s43
    %s45 = sphi 0, %s43
    %s46 = sphi 0, %s45
    %s60 = sphi 0, %s46
    %s64 = sphi 0, %s64
    %s66 = sphi 0, %s64
    %s67 = sphi 0, %s66
    %s81 = sphi 0, %s67
    %s87 = sphi 0, %s89
    %s90 = sphi 0, %s87
    %s91 = sphi 0, %s90
    %s107 = sphi 0, %s91
  $region4: #{a_call__.9} parent=0 // loop_header_branch
    %12 = sbr.rel (%p10) target = $region8
  $region5: #{a_call__.9} parent=0 // loop_body
    %s14 = ssub.s32 %s9, 1
    %s15 = ssub.s32 %s9, 2
    %s16 = sadd.s32 %s9, 1
    %s17 = ssub.s32 %s9, %s16
    %p18 = scmp.eq.s32.totalorder %s17, 0
    %s20 = sadd.s32 %s19, 1
    %s21 = scalar_select %p18, %s19, %s20
    %p24 = pneg %p18
    %p25 = scmp.eq.s32.totalorder %s9, 1
    %p26 = por %p24, %p25
    %p27 = scmp.ne.s32.totalorder %s19, %s22
    %p28 = scmp.eq.s32.totalorder %s9, 0
    %p29 = por %p27, %p28
    %p30 = scmp.ne.s32.totalorder %s19, %s22
    %p31 = scmp.eq.s32.totalorder %s14, 1
    %p32 = por %p30, %p31
    %p33 = scmp.ne.s32.totalorder %s22, %s23
    %p34 = scmp.eq.s32.totalorder %s14, 0
    %p35 = por %p33, %p34
    %p36 = scmp.ne.s32.totalorder %s22, %s23
    %p37 = scmp.eq.s32.totalorder %s15, 1
    %p38 = por %p36, %p37
    %p40 = scmp.ne.s32.totalorder %s23, %s39
    %p41 = scmp.eq.s32.totalorder %s15, 0
    %p42 = por %p40, %p41
    %s44 = sadd.s32 %s43, 1
    %p47 = scmp.eq.s32.totalorder %s9, 1
    %p48 = scmp.ne.s32.totalorder %s43, %s45
    %p49 = scmp.eq.s32.totalorder %s9, 0
    %p50 = por %p48, %p49
    %p51 = scmp.ne.s32.totalorder %s43, %s45
    %p52 = scmp.eq.s32.totalorder %s14, 1
    %p53 = por %p51, %p52
    %p54 = scmp.ne.s32.totalorder %s45, %s46
    %p55 = scmp.eq.s32.totalorder %s14, 0
    %p56 = por %p54, %p55
    %p57 = scmp.ne.s32.totalorder %s45, %s46
    %p58 = scmp.eq.s32.totalorder %s15, 1
    %p59 = por %p57, %p58
    %p61 = scmp.ne.s32.totalorder %s46, %s60
    %p62 = scmp.eq.s32.totalorder %s15, 0
    %p63 = por %p61, %p62
    %s65 = sadd.s32 %s64, 1
    %p68 = scmp.eq.s32.totalorder %s9, 1
    %p69 = scmp.ne.s32.totalorder %s64, %s66
    %p70 = scmp.eq.s32.totalorder %s9, 0
    %p71 = por %p69, %p70
    %p72 = scmp.ne.s32.totalorder %s64, %s66
    %p73 = scmp.eq.s32.totalorder %s14, 1
    %p74 = por %p72, %p73
    %p75 = scmp.ne.s32.totalorder %s66, %s67
    %p76 = scmp.eq.s32.totalorder %s14, 0
    %p77 = por %p75, %p76
    %p78 = scmp.ne.s32.totalorder %s66, %s67
    %p79 = scmp.eq.s32.totalorder %s15, 1
    %p80 = por %p78, %p79
    %p82 = scmp.ne.s32.totalorder %s67, %s81
    %p83 = scmp.eq.s32.totalorder %s15, 0
    %p84 = por %p82, %p83
    %s85 = ssub.s32 %s9, %s16
    %p86 = scmp.eq.s32.totalorder %s85, 0
    %s88 = sadd.s32 %s87, 1
    %s89 = scalar_select %p86, %s87, %s88
    %p92 = pneg %p86
    %p93 = scmp.eq.s32.totalorder %s9, 1
    %p94 = por %p92, %p93
    %p95 = scmp.ne.s32.totalorder %s87, %s90
    %p96 = scmp.eq.s32.totalorder %s9, 0
    %p97 = por %p95, %p96
    %p98 = scmp.ne.s32.totalorder %s87, %s90
    %p99 = scmp.eq.s32.totalorder %s14, 1
    %p100 = por %p98, %p99
    %p101 = scmp.ne.s32.totalorder %s90, %s91
    %p102 = scmp.eq.s32.totalorder %s14, 0
    %p103 = por %p101, %p102
    %p104 = scmp.ne.s32.totalorder %s90, %s91
    %p105 = scmp.eq.s32.totalorder %s15, 1
    %p106 = por %p104, %p105
    %p108 = scmp.ne.s32.totalorder %s91, %s107
    %p109 = scmp.eq.s32.totalorder %s15, 0
    %p110 = por %p108, %p109
    %p111 = scmp.le.s32.totalorder 1, %s9
    %p112 = scmp.lt.s32.totalorder %s9, 3
    %p113 = pnand %p111, %p112
    %p114 = pneg %p113
    // Predicated region
    $region9: #{a_call__.9} parent=5 // pred_check
      _
    $region10: #{a_call__.9} parent=5 // pred_check_branch
      %116 = sbr.rel (%p113) target = $region12
    $region11: #{a_call__.9} parent=5 // pred_region
      %s117 = ssub.s32 %s9, 1
      // Predicated region
      $region13: #{a_call__.9} parent=11 // pred_check
        %p118 = pneg %p56
      $region14: #{a_call__.9} parent=11 // pred_check_branch
        %120 = sbr.rel (%p118) target = $region16
      $region15: #{a_call__.9} parent=11 // pred_region
        _
      $region16: #{a_call__.9} parent=11 // pred_fallthru
        _
      // Predicated region
      $region17: #{a_call__.9} parent=11 // pred_check
        %p121 = pneg %p77
      $region18: #{a_call__.9} parent=11 // pred_check_branch
        %123 = sbr.rel (%p121) target = $region20
      $region19: #{a_call__.9} parent=11 // pred_region
        _
      $region20: #{a_call__.9} parent=11 // pred_fallthru
        _
    $region12: #{a_call__.9} parent=5 // pred_fallthru
      _
    %p124 = scmp.lt.s32.totalorder %s9, 2
    // Predicated region
    $region21: #{a_call__.9} parent=5 // pred_check
      %p125 = pneg %p124
    $region22: #{a_call__.9} parent=5 // pred_check_branch
      %127 = sbr.rel (%p125) target = $region24
    $region23: #{a_call__.9} parent=5 // pred_region
      // Predicated region
      $region25: #{a_call__.9} parent=23 // pred_check
        %p128 = pneg %p29
      $region26: #{a_call__.9} parent=23 // pred_check_branch
        %130 = sbr.rel (%p128) target = $region28
      $region27: #{a_call__.9} parent=23 // pred_region
        %p131 = scmp.lt.s32.totalorder %s9, 1
        %s132 = scalar_select %p131, %s9, 1
        %s133 = smul.addr %s132, 8
        %s134 = scalar_lea.vmem %s0, %s133
      $region28: #{a_call__.9} parent=23 // pred_fallthru
        _
    $region24: #{a_call__.9} parent=5 // pred_fallthru
      _
    %p135 = scmp.le.s32.totalorder 1, %s9
    %p136 = scmp.lt.s32.totalorder %s9, 3
    %p137 = pnand %p135, %p136
    %p138 = pneg %p137
    // Predicated region
    $region29: #{a_call__.9} parent=5 // pred_check
      _
    $region30: #{a_call__.9} parent=5 // pred_check_branch
      %140 = sbr.rel (%p137) target = $region32
    $region31: #{a_call__.9} parent=5 // pred_region
      %s141 = ssub.s32 %s9, 1
      %p142 = scmp.lt.s32.totalorder %s14, 1
      %s143 = scalar_select %p142, %s14, 1
      %s144 = smul.addr %s143, 8
      %s145 = scalar_lea.vmem %s0, %s144
      %p146 = pneg %p35
      %p147 = pneg %p32
      %p148 = pneg %p56
      %p149 = pneg %p53
      %p150 = pneg %p77
      %p151 = pneg %p74
      %p152 = pneg %p103
      %p153 = pneg %p100
      %p154 = scmp.lt.s32.totalorder %s14, 1
      %s155 = scalar_select %p154, %s14, 1
      %s156 = smul.addr %s155, 8
      %s157 = scalar_lea.vmem %s3, %s156
      %p158 = scmp.lt.s32.totalorder %s14, 1
      %s159 = scalar_select %p158, %s14, 1
      %s160 = smul.addr %s159, 8
      %s161 = scalar_lea.vmem %s0, %s160
      %p162 = scmp.lt.s32.totalorder %s14, 1
      %s163 = scalar_select %p162, %s14, 1
      %s164 = smul.addr %s163, 8
      %s165 = scalar_lea.vmem %s3, %s164
      %v166 = vld [vmem:[%s161] sm:$0xff]
      %v167 = vld [vmem:[%s1] sm:$0xff]
      %v168 = vld [vmem:[%s1 + $0x8] sm:$0xff]
      %v169 = vld [vmem:[%s1 + $0x10] sm:$0xff]
      %v170 = vld [vmem:[%s1 + $0x18] sm:$0xff]
      %v171 = vld [vmem:[%s1 + $0x20] sm:$0xff]
      %v172 = vld [vmem:[%s1 + $0x28] sm:$0xff]
      %v173 = vld [vmem:[%s1 + $0x30] sm:$0xff]
      %v174 = vld [vmem:[%s1 + $0x38] sm:$0xff]
      %v175 = vld [vmem:[%s2] sm:$0x1]
      %v177 = vlaneseq
      %v178 = vshrl.u32 %v177, 7
      %v179 = vsub.s32 0, %v178
      %v180 = vrot.slane %v175, %v179
      %vm182 = vcmask 523264
      %v184 = vsel %vm182, %v166, 0
      %186 = vmatprep.subr.mxu0 0.0
      %187 = vmatpush1.msra.mxu0 %v167
      %188 = vmatprep.subr.mxu0 0.0
      %189 = vmatpush1.msra.mxu0 %v168
      %190 = vmatprep.subr.mxu0 0.0
      %191 = vmatpush1.msra.mxu0 %v169
      %192 = vmatprep.subr.mxu0 0.0
      %193 = vmatpush1.msra.mxu0 %v170
      %194 = vmatprep.subr.mxu0 0.0
      %195 = vmatpush1.msra.mxu0 %v171
      %196 = vmatprep.subr.mxu0 0.0
      %197 = vmatpush1.msra.mxu0 %v172
      %198 = vmatprep.subr.mxu0 0.0
      %199 = vmatpush1.msra.mxu0 %v173
      %200 = vmatprep.subr.mxu0 0.0
      %201 = vmatpush1.msra.mxu0 %v174
      %202 = vmatprep.subr.mxu0 0.0
      %203 = vmatpush1.msra.mxu0 0.0
      %204 = vmatprep.subr.mxu0 0.0
      %205 = vmatpush1.msra.mxu0 0.0
      %206 = vmatprep.subr.mxu0 0.0
      %207 = vmatpush1.msra.mxu0 0.0
      %208 = vmatprep.subr.mxu0 0.0
      %209 = vmatpush1.msra.mxu0 0.0
      %210 = vmatprep.subr.mxu0 0.0
      %211 = vmatpush1.msra.mxu0 0.0
      %212 = vmatprep.subr.mxu0 0.0
      %213 = vmatpush1.msra.mxu0 0.0
      %214 = vmatprep.subr.mxu0 0.0
      %215 = vmatpush1.msra.mxu0 0.0
      %216 = vmatprep.subr.mxu0 0.0
      %217 = vmatpush1.msra.mxu0 0.0
      %218 = vmatprep.subr.mxu0 0.0
      %219 = vmatpush1.msra.mxu0 0.0
      %220 = vmatprep.subr.mxu0 0.0
      %221 = vmatpush1.msra.mxu0 0.0
      %222 = vmatprep.subr.mxu0 0.0
      %223 = vmatpush1.msra.mxu0 0.0
      %224 = vmatprep.subr.mxu0 0.0
      %225 = vmatpush1.msra.mxu0 0.0
      %226 = vmatprep.subr.mxu0 0.0
      %227 = vmatpush1.msra.mxu0 0.0
      %228 = vmatprep.subr.mxu0 0.0
      %229 = vmatpush1.msra.mxu0 0.0
      %230 = vmatprep.subr.mxu0 0.0
      %231 = vmatpush1.msra.mxu0 0.0
      %232 = vmatprep.subr.mxu0 0.0
      %233 = vmatpush1.msra.mxu0 0.0
      %234 = vmatprep.subr.mxu0 0.0
      %235 = vmatpush1.msra.mxu0 0.0
      %236 = vmatprep.subr.mxu0 0.0
      %237 = vmatpush1.msra.mxu0 0.0
      %238 = vmatprep.subr.mxu0 0.0
      %239 = vmatpush1.msra.mxu0 0.0
      %240 = vmatprep.subr.mxu0 0.0
      %241 = vmatpush1.msra.mxu0 0.0
      %242 = vmatprep.subr.mxu0 0.0
      %243 = vmatpush1.msra.mxu0 0.0
      %244 = vmatprep.subr.mxu0 0.0
      %245 = vmatpush1.msra.mxu0 0.0
      %246 = vmatprep.subr.mxu0 0.0
      %247 = vmatpush1.msra.mxu0 0.0
      %248 = vmatprep.subr.mxu0 0.0
      %249 = vmatpush1.msra.mxu0 0.0
      %250 = vmatprep.mubr.f32.mxu0 0.0
      %251 = vmatmul.mubr.f32.gmra.mrb[0].mxu0 %v184
      %v252 = vpop.f32.mrb[0].mxu0
      %v253 = vadd.f32 %v180, %v252
      %v254 = vpop.f32.mrb[0].mxu0
      %255 = vdwg.mxu0
      %v256 = vmax.f32 %v253, 0.0
      %257 = vst [vmem:[%s165] sm:$0xff] %v256
      %p258 = scmp.lt.s32.totalorder %s14, 1
      %s259 = scalar_select %p258, %s14, 1
      %s260 = smul.addr %s259, 8
      %s261 = scalar_lea.vmem %s3, %s260
      // Predicated region
      $region33: #{a_call__.9} parent=31 // pred_check
        %p262 = pneg %p100
      $region34: #{a_call__.9} parent=31 // pred_check_branch
        %264 = sbr.rel (%p262) target = $region36
      $region35: #{a_call__.9} parent=31 // pred_region
        _
      $region36: #{a_call__.9} parent=31 // pred_fallthru
        _
    $region32: #{a_call__.9} parent=5 // pred_fallthru
      _
    %p265 = scmp.le.s32.totalorder 2, %s9
    // Predicated region
    $region37: #{a_call__.9} parent=5 // pred_check
      %p266 = pneg %p265
    $region38: #{a_call__.9} parent=5 // pred_check_branch
      %268 = sbr.rel (%p266) target = $region40
    $region39: #{a_call__.9} parent=5 // pred_region
      %s269 = ssub.s32 %s9, 2
      // Predicated region
      $region41: #{a_call__.9} parent=39 // pred_check
        %p270 = pneg %p106
      $region42: #{a_call__.9} parent=39 // pred_check_branch
        %272 = sbr.rel (%p270) target = $region44
      $region43: #{a_call__.9} parent=39 // pred_region
        %p273 = scmp.lt.s32.totalorder %s15, 1
        %s274 = scalar_select %p273, %s15, 1
        %s275 = smul.addr %s274, 8
        %s276 = scalar_lea.vmem %s3, %s275
      $region44: #{a_call__.9} parent=39 // pred_fallthru
        _
    $region40: #{a_call__.9} parent=5 // pred_fallthru
      _
  $region6: #{a_call__.9} parent=0 // loop_footer
    %s13 = sadd.s32 1, %s9
  $region7: #{a_call__.9} parent=0 // loop_footer_branch
    %8 = sbr.rel target = $region3
  $region8: #{a_call__.9} parent=0 // loop_exit
    _

// kernel: a_call__.8
$region0: #{a_call__.8}
  #allocation0 [shape = 'u32[]', space=smem, size = 0x4, offset = 0x4, fixed_abs, tag = 'smem constant byte address 0x4 - core index']
  #allocation1 [shape = 'u32[144,128]{1,0:T(1,128)}', space=vmem, size = 0x12000, scoped, tag = 'internal scratch']
  %s0 = inlined_call_operand.vmem [shape: f32[16,288], index: 0, kind: input, shape index: {}]
  %s1 = inlined_call_operand.vmem [shape: f32[288,64], index: 1, kind: input, shape index: {}]
  %s2 = inlined_call_operand.vmem [shape: f32[1,64], index: 2, kind: input, shape index: {}]
  %s3 = inlined_call_operand.vmem [shape: f32[16,64], index: 3, kind: output, shape index: {}]
  %s4 = sld [smem:[#allocation0]]
  $region45: #{a_call__.8} parent=0
    _
  %s6 = ssub.s32 1, %s4
  %s7 = scalar_select 0, %s6, %s4
  loop: start=0, step=1, limit=4
  $region2: #{a_call__.8} parent=0 // loop_pre_header
    _
  $region3: #{a_call__.8} parent=0 // loop_header
    %s9 = sphi 0, %s13
    %p10 = scmp.ge.s32.totalorder %s9, 4
    %s19 = sphi 0, %s21
    %s22 = sphi 0, %s19
    %s23 = sphi 0, %s22
    %s39 = sphi 0, %s23
    %s43 = sphi 0, %s43
    %s45 = sphi 0, %s43
    %s46 = sphi 0, %s45
    %s60 = sphi 0, %s46
    %s64 = sphi 0, %s64
    %s66 = sphi 0, %s64
    %s67 = sphi 0, %s66
    %s81 = sphi 0, %s67
    %s87 = sphi 0, %s89
    %s90 = sphi 0, %s87
    %s91 = sphi 0, %s90
    %s107 = sphi 0, %s91
  $region4: #{a_call__.8} parent=0 // loop_header_branch
    %12 = sbr.rel (%p10) target = $region8
  $region5: #{a_call__.8} parent=0 // loop_body
    %s14 = ssub.s32 %s9, 1
    %s15 = ssub.s32 %s9, 2
    %s16 = sadd.s32 %s9, 1
    %s17 = ssub.s32 %s9, %s16
    %p18 = scmp.eq.s32.totalorder %s17, 0
    %s20 = sadd.s32 %s19, 1
    %s21 = scalar_select %p18, %s19, %s20
    %p24 = pneg %p18
    %p25 = scmp.eq.s32.totalorder %s9, 1
    %p26 = por %p24, %p25
    %p27 = scmp.ne.s32.totalorder %s19, %s22
    %p28 = scmp.eq.s32.totalorder %s9, 0
    %p29 = por %p27, %p28
    %p30 = scmp.ne.s32.totalorder %s19, %s22
    %p31 = scmp.eq.s32.totalorder %s14, 1
    %p32 = por %p30, %p31
    %p33 = scmp.ne.s32.totalorder %s22, %s23
    %p34 = scmp.eq.s32.totalorder %s14, 0
    %p35 = por %p33, %p34
    %p36 = scmp.ne.s32.totalorder %s22, %s23
    %p37 = scmp.eq.s32.totalorder %s15, 1
    %p38 = por %p36, %p37
    %p40 = scmp.ne.s32.totalorder %s23, %s39
    %p41 = scmp.eq.s32.totalorder %s15, 0
    %p42 = por %p40, %p41
    %s44 = sadd.s32 %s43, 1
    %p47 = scmp.eq.s32.totalorder %s9, 1
    %p48 = scmp.ne.s32.totalorder %s43, %s45
    %p49 = scmp.eq.s32.totalorder %s9, 0
    %p50 = por %p48, %p49
    %p51 = scmp.ne.s32.totalorder %s43, %s45
    %p52 = scmp.eq.s32.totalorder %s14, 1
    %p53 = por %p51, %p52
    %p54 = scmp.ne.s32.totalorder %s45, %s46
    %p55 = scmp.eq.s32.totalorder %s14, 0
    %p56 = por %p54, %p55
    %p57 = scmp.ne.s32.totalorder %s45, %s46
    %p58 = scmp.eq.s32.totalorder %s15, 1
    %p59 = por %p57, %p58
    %p61 = scmp.ne.s32.totalorder %s46, %s60
    %p62 = scmp.eq.s32.totalorder %s15, 0
    %p63 = por %p61, %p62
    %s65 = sadd.s32 %s64, 1
    %p68 = scmp.eq.s32.totalorder %s9, 1
    %p69 = scmp.ne.s32.totalorder %s64, %s66
    %p70 = scmp.eq.s32.totalorder %s9, 0
    %p71 = por %p69, %p70
    %p72 = scmp.ne.s32.totalorder %s64, %s66
    %p73 = scmp.eq.s32.totalorder %s14, 1
    %p74 = por %p72, %p73
    %p75 = scmp.ne.s32.totalorder %s66, %s67
    %p76 = scmp.eq.s32.totalorder %s14, 0
    %p77 = por %p75, %p76
    %p78 = scmp.ne.s32.totalorder %s66, %s67
    %p79 = scmp.eq.s32.totalorder %s15, 1
    %p80 = por %p78, %p79
    %p82 = scmp.ne.s32.totalorder %s67, %s81
    %p83 = scmp.eq.s32.totalorder %s15, 0
    %p84 = por %p82, %p83
    %s85 = ssub.s32 %s9, %s16
    %p86 = scmp.eq.s32.totalorder %s85, 0
    %s88 = sadd.s32 %s87, 1
    %s89 = scalar_select %p86, %s87, %s88
    %p92 = pneg %p86
    %p93 = scmp.eq.s32.totalorder %s9, 1
    %p94 = por %p92, %p93
    %p95 = scmp.ne.s32.totalorder %s87, %s90
    %p96 = scmp.eq.s32.totalorder %s9, 0
    %p97 = por %p95, %p96
    %p98 = scmp.ne.s32.totalorder %s87, %s90
    %p99 = scmp.eq.s32.totalorder %s14, 1
    %p100 = por %p98, %p99
    %p101 = scmp.ne.s32.totalorder %s90, %s91
    %p102 = scmp.eq.s32.totalorder %s14, 0
    %p103 = por %p101, %p102
    %p104 = scmp.ne.s32.totalorder %s90, %s91
    %p105 = scmp.eq.s32.totalorder %s15, 1
    %p106 = por %p104, %p105
    %p108 = scmp.ne.s32.totalorder %s91, %s107
    %p109 = scmp.eq.s32.totalorder %s15, 0
    %p110 = por %p108, %p109
    %p111 = scmp.le.s32.totalorder 1, %s9
    %p112 = scmp.lt.s32.totalorder %s9, 3
    %p113 = pnand %p111, %p112
    %p114 = pneg %p113
    // Predicated region
    $region9: #{a_call__.8} parent=5 // pred_check
      _
    $region10: #{a_call__.8} parent=5 // pred_check_branch
      %116 = sbr.rel (%p113) target = $region12
    $region11: #{a_call__.8} parent=5 // pred_region
      %s117 = ssub.s32 %s9, 1
      // Predicated region
      $region13: #{a_call__.8} parent=11 // pred_check
        %p118 = pneg %p56
      $region14: #{a_call__.8} parent=11 // pred_check_branch
        %120 = sbr.rel (%p118) target = $region16
      $region15: #{a_call__.8} parent=11 // pred_region
        _
      $region16: #{a_call__.8} parent=11 // pred_fallthru
        _
      // Predicated region
      $region17: #{a_call__.8} parent=11 // pred_check
        %p121 = pneg %p77
      $region18: #{a_call__.8} parent=11 // pred_check_branch
        %123 = sbr.rel (%p121) target = $region20
      $region19: #{a_call__.8} parent=11 // pred_region
        _
      $region20: #{a_call__.8} parent=11 // pred_fallthru
        _
    $region12: #{a_call__.8} parent=5 // pred_fallthru
      _
    %p124 = scmp.lt.s32.totalorder %s9, 2
    // Predicated region
    $region21: #{a_call__.8} parent=5 // pred_check
      %p125 = pneg %p124
    $region22: #{a_call__.8} parent=5 // pred_check_branch
      %127 = sbr.rel (%p125) target = $region24
    $region23: #{a_call__.8} parent=5 // pred_region
      // Predicated region
      $region25: #{a_call__.8} parent=23 // pred_check
        %p128 = pneg %p29
      $region26: #{a_call__.8} parent=23 // pred_check_branch
        %130 = sbr.rel (%p128) target = $region28
      $region27: #{a_call__.8} parent=23 // pred_region
        %p131 = scmp.lt.s32.totalorder %s9, 1
        %s132 = scalar_select %p131, %s9, 1
        %s133 = smul.addr %s132, 3
        %s134 = smul.addr %s133, 8
        %s135 = scalar_lea.vmem %s0, %s134
      $region28: #{a_call__.8} parent=23 // pred_fallthru
        _
    $region24: #{a_call__.8} parent=5 // pred_fallthru
      _
    %p136 = scmp.le.s32.totalorder 1, %s9
    %p137 = scmp.lt.s32.totalorder %s9, 3
    %p138 = pnand %p136, %p137
    %p139 = pneg %p138
    // Predicated region
    $region29: #{a_call__.8} parent=5 // pred_check
      _
    $region30: #{a_call__.8} parent=5 // pred_check_branch
      %141 = sbr.rel (%p138) target = $region32
    $region31: #{a_call__.8} parent=5 // pred_region
      %s142 = ssub.s32 %s9, 1
      %p143 = scmp.lt.s32.totalorder %s14, 1
      %s144 = scalar_select %p143, %s14, 1
      %s145 = smul.addr %s144, 3
      %s146 = smul.addr %s145, 8
      %s147 = scalar_lea.vmem %s0, %s146
      %p148 = pneg %p35
      %p149 = pneg %p32
      %p150 = pneg %p56
      %p151 = pneg %p53
      %p152 = pneg %p77
      %p153 = pneg %p74
      %p154 = pneg %p103
      %p155 = pneg %p100
      %p156 = scmp.lt.s32.totalorder %s14, 1
      %s157 = scalar_select %p156, %s14, 1
      %s158 = smul.addr %s157, 8
      %s159 = scalar_lea.vmem %s3, %s158
      %p160 = scmp.lt.s32.totalorder %s14, 1
      %s161 = scalar_select %p160, %s14, 1
      %s162 = smul.addr %s161, 3
      %s163 = smul.addr %s162, 8
      %s164 = scalar_lea.vmem %s0, %s163
      %p165 = scmp.lt.s32.totalorder %s14, 1
      %s166 = scalar_select %p165, %s14, 1
      %s167 = smul.addr %s166, 8
      %s168 = scalar_lea.vmem %s3, %s167
      %v169 = vld [vmem:[%s164] sm:$0xff]
      %v170 = vld [vmem:[%s164 + $0x8] sm:$0xff]
      %v171 = vld [vmem:[%s164 + $0x10] sm:$0xff]
      %v172 = vld [vmem:[%s1] sm:$0xff]
      %v173 = vld [vmem:[%s1 + $0x8] sm:$0xff]
      %v174 = vld [vmem:[%s1 + $0x10] sm:$0xff]
      %v175 = vld [vmem:[%s1 + $0x18] sm:$0xff]
      %v176 = vld [vmem:[%s1 + $0x20] sm:$0xff]
      %v177 = vld [vmem:[%s1 + $0x28] sm:$0xff]
      %v178 = vld [vmem:[%s1 + $0x30] sm:$0xff]
      %v179 = vld [vmem:[%s1 + $0x38] sm:$0xff]
      %v180 = vld [vmem:[%s1 + $0x40] sm:$0xff]
      %v181 = vld [vmem:[%s1 + $0x48] sm:$0xff]
      %v182 = vld [vmem:[%s1 + $0x50] sm:$0xff]
      %v183 = vld [vmem:[%s1 + $0x58] sm:$0xff]
      %v184 = vld [vmem:[%s1 + $0x60] sm:$0xff]
      %v185 = vld [vmem:[%s1 + $0x68] sm:$0xff]
      %v186 = vld [vmem:[%s1 + $0x70] sm:$0xff]
      %v187 = vld [vmem:[%s1 + $0x78] sm:$0xff]
      %v188 = vld [vmem:[%s1 + $0x80] sm:$0xff]
      %v189 = vld [vmem:[%s1 + $0x88] sm:$0xff]
      %v190 = vld [vmem:[%s1 + $0x90] sm:$0xff]
      %v191 = vld [vmem:[%s1 + $0x98] sm:$0xff]
      %v192 = vld [vmem:[%s1 + $0xa0] sm:$0xff]
      %v193 = vld [vmem:[%s1 + $0xa8] sm:$0xff]
      %v194 = vld [vmem:[%s1 + $0xb0] sm:$0xff]
      %v195 = vld [vmem:[%s1 + $0xb8] sm:$0xff]
      %v196 = vld [vmem:[%s1 + $0xc0] sm:$0xff]
      %v197 = vld [vmem:[%s1 + $0xc8] sm:$0xff]
      %v198 = vld [vmem:[%s1 + $0xd0] sm:$0xff]
      %v199 = vld [vmem:[%s1 + $0xd8] sm:$0xff]
      %v200 = vld [vmem:[%s1 + $0xe0] sm:$0xff]
      %v201 = vld [vmem:[%s1 + $0xe8] sm:$0xff]
      %v202 = vld [vmem:[%s1 + $0xf0] sm:$0xff]
      %v203 = vld [vmem:[%s1 + $0xf8] sm:$0xff]
      %v204 = vld [vmem:[%s1 + $0x100] sm:$0xff]
      %v205 = vld [vmem:[%s1 + $0x108] sm:$0xff]
      %v206 = vld [vmem:[%s1 + $0x110] sm:$0xff]
      %v207 = vld [vmem:[%s1 + $0x118] sm:$0xff]
      %v208 = vld [vmem:[%s2] sm:$0x1]
      %v210 = vlaneseq
      %v211 = vshrl.u32 %v210, 7
      %v212 = vsub.s32 0, %v211
      %v213 = vrot.slane %v208, %v212
      %vm215 = vcmask 261120
      %v217 = vsel %vm215, %v171, 0
      %219 = vmatprep.subr.mxu0 0.0
      %220 = vmatpush1.msra.mxu0 %v172
      %221 = vmatprep.subr.mxu0 0.0
      %222 = vmatpush1.msra.mxu0 %v173
      %223 = vmatprep.subr.mxu0 0.0
      %224 = vmatpush1.msra.mxu0 %v174
      %225 = vmatprep.subr.mxu0 0.0
      %226 = vmatpush1.msra.mxu0 %v175
      %227 = vmatprep.subr.mxu0 0.0
      %228 = vmatpush1.msra.mxu0 %v176
      %229 = vmatprep.subr.mxu0 0.0
      %230 = vmatpush1.msra.mxu0 %v177
      %231 = vmatprep.subr.mxu0 0.0
      %232 = vmatpush1.msra.mxu0 %v178
      %233 = vmatprep.subr.mxu0 0.0
      %234 = vmatpush1.msra.mxu0 %v179
      %235 = vmatprep.subr.mxu0 0.0
      %236 = vmatpush1.msra.mxu0 %v180
      %237 = vmatprep.subr.mxu0 0.0
      %238 = vmatpush1.msra.mxu0 %v181
      %239 = vmatprep.subr.mxu0 0.0
      %240 = vmatpush1.msra.mxu0 %v182
      %241 = vmatprep.subr.mxu0 0.0
      %242 = vmatpush1.msra.mxu0 %v183
      %243 = vmatprep.subr.mxu0 0.0
      %244 = vmatpush1.msra.mxu0 %v184
      %245 = vmatprep.subr.mxu0 0.0
      %246 = vmatpush1.msra.mxu0 %v185
      %247 = vmatprep.subr.mxu0 0.0
      %248 = vmatpush1.msra.mxu0 %v186
      %249 = vmatprep.subr.mxu0 0.0
      %250 = vmatpush1.msra.mxu0 %v187
      %251 = vmatprep.subr.mxu0 0.0
      %252 = vmatpush1.msra.mxu0 %v188
      %253 = vmatprep.subr.mxu0 0.0
      %254 = vmatpush1.msra.mxu0 %v189
      %255 = vmatprep.subr.mxu0 0.0
      %256 = vmatpush1.msra.mxu0 %v190
      %257 = vmatprep.subr.mxu0 0.0
      %258 = vmatpush1.msra.mxu0 %v191
      %259 = vmatprep.subr.mxu0 0.0
      %260 = vmatpush1.msra.mxu0 %v192
      %261 = vmatprep.subr.mxu0 0.0
      %262 = vmatpush1.msra.mxu0 %v193
      %263 = vmatprep.subr.mxu0 0.0
      %264 = vmatpush1.msra.mxu0 %v194
      %265 = vmatprep.subr.mxu0 0.0
      %266 = vmatpush1.msra.mxu0 %v195
      %267 = vmatprep.subr.mxu0 0.0
      %268 = vmatpush1.msra.mxu0 %v196
      %269 = vmatprep.subr.mxu0 0.0
      %270 = vmatpush1.msra.mxu0 %v197
      %271 = vmatprep.subr.mxu0 0.0
      %272 = vmatpush1.msra.mxu0 %v198
      %273 = vmatprep.subr.mxu0 0.0
      %274 = vmatpush1.msra.mxu0 %v199
      %275 = vmatprep.subr.mxu0 0.0
      %276 = vmatpush1.msra.mxu0 %v200
      %277 = vmatprep.subr.mxu0 0.0
      %278 = vmatpush1.msra.mxu0 %v201
      %279 = vmatprep.subr.mxu0 0.0
      %280 = vmatpush1.msra.mxu0 %v202
      %281 = vmatprep.subr.mxu0 0.0
      %282 = vmatpush1.msra.mxu0 %v203
      %283 = vmatprep.mubr.f32.mxu0 %v170
      %284 = vmatmul.mubr.f32.gmra.mrb[0].mxu0 %v169
      %v285 = vpop.f32.mrb[0].mxu0
      %v286 = vadd.f32 %v213, %v285
      %v287 = vpop.f32.mrb[0].mxu0
      %288 = vdwg.mxu0
      %289 = vmatprep.subr.mxu0 0.0
      %290 = vmatpush1.msra.mxu0 %v204
      %291 = vmatprep.subr.mxu0 0.0
      %292 = vmatpush1.msra.mxu0 %v205
      %293 = vmatprep.subr.mxu0 0.0
      %294 = vmatpush1.msra.mxu0 %v206
      %295 = vmatprep.subr.mxu0 0.0
      %296 = vmatpush1.msra.mxu0 %v207
      %297 = vmatprep.subr.mxu0 0.0
      %298 = vmatpush1.msra.mxu0 0.0
      %299 = vmatprep.subr.mxu0 0.0
      %300 = vmatpush1.msra.mxu0 0.0
      %301 = vmatprep.subr.mxu0 0.0
      %302 = vmatpush1.msra.mxu0 0.0
      %303 = vmatprep.subr.mxu0 0.0
      %304 = vmatpush1.msra.mxu0 0.0
      %305 = vmatprep.subr.mxu0 0.0
      %306 = vmatpush1.msra.mxu0 0.0
      %307 = vmatprep.subr.mxu0 0.0
      %308 = vmatpush1.msra.mxu0 0.0
      %309 = vmatprep.subr.mxu0 0.0
      %310 = vmatpush1.msra.mxu0 0.0
      %311 = vmatprep.subr.mxu0 0.0
      %312 = vmatpush1.msra.mxu0 0.0
      %313 = vmatprep.subr.mxu0 0.0
      %314 = vmatpush1.msra.mxu0 0.0
      %315 = vmatprep.subr.mxu0 0.0
      %316 = vmatpush1.msra.mxu0 0.0
      %317 = vmatprep.subr.mxu0 0.0
      %318 = vmatpush1.msra.mxu0 0.0
      %319 = vmatprep.subr.mxu0 0.0
      %320 = vmatpush1.msra.mxu0 0.0
      %321 = vmatprep.subr.mxu0 0.0
      %322 = vmatpush1.msra.mxu0 0.0
      %323 = vmatprep.subr.mxu0 0.0
      %324 = vmatpush1.msra.mxu0 0.0
      %325 = vmatprep.subr.mxu0 0.0
      %326 = vmatpush1.msra.mxu0 0.0
      %327 = vmatprep.subr.mxu0 0.0
      %328 = vmatpush1.msra.mxu0 0.0
      %329 = vmatprep.subr.mxu0 0.0
      %330 = vmatpush1.msra.mxu0 0.0
      %331 = vmatprep.subr.mxu0 0.0
      %332 = vmatpush1.msra.mxu0 0.0
      %333 = vmatprep.subr.mxu0 0.0
      %334 = vmatpush1.msra.mxu0 0.0
      %335 = vmatprep.subr.mxu0 0.0
      %336 = vmatpush1.msra.mxu0 0.0
      %337 = vmatprep.subr.mxu0 0.0
      %338 = vmatpush1.msra.mxu0 0.0
      %339 = vmatprep.subr.mxu0 0.0
      %340 = vmatpush1.msra.mxu0 0.0
      %341 = vmatprep.subr.mxu0 0.0
      %342 = vmatpush1.msra.mxu0 0.0
      %343 = vmatprep.subr.mxu0 0.0
      %344 = vmatpush1.msra.mxu0 0.0
      %345 = vmatprep.subr.mxu0 0.0
      %346 = vmatpush1.msra.mxu0 0.0
      %347 = vmatprep.subr.mxu0 0.0
      %348 = vmatpush1.msra.mxu0 0.0
      %349 = vmatprep.subr.mxu0 0.0
      %350 = vmatpush1.msra.mxu0 0.0
      %351 = vmatprep.subr.mxu0 0.0
      %352 = vmatpush1.msra.mxu0 0.0
      %353 = vmatprep.mubr.f32.mxu0 0.0
      %354 = vmatmul.mubr.f32.gmra.mrb[0].mxu0 %v217
      %v355 = vpop.f32.mrb[0].mxu0
      %v356 = vadd.f32 %v286, %v355
      %v357 = vpop.f32.mrb[0].mxu0
      %358 = vdwg.mxu0
      %v359 = vmax.f32 %v356, 0.0
      %vm360 = vcmask 523264
      %361 = vst.msk [vmem:[%s168] sm:$0xff] %vm360, %v359
      %p362 = scmp.lt.s32.totalorder %s14, 1
      %s363 = scalar_select %p362, %s14, 1
      %s364 = smul.addr %s363, 8
      %s365 = scalar_lea.vmem %s3, %s364
      // Predicated region
      $region33: #{a_call__.8} parent=31 // pred_check
        %p366 = pneg %p100
      $region34: #{a_call__.8} parent=31 // pred_check_branch
        %368 = sbr.rel (%p366) target = $region36
      $region35: #{a_call__.8} parent=31 // pred_region
        _
      $region36: #{a_call__.8} parent=31 // pred_fallthru
        _
    $region32: #{a_call__.8} parent=5 // pred_fallthru
      _
    %p369 = scmp.le.s32.totalorder 2, %s9
    // Predicated region
    $region37: #{a_call__.8} parent=5 // pred_check
      %p370 = pneg %p369
    $region38: #{a_call__.8} parent=5 // pred_check_branch
      %372 = sbr.rel (%p370) target = $region40
    $region39: #{a_call__.8} parent=5 // pred_region
      %s373 = ssub.s32 %s9, 2
      // Predicated region
      $region41: #{a_call__.8} parent=39 // pred_check
        %p374 = pneg %p106
      $region42: #{a_call__.8} parent=39 // pred_check_branch
        %376 = sbr.rel (%p374) target = $region44
      $region43: #{a_call__.8} parent=39 // pred_region
        %p377 = scmp.lt.s32.totalorder %s15, 1
        %s378 = scalar_select %p377, %s15, 1
        %s379 = smul.addr %s378, 8
        %s380 = scalar_lea.vmem %s3, %s379
      $region44: #{a_call__.8} parent=39 // pred_fallthru
        _
    $region40: #{a_call__.8} parent=5 // pred_fallthru
      _
  $region6: #{a_call__.8} parent=0 // loop_footer
    %s13 = sadd.s32 1, %s9
  $region7: #{a_call__.8} parent=0 // loop_footer_branch
    %8 = sbr.rel target = $region3
  $region8: #{a_call__.8} parent=0 // loop_exit
    _

// kernel: a_call__.10
$region0: #{a_call__.10}
  #allocation0 [shape = 'u32[]', space=smem, size = 0x4, offset = 0x4, fixed_abs, tag = 'smem constant byte address 0x4 - core index']
  #allocation1 [shape = 'u32[144,128]{1,0:T(1,128)}', space=vmem, size = 0x12000, scoped, tag = 'internal scratch']
  %s0 = inlined_call_operand.vmem [shape: f32[64,32], index: 0, kind: input, shape index: {}]
  %s1 = inlined_call_operand.vmem [shape: f32[32,8], index: 1, kind: input, shape index: {}]
  %s2 = inlined_call_operand.vmem [shape: f32[1,8], index: 2, kind: input, shape index: {}]
  %s3 = inlined_call_operand.vmem [shape: f32[64,8], index: 3, kind: output, shape index: {}]
  %s4 = sld [smem:[#allocation0]]
  $region45: #{a_call__.10} parent=0
    _
  %s6 = ssub.s32 1, %s4
  %s7 = scalar_select 0, %s6, %s4
  loop: start=0, step=1, limit=4
  $region2: #{a_call__.10} parent=0 // loop_pre_header
    _
  $region3: #{a_call__.10} parent=0 // loop_header
    %s9 = sphi 0, %s13
    %p10 = scmp.ge.s32.totalorder %s9, 4
    %s19 = sphi 0, %s21
    %s22 = sphi 0, %s19
    %s23 = sphi 0, %s22
    %s39 = sphi 0, %s23
    %s43 = sphi 0, %s43
    %s45 = sphi 0, %s43
    %s46 = sphi 0, %s45
    %s60 = sphi 0, %s46
    %s64 = sphi 0, %s64
    %s66 = sphi 0, %s64
    %s67 = sphi 0, %s66
    %s81 = sphi 0, %s67
    %s87 = sphi 0, %s89
    %s90 = sphi 0, %s87
    %s91 = sphi 0, %s90
    %s107 = sphi 0, %s91
  $region4: #{a_call__.10} parent=0 // loop_header_branch
    %12 = sbr.rel (%p10) target = $region8
  $region5: #{a_call__.10} parent=0 // loop_body
    %s14 = ssub.s32 %s9, 1
    %s15 = ssub.s32 %s9, 2
    %s16 = sadd.s32 %s9, 1
    %s17 = ssub.s32 %s9, %s16
    %p18 = scmp.eq.s32.totalorder %s17, 0
    %s20 = sadd.s32 %s19, 1
    %s21 = scalar_select %p18, %s19, %s20
    %p24 = pneg %p18
    %p25 = scmp.eq.s32.totalorder %s9, 1
    %p26 = por %p24, %p25
    %p27 = scmp.ne.s32.totalorder %s19, %s22
    %p28 = scmp.eq.s32.totalorder %s9, 0
    %p29 = por %p27, %p28
    %p30 = scmp.ne.s32.totalorder %s19, %s22
    %p31 = scmp.eq.s32.totalorder %s14, 1
    %p32 = por %p30, %p31
    %p33 = scmp.ne.s32.totalorder %s22, %s23
    %p34 = scmp.eq.s32.totalorder %s14, 0
    %p35 = por %p33, %p34
    %p36 = scmp.ne.s32.totalorder %s22, %s23
    %p37 = scmp.eq.s32.totalorder %s15, 1
    %p38 = por %p36, %p37
    %p40 = scmp.ne.s32.totalorder %s23, %s39
    %p41 = scmp.eq.s32.totalorder %s15, 0
    %p42 = por %p40, %p41
    %s44 = sadd.s32 %s43, 1
    %p47 = scmp.eq.s32.totalorder %s9, 1
    %p48 = scmp.ne.s32.totalorder %s43, %s45
    %p49 = scmp.eq.s32.totalorder %s9, 0
    %p50 = por %p48, %p49
    %p51 = scmp.ne.s32.totalorder %s43, %s45
    %p52 = scmp.eq.s32.totalorder %s14, 1
    %p53 = por %p51, %p52
    %p54 = scmp.ne.s32.totalorder %s45, %s46
    %p55 = scmp.eq.s32.totalorder %s14, 0
    %p56 = por %p54, %p55
    %p57 = scmp.ne.s32.totalorder %s45, %s46
    %p58 = scmp.eq.s32.totalorder %s15, 1
    %p59 = por %p57, %p58
    %p61 = scmp.ne.s32.totalorder %s46, %s60
    %p62 = scmp.eq.s32.totalorder %s15, 0
    %p63 = por %p61, %p62
    %s65 = sadd.s32 %s64, 1
    %p68 = scmp.eq.s32.totalorder %s9, 1
    %p69 = scmp.ne.s32.totalorder %s64, %s66
    %p70 = scmp.eq.s32.totalorder %s9, 0
    %p71 = por %p69, %p70
    %p72 = scmp.ne.s32.totalorder %s64, %s66
    %p73 = scmp.eq.s32.totalorder %s14, 1
    %p74 = por %p72, %p73
    %p75 = scmp.ne.s32.totalorder %s66, %s67
    %p76 = scmp.eq.s32.totalorder %s14, 0
    %p77 = por %p75, %p76
    %p78 = scmp.ne.s32.totalorder %s66, %s67
    %p79 = scmp.eq.s32.totalorder %s15, 1
    %p80 = por %p78, %p79
    %p82 = scmp.ne.s32.totalorder %s67, %s81
    %p83 = scmp.eq.s32.totalorder %s15, 0
    %p84 = por %p82, %p83
    %s85 = ssub.s32 %s9, %s16
    %p86 = scmp.eq.s32.totalorder %s85, 0
    %s88 = sadd.s32 %s87, 1
    %s89 = scalar_select %p86, %s87, %s88
    %p92 = pneg %p86
    %p93 = scmp.eq.s32.totalorder %s9, 1
    %p94 = por %p92, %p93
    %p95 = scmp.ne.s32.totalorder %s87, %s90
    %p96 = scmp.eq.s32.totalorder %s9, 0
    %p97 = por %p95, %p96
    %p98 = scmp.ne.s32.totalorder %s87, %s90
    %p99 = scmp.eq.s32.totalorder %s14, 1
    %p100 = por %p98, %p99
    %p101 = scmp.ne.s32.totalorder %s90, %s91
    %p102 = scmp.eq.s32.totalorder %s14, 0
    %p103 = por %p101, %p102
    %p104 = scmp.ne.s32.totalorder %s90, %s91
    %p105 = scmp.eq.s32.totalorder %s15, 1
    %p106 = por %p104, %p105
    %p108 = scmp.ne.s32.totalorder %s91, %s107
    %p109 = scmp.eq.s32.totalorder %s15, 0
    %p110 = por %p108, %p109
    %p111 = scmp.le.s32.totalorder 1, %s9
    %p112 = scmp.lt.s32.totalorder %s9, 3
    %p113 = pnand %p111, %p112
    %p114 = pneg %p113
    // Predicated region
    $region9: #{a_call__.10} parent=5 // pred_check
      _
    $region10: #{a_call__.10} parent=5 // pred_check_branch
      %116 = sbr.rel (%p113) target = $region12
    $region11: #{a_call__.10} parent=5 // pred_region
      %s117 = ssub.s32 %s9, 1
      // Predicated region
      $region13: #{a_call__.10} parent=11 // pred_check
        %p118 = pneg %p56
      $region14: #{a_call__.10} parent=11 // pred_check_branch
        %120 = sbr.rel (%p118) target = $region16
      $region15: #{a_call__.10} parent=11 // pred_region
        _
      $region16: #{a_call__.10} parent=11 // pred_fallthru
        _
      // Predicated region
      $region17: #{a_call__.10} parent=11 // pred_check
        %p121 = pneg %p77
      $region18: #{a_call__.10} parent=11 // pred_check_branch
        %123 = sbr.rel (%p121) target = $region20
      $region19: #{a_call__.10} parent=11 // pred_region
        _
      $region20: #{a_call__.10} parent=11 // pred_fallthru
        _
    $region12: #{a_call__.10} parent=5 // pred_fallthru
      _
    %p124 = scmp.lt.s32.totalorder %s9, 2
    // Predicated region
    $region21: #{a_call__.10} parent=5 // pred_check
      %p125 = pneg %p124
    $region22: #{a_call__.10} parent=5 // pred_check_branch
      %127 = sbr.rel (%p125) target = $region24
    $region23: #{a_call__.10} parent=5 // pred_region
      // Predicated region
      $region25: #{a_call__.10} parent=23 // pred_check
        %p128 = pneg %p29
      $region26: #{a_call__.10} parent=23 // pred_check_branch
        %130 = sbr.rel (%p128) target = $region28
      $region27: #{a_call__.10} parent=23 // pred_region
        %s131 = smul.u32 4, %s9
        %p132 = scmp.lt.s32.totalorder %s131, 7
        %s133 = scalar_select %p132, %s131, 7
        %s134 = smul.addr %s133, 8
        %s135 = scalar_lea.vmem %s0, %s134
        %s136 = smul.u32 4, %s9
      $region28: #{a_call__.10} parent=23 // pred_fallthru
        _
    $region24: #{a_call__.10} parent=5 // pred_fallthru
      _
    %p137 = scmp.le.s32.totalorder 1, %s9
    %p138 = scmp.lt.s32.totalorder %s9, 3
    %p139 = pnand %p137, %p138
    %p140 = pneg %p139
    // Predicated region
    $region29: #{a_call__.10} parent=5 // pred_check
      _
    $region30: #{a_call__.10} parent=5 // pred_check_branch
      %142 = sbr.rel (%p139) target = $region32
    $region31: #{a_call__.10} parent=5 // pred_region
      %s143 = ssub.s32 %s9, 1
      %s144 = smul.u32 4, %s14
      %p145 = scmp.lt.s32.totalorder %s144, 7
      %s146 = scalar_select %p145, %s144, 7
      %s147 = smul.addr %s146, 8
      %s148 = scalar_lea.vmem %s0, %s147
      %p149 = pneg %p35
      %p150 = pneg %p32
      %p151 = pneg %p56
      %p152 = pneg %p53
      %p153 = pneg %p77
      %p154 = pneg %p74
      %p155 = pneg %p103
      %p156 = pneg %p100
      %s157 = smul.u32 4, %s14
      %p158 = scmp.lt.s32.totalorder %s157, 7
      %s159 = scalar_select %p158, %s157, 7
      %s160 = smul.addr %s159, 8
      %s161 = scalar_lea.vmem %s3, %s160
      %s162 = smul.u32 4, %s14
      %p163 = scmp.lt.s32.totalorder %s162, 7
      %s164 = scalar_select %p163, %s162, 7
      %s165 = smul.addr %s164, 8
      %s166 = scalar_lea.vmem %s0, %s165
      %s167 = smul.u32 4, %s14
      %s168 = smul.u32 4, %s14
      %p169 = scmp.lt.s32.totalorder %s168, 7
      %s170 = scalar_select %p169, %s168, 7
      %s171 = smul.addr %s170, 8
      %s172 = scalar_lea.vmem %s3, %s171
      %s173 = smul.u32 4, %s14
      %v174 = vld [vmem:[%s166] sm:$0xff]
      %v175 = vld [vmem:[%s166 + $0x8] sm:$0xff]
      %v176 = vld [vmem:[%s166 + $0x10] sm:$0xff]
      %v177 = vld [vmem:[%s166 + $0x18] sm:$0xff]
      %v178 = vld [vmem:[%s1] sm:$0xff]
      %v179 = vld [vmem:[%s1 + $0x8] sm:$0xff]
      %v180 = vld [vmem:[%s1 + $0x10] sm:$0xff]
      %v181 = vld [vmem:[%s1 + $0x18] sm:$0xff]
      %v182 = vld [vmem:[%s2] sm:$0x1]
      %v184 = vlaneseq
      %v185 = vshrl.u32 %v184, 7
      %v186 = vsub.s32 0, %v185
      %v187 = vrot.slane %v182, %v186
      %vm189 = vcmask 261120
      %v191 = vsel %vm189, %v174, 0
      %v194 = vsel %vm189, %v175, 0
      %v197 = vsel %vm189, %v176, 0
      %v200 = vsel %vm189, %v177, 0
      %202 = vmatprep.subr.mxu0 0.0
      %203 = vmatpush1.msra.mxu0 %v178
      %204 = vmatprep.subr.mxu0 0.0
      %205 = vmatpush1.msra.mxu0 %v179
      %206 = vmatprep.subr.mxu0 0.0
      %207 = vmatpush1.msra.mxu0 %v180
      %208 = vmatprep.subr.mxu0 0.0
      %209 = vmatpush1.msra.mxu0 %v181
      %210 = vmatprep.subr.mxu0 0.0
      %211 = vmatpush1.msra.mxu0 0.0
      %212 = vmatprep.subr.mxu0 0.0
      %213 = vmatpush1.msra.mxu0 0.0
      %214 = vmatprep.subr.mxu0 0.0
      %215 = vmatpush1.msra.mxu0 0.0
      %216 = vmatprep.subr.mxu0 0.0
      %217 = vmatpush1.msra.mxu0 0.0
      %218 = vmatprep.subr.mxu0 0.0
      %219 = vmatpush1.msra.mxu0 0.0
      %220 = vmatprep.subr.mxu0 0.0
      %221 = vmatpush1.msra.mxu0 0.0
      %222 = vmatprep.subr.mxu0 0.0
      %223 = vmatpush1.msra.mxu0 0.0
      %224 = vmatprep.subr.mxu0 0.0
      %225 = vmatpush1.msra.mxu0 0.0
      %226 = vmatprep.subr.mxu0 0.0
      %227 = vmatpush1.msra.mxu0 0.0
      %228 = vmatprep.subr.mxu0 0.0
      %229 = vmatpush1.msra.mxu0 0.0
      %230 = vmatprep.subr.mxu0 0.0
      %231 = vmatpush1.msra.mxu0 0.0
      %232 = vmatprep.subr.mxu0 0.0
      %233 = vmatpush1.msra.mxu0 0.0
      %234 = vmatprep.subr.mxu0 0.0
      %235 = vmatpush1.msra.mxu0 0.0
      %236 = vmatprep.subr.mxu0 0.0
      %237 = vmatpush1.msra.mxu0 0.0
      %238 = vmatprep.subr.mxu0 0.0
      %239 = vmatpush1.msra.mxu0 0.0
      %240 = vmatprep.subr.mxu0 0.0
      %241 = vmatpush1.msra.mxu0 0.0
      %242 = vmatprep.subr.mxu0 0.0
      %243 = vmatpush1.msra.mxu0 0.0
      %244 = vmatprep.subr.mxu0 0.0
      %245 = vmatpush1.msra.mxu0 0.0
      %246 = vmatprep.subr.mxu0 0.0
      %247 = vmatpush1.msra.mxu0 0.0
      %248 = vmatprep.subr.mxu0 0.0
      %249 = vmatpush1.msra.mxu0 0.0
      %250 = vmatprep.subr.mxu0 0.0
      %251 = vmatpush1.msra.mxu0 0.0
      %252 = vmatprep.subr.mxu0 0.0
      %253 = vmatpush1.msra.mxu0 0.0
      %254 = vmatprep.subr.mxu0 0.0
      %255 = vmatpush1.msra.mxu0 0.0
      %256 = vmatprep.subr.mxu0 0.0
      %257 = vmatpush1.msra.mxu0 0.0
      %258 = vmatprep.subr.mxu0 0.0
      %259 = vmatpush1.msra.mxu0 0.0
      %260 = vmatprep.subr.mxu0 0.0
      %261 = vmatpush1.msra.mxu0 0.0
      %262 = vmatprep.subr.mxu0 0.0
      %263 = vmatpush1.msra.mxu0 0.0
      %264 = vmatprep.subr.mxu0 0.0
      %265 = vmatpush1.msra.mxu0 0.0
      %266 = vmatprep.mubr.f32.mxu0 0.0
      %267 = vmatmul.mubr.f32.gmra.mrb[0].mxu0 %v191
      %v268 = vpop.f32.mrb[0].mxu0
      %v269 = vadd.f32 %v187, %v268
      %v270 = vpop.f32.mrb[0].mxu0
      %271 = vmatprep.mubr.f32.mxu0 0.0
      %272 = vmatmul.mubr.f32.gmra.mrb[0].mxu0 %v194
      %v273 = vpop.f32.mrb[0].mxu0
      %v274 = vadd.f32 %v187, %v273
      %v275 = vpop.f32.mrb[0].mxu0
      %276 = vmatprep.mubr.f32.mxu0 0.0
      %277 = vmatmul.mubr.f32.gmra.mrb[0].mxu0 %v197
      %v278 = vpop.f32.mrb[0].mxu0
      %v279 = vadd.f32 %v187, %v278
      %v280 = vpop.f32.mrb[0].mxu0
      %281 = vmatprep.mubr.f32.mxu0 0.0
      %282 = vmatmul.mubr.f32.gmra.mrb[0].mxu0 %v200
      %v283 = vpop.f32.mrb[0].mxu0
      %v284 = vadd.f32 %v187, %v283
      %v285 = vpop.f32.mrb[0].mxu0
      %286 = vdwg.mxu0
      %vm287 = vcmp.ge.f32.partialorder %v269, 0.0
      %vm288 = vcmp.ge.f32.partialorder %v274, 0.0
      %vm289 = vcmp.ge.f32.partialorder %v279, 0.0
      %vm290 = vcmp.ge.f32.partialorder %v284, 0.0
      %v291 = vmul.f32 %v269, 0.1
      %v292 = vmul.f32 %v274, 0.1
      %v293 = vmul.f32 %v279, 0.1
      %v294 = vmul.f32 %v284, 0.1
      %v295 = vsel %vm287, %v269, %v291
      %v296 = vsel %vm288, %v274, %v292
      %v297 = vsel %vm289, %v279, %v293
      %v298 = vsel %vm290, %v284, %v294
      %vm299 = vcmask 64512
      %300 = vst.msk [vmem:[%s172] sm:$0xff] %vm299, %v295
      %301 = vst.msk [vmem:[%s172 + $0x8] sm:$0xff] %vm299, %v296
      %302 = vst.msk [vmem:[%s172 + $0x10] sm:$0xff] %vm299, %v297
      %303 = vst.msk [vmem:[%s172 + $0x18] sm:$0xff] %vm299, %v298
      %s304 = smul.u32 4, %s14
      %p305 = scmp.lt.s32.totalorder %s304, 7
      %s306 = scalar_select %p305, %s304, 7
      %s307 = smul.addr %s306, 8
      %s308 = scalar_lea.vmem %s3, %s307
      // Predicated region
      $region33: #{a_call__.10} parent=31 // pred_check
        %p309 = pneg %p100
      $region34: #{a_call__.10} parent=31 // pred_check_branch
        %311 = sbr.rel (%p309) target = $region36
      $region35: #{a_call__.10} parent=31 // pred_region
        %s312 = smul.u32 4, %s14
      $region36: #{a_call__.10} parent=31 // pred_fallthru
        _
    $region32: #{a_call__.10} parent=5 // pred_fallthru
      _
    %p313 = scmp.le.s32.totalorder 2, %s9
    // Predicated region
    $region37: #{a_call__.10} parent=5 // pred_check
      %p314 = pneg %p313
    $region38: #{a_call__.10} parent=5 // pred_check_branch
      %316 = sbr.rel (%p314) target = $region40
    $region39: #{a_call__.10} parent=5 // pred_region
      %s317 = ssub.s32 %s9, 2
      // Predicated region
      $region41: #{a_call__.10} parent=39 // pred_check
        %p318 = pneg %p106
      $region42: #{a_call__.10} parent=39 // pred_check_branch
        %320 = sbr.rel (%p318) target = $region44
      $region43: #{a_call__.10} parent=39 // pred_region
        %s321 = smul.u32 4, %s15
        %p322 = scmp.lt.s32.totalorder %s321, 7
        %s323 = scalar_select %p322, %s321, 7
        %s324 = smul.addr %s323, 8
        %s325 = scalar_lea.vmem %s3, %s324
      $region44: #{a_call__.10} parent=39 // pred_fallthru
        _
    $region40: #{a_call__.10} parent=5 // pred_fallthru
      _
  $region6: #{a_call__.10} parent=0 // loop_footer
    %s13 = sadd.s32 1, %s9
  $region7: #{a_call__.10} parent=0 // loop_footer_branch
    %8 = sbr.rel target = $region3
  $region8: #{a_call__.10} parent=0 // loop_exit
    _

// kernel: a_call__.11
$region0: #{a_call__.11}
  #allocation0 [shape = 'u32[]', space=smem, size = 0x4, offset = 0x4, fixed_abs, tag = 'smem constant byte address 0x4 - core index']
  #allocation1 [shape = 'u32[144,128]{1,0:T(1,128)}', space=vmem, size = 0x12000, scoped, tag = 'internal scratch']
  %s0 = inlined_call_operand.vmem [shape: f32[2,256], index: 0, kind: input, shape index: {}]
  %s1 = inlined_call_operand.vmem [shape: f32[128,16], index: 1, kind: input, shape index: {}]
  %s2 = inlined_call_operand.vmem [shape: f32[8,256], index: 2, kind: output, shape index: {}]
  %s3 = sld [smem:[#allocation0]]
  $region41: #{a_call__.11} parent=0
    _
  %s5 = ssub.s32 1, %s3
  %s6 = scalar_select 0, %s5, %s3
  loop: start=0, step=1, limit=4
  $region2: #{a_call__.11} parent=0 // loop_pre_header
    _
  $region3: #{a_call__.11} parent=0 // loop_header
    %s8 = sphi 0, %s12
    %p9 = scmp.ge.s32.totalorder %s8, 4
    %s18 = sphi 0, %s20
    %s21 = sphi 0, %s18
    %s22 = sphi 0, %s21
    %s38 = sphi 0, %s22
    %s42 = sphi 0, %s42
    %s44 = sphi 0, %s42
    %s45 = sphi 0, %s44
    %s59 = sphi 0, %s45
    %s65 = sphi 0, %s67
    %s68 = sphi 0, %s65
    %s69 = sphi 0, %s68
    %s85 = sphi 0, %s69
  $region4: #{a_call__.11} parent=0 // loop_header_branch
    %11 = sbr.rel (%p9) target = $region8
  $region5: #{a_call__.11} parent=0 // loop_body
    %s13 = ssub.s32 %s8, 1
    %s14 = ssub.s32 %s8, 2
    %s15 = sadd.s32 %s8, 1
    %s16 = ssub.s32 %s8, %s15
    %p17 = scmp.eq.s32.totalorder %s16, 0
    %s19 = sadd.s32 %s18, 1
    %s20 = scalar_select %p17, %s18, %s19
    %p23 = pneg %p17
    %p24 = scmp.eq.s32.totalorder %s8, 1
    %p25 = por %p23, %p24
    %p26 = scmp.ne.s32.totalorder %s18, %s21
    %p27 = scmp.eq.s32.totalorder %s8, 0
    %p28 = por %p26, %p27
    %p29 = scmp.ne.s32.totalorder %s18, %s21
    %p30 = scmp.eq.s32.totalorder %s13, 1
    %p31 = por %p29, %p30
    %p32 = scmp.ne.s32.totalorder %s21, %s22
    %p33 = scmp.eq.s32.totalorder %s13, 0
    %p34 = por %p32, %p33
    %p35 = scmp.ne.s32.totalorder %s21, %s22
    %p36 = scmp.eq.s32.totalorder %s14, 1
    %p37 = por %p35, %p36
    %p39 = scmp.ne.s32.totalorder %s22, %s38
    %p40 = scmp.eq.s32.totalorder %s14, 0
    %p41 = por %p39, %p40
    %s43 = sadd.s32 %s42, 1
    %p46 = scmp.eq.s32.totalorder %s8, 1
    %p47 = scmp.ne.s32.totalorder %s42, %s44
    %p48 = scmp.eq.s32.totalorder %s8, 0
    %p49 = por %p47, %p48
    %p50 = scmp.ne.s32.totalorder %s42, %s44
    %p51 = scmp.eq.s32.totalorder %s13, 1
    %p52 = por %p50, %p51
    %p53 = scmp.ne.s32.totalorder %s44, %s45
    %p54 = scmp.eq.s32.totalorder %s13, 0
    %p55 = por %p53, %p54
    %p56 = scmp.ne.s32.totalorder %s44, %s45
    %p57 = scmp.eq.s32.totalorder %s14, 1
    %p58 = por %p56, %p57
    %p60 = scmp.ne.s32.totalorder %s45, %s59
    %p61 = scmp.eq.s32.totalorder %s14, 0
    %p62 = por %p60, %p61
    %s63 = ssub.s32 %s8, %s15
    %p64 = scmp.eq.s32.totalorder %s63, 0
    %s66 = sadd.s32 %s65, 1
    %s67 = scalar_select %p64, %s65, %s66
    %p70 = pneg %p64
    %p71 = scmp.eq.s32.totalorder %s8, 1
    %p72 = por %p70, %p71
    %p73 = scmp.ne.s32.totalorder %s65, %s68
    %p74 = scmp.eq.s32.totalorder %s8, 0
    %p75 = por %p73, %p74
    %p76 = scmp.ne.s32.totalorder %s65, %s68
    %p77 = scmp.eq.s32.totalorder %s13, 1
    %p78 = por %p76, %p77
    %p79 = scmp.ne.s32.totalorder %s68, %s69
    %p80 = scmp.eq.s32.totalorder %s13, 0
    %p81 = por %p79, %p80
    %p82 = scmp.ne.s32.totalorder %s68, %s69
    %p83 = scmp.eq.s32.totalorder %s14, 1
    %p84 = por %p82, %p83
    %p86 = scmp.ne.s32.totalorder %s69, %s85
    %p87 = scmp.eq.s32.totalorder %s14, 0
    %p88 = por %p86, %p87
    %p89 = scmp.le.s32.totalorder 1, %s8
    %p90 = scmp.lt.s32.totalorder %s8, 3
    %p91 = pnand %p89, %p90
    %p92 = pneg %p91
    // Predicated region
    $region9: #{a_call__.11} parent=5 // pred_check
      _
    $region10: #{a_call__.11} parent=5 // pred_check_branch
      %94 = sbr.rel (%p91) target = $region12
    $region11: #{a_call__.11} parent=5 // pred_region
      %s95 = ssub.s32 %s8, 1
      // Predicated region
      $region13: #{a_call__.11} parent=11 // pred_check
        %p96 = pneg %p55
      $region14: #{a_call__.11} parent=11 // pred_check_branch
        %98 = sbr.rel (%p96) target = $region16
      $region15: #{a_call__.11} parent=11 // pred_region
        _
      $region16: #{a_call__.11} parent=11 // pred_fallthru
        _
    $region12: #{a_call__.11} parent=5 // pred_fallthru
      _
    %p99 = scmp.lt.s32.totalorder %s8, 2
    // Predicated region
    $region17: #{a_call__.11} parent=5 // pred_check
      %p100 = pneg %p99
    $region18: #{a_call__.11} parent=5 // pred_check_branch
      %102 = sbr.rel (%p100) target = $region20
    $region19: #{a_call__.11} parent=5 // pred_region
      // Predicated region
      $region21: #{a_call__.11} parent=19 // pred_check
        %p103 = pneg %p28
      $region22: #{a_call__.11} parent=19 // pred_check_branch
        %105 = sbr.rel (%p103) target = $region24
      $region23: #{a_call__.11} parent=19 // pred_region
        %p106 = scmp.lt.s32.totalorder %s8, 1
        %s107 = scalar_select %p106, %s8, 1
        %s108 = smul.addr %s107, 2
        %s109 = scalar_lea.vmem %s0, %s108
      $region24: #{a_call__.11} parent=19 // pred_fallthru
        _
    $region20: #{a_call__.11} parent=5 // pred_fallthru
      _
    %p110 = scmp.le.s32.totalorder 1, %s8
    %p111 = scmp.lt.s32.totalorder %s8, 3
    %p112 = pnand %p110, %p111
    %p113 = pneg %p112
    // Predicated region
    $region25: #{a_call__.11} parent=5 // pred_check
      _
    $region26: #{a_call__.11} parent=5 // pred_check_branch
      %115 = sbr.rel (%p112) target = $region28
    $region27: #{a_call__.11} parent=5 // pred_region
      %s116 = ssub.s32 %s8, 1
      %p117 = scmp.lt.s32.totalorder %s13, 1
      %s118 = scalar_select %p117, %s13, 1
      %s119 = smul.addr %s118, 2
      %s120 = scalar_lea.vmem %s0, %s119
      %p121 = pneg %p34
      %p122 = pneg %p31
      %p123 = pneg %p55
      %p124 = pneg %p52
      %p125 = pneg %p81
      %p126 = pneg %p78
      %p127 = scmp.lt.s32.totalorder %s13, 1
      %s128 = scalar_select %p127, %s13, 1
      %s129 = smul.addr %s128, 8
      %s130 = scalar_lea.vmem %s2, %s129
      %p131 = scmp.lt.s32.totalorder %s13, 1
      %s132 = scalar_select %p131, %s13, 1
      %s133 = smul.addr %s132, 2
      %s134 = scalar_lea.vmem %s0, %s133
      %p135 = scmp.lt.s32.totalorder %s13, 1
      %s136 = scalar_select %p135, %s13, 1
      %s137 = smul.addr %s136, 8
      %s138 = scalar_lea.vmem %s2, %s137
      %v139 = vld [vmem:[%s134] sm:$0x3]
      %v140 = vadd.f32 %v139, 1.0
      %v141 = vmul.f32 %v140, 7.5
      %v142 = vfloor.f32 %v141
      %v143 = vcvt.f32.s32.to.zero.pseudo %v142
      %v144 = vsub.f32 %v141, %v142
      %v145 = vlaneseq
      %v146 = vshrl.u32 %v145, 7
      %v147 = vadd.s32 %v146, 8
      %v148 = vlaneseq
      %v149 = vshrl.u32 %v148, 7
      %v150 = vsub.s32 0, %v149
      %v151 = vrot.slane %v143, %v150
      %vm152 = vcmp.eq.s32.totalorder %v146, %v151
      %vm153 = vcmp.eq.s32.totalorder %v147, %v151
      %v154 = vsub.f32 1.0, %v144
      %v155 = vlaneseq
      %v156 = vshrl.u32 %v155, 7
      %v157 = vsub.s32 0, %v156
      %v158 = vrot.slane %v154, %v157
      %v159 = vsel %vm152, %v158, 0.0
      %v160 = vsel %vm153, %v158, 0.0
      %v161 = vadd.s32 %v143, 1
      %v162 = vlaneseq
      %v163 = vshrl.u32 %v162, 7
      %v164 = vsub.s32 0, %v163
      %v165 = vrot.slane %v161, %v164
      %vm166 = vcmp.eq.s32.totalorder %v146, %v165
      %vm167 = vcmp.eq.s32.totalorder %v147, %v165
      %v168 = vlaneseq
      %v169 = vshrl.u32 %v168, 7
      %v170 = vsub.s32 0, %v169
      %v171 = vrot.slane %v144, %v170
      %v172 = vsel %vm166, %v171, 0.0
      %v173 = vsel %vm167, %v171, 0.0
      %v174 = vadd.f32 %v159, %v172
      %v175 = vadd.f32 %v160, %v173
      %v176 = vlaneseq
      %v177 = vshrl.u32 %v176, 7
      %v178 = vsub.s32 1, %v177
      %v179 = vrot.slane %v143, %v178
      %vm180 = vcmp.eq.s32.totalorder %v146, %v179
      %vm181 = vcmp.eq.s32.totalorder %v147, %v179
      %v182 = vlaneseq
      %v183 = vshrl.u32 %v182, 7
      %v184 = vsub.s32 1, %v183
      %v185 = vrot.slane %v154, %v184
      %v186 = vsel %vm180, %v185, 0.0
      %v187 = vsel %vm181, %v185, 0.0
      %v188 = vlaneseq
      %v189 = vshrl.u32 %v188, 7
      %v190 = vsub.s32 1, %v189
      %v191 = vrot.slane %v161, %v190
      %vm192 = vcmp.eq.s32.totalorder %v146, %v191
      %vm193 = vcmp.eq.s32.totalorder %v147, %v191
      %v194 = vlaneseq
      %v195 = vshrl.u32 %v194, 7
      %v196 = vsub.s32 1, %v195
      %v197 = vrot.slane %v144, %v196
      %v198 = vsel %vm192, %v197, 0.0
      %v199 = vsel %vm193, %v197, 0.0
      %v200 = vadd.f32 %v186, %v198
      %v201 = vadd.f32 %v187, %v199
      %v202 = vld [vmem:[%s1] sm:$0xff]
      %v203 = vld [vmem:[%s1 + $0x8] sm:$0xff]
      %v204 = vld [vmem:[%s1 + $0x10] sm:$0xff]
      %v205 = vld [vmem:[%s1 + $0x18] sm:$0xff]
      %v206 = vld [vmem:[%s1 + $0x20] sm:$0xff]
      %v207 = vld [vmem:[%s1 + $0x28] sm:$0xff]
      %v208 = vld [vmem:[%s1 + $0x30] sm:$0xff]
      %v209 = vld [vmem:[%s1 + $0x38] sm:$0xff]
      %v210 = vld [vmem:[%s1 + $0x40] sm:$0xff]
      %v211 = vld [vmem:[%s1 + $0x48] sm:$0xff]
      %v212 = vld [vmem:[%s1 + $0x50] sm:$0xff]
      %v213 = vld [vmem:[%s1 + $0x58] sm:$0xff]
      %v214 = vld [vmem:[%s1 + $0x60] sm:$0xff]
      %v215 = vld [vmem:[%s1 + $0x68] sm:$0xff]
      %v216 = vld [vmem:[%s1 + $0x70] sm:$0xff]
      %v217 = vld [vmem:[%s1 + $0x78] sm:$0xff]
      %vm218 = vcmask 130048
      %v220 = vsel %vm218, %v202, 0
      %v223 = vsel %vm218, %v203, 0
      %v226 = vsel %vm218, %v204, 0
      %v229 = vsel %vm218, %v205, 0
      %v232 = vsel %vm218, %v206, 0
      %v235 = vsel %vm218, %v207, 0
      %v238 = vsel %vm218, %v208, 0
      %v241 = vsel %vm218, %v209, 0
      %v244 = vsel %vm218, %v210, 0
      %v247 = vsel %vm218, %v211, 0
      %v250 = vsel %vm218, %v212, 0
      %v253 = vsel %vm218, %v213, 0
      %v256 = vsel %vm218, %v214, 0
      %v259 = vsel %vm218, %v215, 0
      %v262 = vsel %vm218, %v216, 0
      %v265 = vsel %vm218, %v217, 0
      %267 = vmatprep.subr.mxu0 0.0
      %268 = vmatpush1.msra.mxu0 %v174
      %269 = vmatprep.subr.mxu0 0.0
      %270 = vmatpush1.msra.mxu0 %v175
      %271 = vmatprep.subr.mxu0 0.0
      %272 = vmatpush1.msra.mxu0 0.0
      %273 = vmatprep.subr.mxu0 0.0
      %274 = vmatpush1.msra.mxu0 0.0
      %275 = vmatprep.subr.mxu0 0.0
      %276 = vmatpush1.msra.mxu0 0.0
      %277 = vmatprep.subr.mxu0 0.0
      %278 = vmatpush1.msra.mxu0 0.0
      %279 = vmatprep.subr.mxu0 0.0
      %280 = vmatpush1.msra.mxu0 0.0
      %281 = vmatprep.subr.mxu0 0.0
      %282 = vmatpush1.msra.mxu0 0.0
      %283 = vmatprep.subr.mxu0 0.0
      %284 = vmatpush1.msra.mxu0 0.0
      %285 = vmatprep.subr.mxu0 0.0
      %286 = vmatpush1.msra.mxu0 0.0
      %287 = vmatprep.subr.mxu0 0.0
      %288 = vmatpush1.msra.mxu0 0.0
      %289 = vmatprep.subr.mxu0 0.0
      %290 = vmatpush1.msra.mxu0 0.0
      %291 = vmatprep.subr.mxu0 0.0
      %292 = vmatpush1.msra.mxu0 0.0
      %293 = vmatprep.subr.mxu0 0.0
      %294 = vmatpush1.msra.mxu0 0.0
      %295 = vmatprep.subr.mxu0 0.0
      %296 = vmatpush1.msra.mxu0 0.0
      %297 = vmatprep.subr.mxu0 0.0
      %298 = vmatpush1.msra.mxu0 0.0
      %299 = vmatprep.subr.mxu0 0.0
      %300 = vmatpush1.msra.mxu0 0.0
      %301 = vmatprep.subr.mxu0 0.0
      %302 = vmatpush1.msra.mxu0 0.0
      %303 = vmatprep.subr.mxu0 0.0
      %304 = vmatpush1.msra.mxu0 0.0
      %305 = vmatprep.subr.mxu0 0.0
      %306 = vmatpush1.msra.mxu0 0.0
      %307 = vmatprep.subr.mxu0 0.0
      %308 = vmatpush1.msra.mxu0 0.0
      %309 = vmatprep.subr.mxu0 0.0
      %310 = vmatpush1.msra.mxu0 0.0
      %311 = vmatprep.subr.mxu0 0.0
      %312 = vmatpush1.msra.mxu0 0.0
      %313 = vmatprep.subr.mxu0 0.0
      %314 = vmatpush1.msra.mxu0 0.0
      %315 = vmatprep.subr.mxu0 0.0
      %316 = vmatpush1.msra.mxu0 0.0
      %317 = vmatprep.subr.mxu0 0.0
      %318 = vmatpush1.msra.mxu0 0.0
      %319 = vmatprep.subr.mxu0 0.0
      %320 = vmatpush1.msra.mxu0 0.0
      %321 = vmatprep.subr.mxu0 0.0
      %322 = vmatpush1.msra.mxu0 0.0
      %323 = vmatprep.subr.mxu0 0.0
      %324 = vmatpush1.msra.mxu0 0.0
      %325 = vmatprep.subr.mxu0 0.0
      %326 = vmatpush1.msra.mxu0 0.0
      %327 = vmatprep.subr.mxu0 0.0
      %328 = vmatpush1.msra.mxu0 0.0
      %329 = vmatprep.subr.mxu0 0.0
      %330 = vmatpush1.msra.mxu0 0.0
      %331 = vmatprep.mubr.f32.mxu0 0.0
      %332 = vmatmul.mubr.f32.gmra.mrb[0].mxu0 %v220
      %v333 = vpop.f32.mrb[0].mxu0
      %v334 = vadd.f32 0.0, %v333
      %v335 = vpop.f32.mrb[0].mxu0
      %336 = vmatprep.mubr.f32.mxu0 0.0
      %337 = vmatmul.mubr.f32.gmra.mrb[0].mxu0 %v223
      %v338 = vpop.f32.mrb[0].mxu0
      %v339 = vadd.f32 0.0, %v338
      %v340 = vpop.f32.mrb[0].mxu0
      %341 = vmatprep.mubr.f32.mxu0 0.0
      %342 = vmatmul.mubr.f32.gmra.mrb[0].mxu0 %v226
      %v343 = vpop.f32.mrb[0].mxu0
      %v344 = vadd.f32 0.0, %v343
      %v345 = vpop.f32.mrb[0].mxu0
      %346 = vmatprep.mubr.f32.mxu0 0.0
      %347 = vmatmul.mubr.f32.gmra.mrb[0].mxu0 %v229
      %v348 = vpop.f32.mrb[0].mxu0
      %v349 = vadd.f32 0.0, %v348
      %v350 = vpop.f32.mrb[0].mxu0
      %351 = vmatprep.mubr.f32.mxu0 0.0
      %352 = vmatmul.mubr.f32.gmra.mrb[0].mxu0 %v232
      %v353 = vpop.f32.mrb[0].mxu0
      %v354 = vadd.f32 0.0, %v353
      %v355 = vpop.f32.mrb[0].mxu0
      %356 = vmatprep.mubr.f32.mxu0 0.0
      %357 = vmatmul.mubr.f32.gmra.mrb[0].mxu0 %v235
      %v358 = vpop.f32.mrb[0].mxu0
      %v359 = vadd.f32 0.0, %v358
      %v360 = vpop.f32.mrb[0].mxu0
      %361 = vmatprep.mubr.f32.mxu0 0.0
      %362 = vmatmul.mubr.f32.gmra.mrb[0].mxu0 %v238
      %v363 = vpop.f32.mrb[0].mxu0
      %v364 = vadd.f32 0.0, %v363
      %v365 = vpop.f32.mrb[0].mxu0
      %366 = vmatprep.mubr.f32.mxu0 0.0
      %367 = vmatmul.mubr.f32.gmra.mrb[0].mxu0 %v241
      %v368 = vpop.f32.mrb[0].mxu0
      %v369 = vadd.f32 0.0, %v368
      %v370 = vpop.f32.mrb[0].mxu0
      %371 = vmatprep.mubr.f32.mxu0 0.0
      %372 = vmatmul.mubr.f32.gmra.mrb[0].mxu0 %v244
      %v373 = vpop.f32.mrb[0].mxu0
      %v374 = vadd.f32 0.0, %v373
      %v375 = vpop.f32.mrb[0].mxu0
      %376 = vmatprep.mubr.f32.mxu0 0.0
      %377 = vmatmul.mubr.f32.gmra.mrb[0].mxu0 %v247
      %v378 = vpop.f32.mrb[0].mxu0
      %v379 = vadd.f32 0.0, %v378
      %v380 = vpop.f32.mrb[0].mxu0
      %381 = vmatprep.mubr.f32.mxu0 0.0
      %382 = vmatmul.mubr.f32.gmra.mrb[0].mxu0 %v250
      %v383 = vpop.f32.mrb[0].mxu0
      %v384 = vadd.f32 0.0, %v383
      %v385 = vpop.f32.mrb[0].mxu0
      %386 = vmatprep.mubr.f32.mxu0 0.0
      %387 = vmatmul.mubr.f32.gmra.mrb[0].mxu0 %v253
      %v388 = vpop.f32.mrb[0].mxu0
      %v389 = vadd.f32 0.0, %v388
      %v390 = vpop.f32.mrb[0].mxu0
      %391 = vmatprep.mubr.f32.mxu0 0.0
      %392 = vmatmul.mubr.f32.gmra.mrb[0].mxu0 %v256
      %v393 = vpop.f32.mrb[0].mxu0
      %v394 = vadd.f32 0.0, %v393
      %v395 = vpop.f32.mrb[0].mxu0
      %396 = vmatprep.mubr.f32.mxu0 0.0
      %397 = vmatmul.mubr.f32.gmra.mrb[0].mxu0 %v259
      %v398 = vpop.f32.mrb[0].mxu0
      %v399 = vadd.f32 0.0, %v398
      %v400 = vpop.f32.mrb[0].mxu0
      %401 = vmatprep.mubr.f32.mxu0 0.0
      %402 = vmatmul.mubr.f32.gmra.mrb[0].mxu0 %v262
      %v403 = vpop.f32.mrb[0].mxu0
      %v404 = vadd.f32 0.0, %v403
      %v405 = vpop.f32.mrb[0].mxu0
      %406 = vmatprep.mubr.f32.mxu0 0.0
      %407 = vmatmul.mubr.f32.gmra.mrb[0].mxu0 %v265
      %v408 = vpop.f32.mrb[0].mxu0
      %v409 = vadd.f32 0.0, %v408
      %v410 = vpop.f32.mrb[0].mxu0
      %411 = vdwg.mxu0
      %v412 = vmul.f32 %v334, %v200
      %v413 = vmul.f32 %v339, %v201
      %v414 = vmul.f32 %v344, %v200
      %v415 = vmul.f32 %v349, %v201
      %v416 = vmul.f32 %v354, %v200
      %v417 = vmul.f32 %v359, %v201
      %v418 = vmul.f32 %v364, %v200
      %v419 = vmul.f32 %v369, %v201
      %v420 = vmul.f32 %v374, %v200
      %v421 = vmul.f32 %v379, %v201
      %v422 = vmul.f32 %v384, %v200
      %v423 = vmul.f32 %v389, %v201
      %v424 = vmul.f32 %v394, %v200
      %v425 = vmul.f32 %v399, %v201
      %v426 = vmul.f32 %v404, %v200
      %v427 = vmul.f32 %v409, %v201
      %v428 = vadd.f32 %v412, %v413
      %v429 = vrot.slane %v428, 4
      %v430 = vadd.f32 %v428, %v429
      %v431 = vrot.slane %v430, 2
      %v432 = vadd.f32 %v430, %v431
      %v433 = vrot.slane %v432, 1
      %v434 = vadd.f32 %v432, %v433
      %v435 = vadd.f32 %v414, %v415
      %v436 = vrot.slane %v435, 4
      %v437 = vadd.f32 %v435, %v436
      %v438 = vrot.slane %v437, 2
      %v439 = vadd.f32 %v437, %v438
      %v440 = vrot.slane %v439, 1
      %v441 = vadd.f32 %v439, %v440
      %v442 = vadd.f32 %v416, %v417
      %v443 = vrot.slane %v442, 4
      %v444 = vadd.f32 %v442, %v443
      %v445 = vrot.slane %v444, 2
      %v446 = vadd.f32 %v444, %v445
      %v447 = vrot.slane %v446, 1
      %v448 = vadd.f32 %v446, %v447
      %v449 = vadd.f32 %v418, %v419
      %v450 = vrot.slane %v449, 4
      %v451 = vadd.f32 %v449, %v450
      %v452 = vrot.slane %v451, 2
      %v453 = vadd.f32 %v451, %v452
      %v454 = vrot.slane %v453, 1
      %v455 = vadd.f32 %v453, %v454
      %v456 = vadd.f32 %v420, %v421
      %v457 = vrot.slane %v456, 4
      %v458 = vadd.f32 %v456, %v457
      %v459 = vrot.slane %v458, 2
      %v460 = vadd.f32 %v458, %v459
      %v461 = vrot.slane %v460, 1
      %v462 = vadd.f32 %v460, %v461
      %v463 = vadd.f32 %v422, %v423
      %v464 = vrot.slane %v463, 4
      %v465 = vadd.f32 %v463, %v464
      %v466 = vrot.slane %v465, 2
      %v467 = vadd.f32 %v465, %v466
      %v468 = vrot.slane %v467, 1
      %v469 = vadd.f32 %v467, %v468
      %v470 = vadd.f32 %v424, %v425
      %v471 = vrot.slane %v470, 4
      %v472 = vadd.f32 %v470, %v471
      %v473 = vrot.slane %v472, 2
      %v474 = vadd.f32 %v472, %v473
      %v475 = vrot.slane %v474, 1
      %v476 = vadd.f32 %v474, %v475
      %v477 = vadd.f32 %v426, %v427
      %v478 = vrot.slane %v477, 4
      %v479 = vadd.f32 %v477, %v478
      %v480 = vrot.slane %v479, 2
      %v481 = vadd.f32 %v479, %v480
      %v482 = vrot.slane %v481, 1
      %v483 = vadd.f32 %v481, %v482
      %vm492 = vcmask 1041409
      %v493 = vsel %vm492, %v441, %v434
      %vm494 = vcmask 1042434
      %v495 = vsel %vm494, %v448, %v493
      %vm496 = vcmask 1043459
      %v497 = vsel %vm496, %v455, %v495
      %vm498 = vcmask 1044484
      %v499 = vsel %vm498, %v462, %v497
      %vm500 = vcmask 1045509
      %v501 = vsel %vm500, %v469, %v499
      %vm502 = vcmask 1046534
      %v503 = vsel %vm502, %v476, %v501
      %vm504 = vcmask 1047559
      %v505 = vsel %vm504, %v483, %v503
      %507 = vst [vmem:[%s138] sm:$0xff] %v505
      %p508 = scmp.lt.s32.totalorder %s13, 1
      %s509 = scalar_select %p508, %s13, 1
      %s510 = smul.addr %s509, 8
      %s511 = scalar_lea.vmem %s2, %s510
      // Predicated region
      $region29: #{a_call__.11} parent=27 // pred_check
        %p512 = pneg %p78
      $region30: #{a_call__.11} parent=27 // pred_check_branch
        %514 = sbr.rel (%p512) target = $region32
      $region31: #{a_call__.11} parent=27 // pred_region
        _
      $region32: #{a_call__.11} parent=27 // pred_fallthru
        _
    $region28: #{a_call__.11} parent=5 // pred_fallthru
      _
    %p515 = scmp.le.s32.totalorder 2, %s8
    // Predicated region
    $region33: #{a_call__.11} parent=5 // pred_check
      %p516 = pneg %p515
    $region34: #{a_call__.11} parent=5 // pred_check_branch
      %518 = sbr.rel (%p516) target = $region36
    $region35: #{a_call__.11} parent=5 // pred_region
      %s519 = ssub.s32 %s8, 2
      // Predicated region
      $region37: #{a_call__.11} parent=35 // pred_check
        %p520 = pneg %p84
      $region38: #{a_call__.11} parent=35 // pred_check_branch
        %522 = sbr.rel (%p520) target = $region40
      $region39: #{a_call__.11} parent=35 // pred_region
        %p523 = scmp.lt.s32.totalorder %s14, 1
        %s524 = scalar_select %p523, %s14, 1
        %s525 = smul.addr %s524, 8
        %s526 = scalar_lea.vmem %s2, %s525
      $region40: #{a_call__.11} parent=35 // pred_fallthru
        _
    $region36: #{a_call__.11} parent=5 // pred_fallthru
      _
  $region6: #{a_call__.11} parent=0 // loop_footer
    %s12 = sadd.s32 1, %s8
  $region7: #{a_call__.11} parent=0 // loop_footer_branch
    %7 = sbr.rel target = $region3
  $region8: #{a_call__.11} parent=0 // loop_exit
    _

</llo_original>
